<compile_context>
chip_gen: v7x
topology: tpu7x:2x2x1
jax: 0.10.0
libtpu: 0.0.40
codegen_flags: <defaults>
</compile_context>

<pallas_src>
import jax
import jax.numpy as jnp
from jax import lax
from jax.experimental import pallas as pl
from jax.experimental.pallas import tpu as pltpu


# ---------------------------------------------------------------------------
# Helpers
# ---------------------------------------------------------------------------
def _pick_tile(n, desired, multiple=128):
    """Largest t <= desired with n % t == 0 and t % multiple == 0.

    Falls back to the full dimension (always a legal block); callers that could
    blow VMEM on that fallback guard it explicitly.
    """
    t = min(desired, n)
    t -= t % multiple
    while t >= multiple:
        if n % t == 0:
            return t
        t -= multiple
    return n


# ---------------------------------------------------------------------------
# Fused QKV projection (1x1x1 Conv3d == per-position linear), feature-major
# ---------------------------------------------------------------------------
def _make_qkv_kernel(kf):
    def kernel(x_ref, w_ref, b_ref, q_ref, k_ref, v_ref):
        x = x_ref[...].astype(jnp.bfloat16)                      # [Cin, ts]
        # [Ctot, Cin] @ [Cin, ts] -> [Ctot, ts], f32 accumulation on the MXU.
        acc = lax.dot_general(
            w_ref[...], x, (((1,), (0,)), ((), ())),
            preferred_element_type=jnp.float32)
        acc = acc + b_ref[...]                                   # bias (+1.0 rows for v)
        q_ref[...] = acc[:kf].astype(q_ref.dtype)
        k_ref[...] = acc[kf:2 * kf].astype(k_ref.dtype)
        v_ref[...] = acc[2 * kf:].astype(v_ref.dtype)            # includes the ones rows
    return kernel


def qkv_projection_pallas(x3, w_t, b, *, kf, ts_desired=1024):
    """x3: [B, Cin, S] f32, w_t: [Ctot, Cin] bf16, b: [Ctot, 1] f32.

    Returns feature-major bf16 q [Kf, B*S], k [Kf, B*S], v [Ctot-2Kf, B*S].
    """
    B, cin, S = x3.shape
    ctot = w_t.shape[0]
    vf_ext = ctot - 2 * kf
    npos = B * S
    ts = _pick_tile(S, ts_desired)
    ns = S // ts
    col = lambda bi, si: (0, bi * ns + si)
    return pl.pallas_call(
        _make_qkv_kernel(kf),
        out_shape=(
            jax.ShapeDtypeStruct((kf, npos), jnp.bfloat16),
            jax.ShapeDtypeStruct((kf, npos), jnp.bfloat16),
            jax.ShapeDtypeStruct((vf_ext, npos), jnp.bfloat16),
        ),
        grid=(B, ns),
        in_specs=[
            pl.BlockSpec((None, cin, ts), lambda bi, si: (bi, 0, si)),  # streamed x
            pl.BlockSpec((ctot, cin), lambda bi, si: (0, 0)),           # resident weight
            pl.BlockSpec((ctot, 1), lambda bi, si: (0, 0)),             # resident bias
        ],
        out_specs=(
            pl.BlockSpec((kf, ts), col),
            pl.BlockSpec((kf, ts), col),
            pl.BlockSpec((vf_ext, ts), col),
        ),
        compiler_params=pltpu.CompilerParams(
            dimension_semantics=("parallel", "parallel")),
    )(x3, w_t, b)


# ---------------------------------------------------------------------------
# Flash attention over the flattened (head * batch * spatial) axis, feature-major
# ---------------------------------------------------------------------------
def _make_flash_kernel(dv):
    def kernel(q_ref, k_ref, v_ref, o_ref, m_sc, acc_sc):
        kv = pl.program_id(1)

        @pl.when(kv == 0)
        def _():
            m_sc[...] = jnp.full(m_sc.shape, -jnp.inf, dtype=m_sc.dtype)
            acc_sc[...] = jnp.zeros_like(acc_sc)

        # Transposed scores s_t[kk, qq] = sum_c k[c, kk] * q[c, qq]  (f32, [tk, tq]);
        # the long tq axis stays on lanes, all stats are [1, tq].
        s_t = lax.dot_general(
            k_ref[...], q_ref[...], (((0,), (0,)), ((), ())),
            preferred_element_type=jnp.float32)

        m_prev = m_sc[...]                                           # [1, tq]
        m_new = jnp.maximum(m_prev, jnp.max(s_t, axis=0, keepdims=True))
        alpha = jnp.exp(m_prev - m_new)                              # rescale old stats
        # f32 exp (v5e-safe); single cast for the MXU.
        # TODO(synk): on v6e/v7x a bf16 exp of (s_t - m_new) is ~2x EUP throughput.
        p_t = jnp.exp(s_t - m_new).astype(jnp.bfloat16)              # [tk, tq]

        # v carries a trailing ones row, so row dv of the product is row-sum(p), i.e.
        # the softmax-denominator update fused into the same MXU pass.
        acc_sc[...] = alpha * acc_sc[...] + lax.dot_general(
            v_ref[...], p_t, (((1,), (0,)), ((), ())),
            preferred_element_type=jnp.float32)                      # [dv+1, tq]
        m_sc[...] = m_new

        @pl.when(kv == pl.num_programs(1) - 1)
        def _():
            inv_l = pl.reciprocal(acc_sc[dv:, :], approx=True)       # EUP slot, ~free
            o_ref[...] = (acc_sc[:dv, :] * inv_l).astype(o_ref.dtype)
    return kernel


def flash_attention_pallas(q, k, v, *, tq_desired=512, tk_desired=1024):
    """Feature-major flash attention; global softmax over the whole N axis.

    q, k: [dk, N] bf16; v: [dv+1, N] bf16 (last row must be ones).  Returns [dv, N] bf16.
    """
    dk, n = q.shape
    dve = v.shape[0]
    dv = dve - 1
    tq = _pick_tile(n, tq_desired)
    tk = _pick_tile(n, tk_desired)
    if tq * tk * 4 > 16 * 1024 * 1024:
        # TODO(synk): pad N to a 128-multiple and mask padded kv columns instead of
        # falling back to a full-extent tile (which would blow scoped VMEM).
        raise ValueError(
            f"attention axis N={n} has no 128-multiple tiling <= "
            f"({tq_desired}, {tk_desired}); refusing a {tq}x{tk} f32 score tile.")
    return pl.pallas_call(
        _make_flash_kernel(dv),
        out_shape=jax.ShapeDtypeStruct((dv, n), jnp.bfloat16),
        grid=(n // tq, n // tk),                                     # kv reduction last
        in_specs=[
            pl.BlockSpec((dk, tq), lambda qi, ki: (0, qi)),
            pl.BlockSpec((dk, tk), lambda qi, ki: (0, ki)),
            pl.BlockSpec((dve, tk), lambda qi, ki: (0, ki)),
        ],
        out_specs=pl.BlockSpec((dv, tq), lambda qi, ki: (0, qi)),
        scratch_shapes=[
            pltpu.VMEM((1, tq), jnp.float32),                        # running max
            pltpu.VMEM((dve, tq), jnp.float32),                      # [acc | denom]
        ],
        compiler_params=pltpu.CompilerParams(
            dimension_semantics=("parallel", "arbitrary")),
    )(q, k, v)


# ---------------------------------------------------------------------------
# Output 1x1x1 conv, written directly into NCDHW layout
# ---------------------------------------------------------------------------
def _out_proj_kernel(x_ref, w_ref, b_ref, o_ref):
    acc = lax.dot_general(
        w_ref[...], x_ref[...], (((1,), (0,)), ((), ())),
        preferred_element_type=jnp.float32)                          # [Co, ts]
    o_ref[...] = (acc + b_ref[...]).astype(o_ref.dtype)


def out_projection_pallas(o_cm, w_t, b, *, batch, ts_desired=1024):
    """o_cm: [Vf, B*S] bf16, w_t: [Co, Vf] bf16, b: [Co, 1] f32 -> [B, Co, S] f32."""
    vf, npos = o_cm.shape
    co = w_t.shape[0]
    S = npos // batch
    ts = _pick_tile(S, ts_desired)
    ns = S // ts
    return pl.pallas_call(
        _out_proj_kernel,
        out_shape=jax.ShapeDtypeStruct((batch, co, S), jnp.float32),
        grid=(batch, ns),
        in_specs=[
            pl.BlockSpec((vf, ts), lambda bi, si: (0, bi * ns + si)),
            pl.BlockSpec((co, vf), lambda bi, si: (0, 0)),
            pl.BlockSpec((co, 1), lambda bi, si: (0, 0)),
        ],
        out_specs=pl.BlockSpec((None, co, ts), lambda bi, si: (bi, 0, si)),
        compiler_params=pltpu.CompilerParams(
            dimension_semantics=("parallel", "parallel")),
    )(o_cm, w_t, b)


# ---------------------------------------------------------------------------
# Module forward (glue in plain JAX, hot path in Pallas)
# ---------------------------------------------------------------------------
def multi_head_attention_3d_forward(x, params, num_heads):
    """x: [B, C, D, H, W] (NCDHW, matching PyTorch) -> [B, Co, D, H, W]."""
    B, C, D, H, W = x.shape
    key_filters = params["wq"].shape[1]
    value_filters = params["wv"].shape[1]
    out_filters = params["wo"].shape[1]
    nh = num_heads
    dk = key_filters // nh
    dv = value_filters // nh
    inv_scale = 1.0 / (float(dk) ** 0.5)

    S = D * H * W
    npos = B * S
    n = npos * nh                            # flattened (head, batch, spatial) axis

    # ---- trace-time weight packing (all tiny; done once per jit trace) ----------
    # Output channels are reordered from (head, c) to (c, head) so every later head
    # split / merge is a free reshape of a feature-major tensor.
    def perm_cols(w, sub):                   # [Cin, nh*sub] -> column order c*nh + h
        cin = w.shape[0]
        return w.reshape(cin, nh, sub).transpose(0, 2, 1).reshape(cin, nh * sub)

    def perm_vec(b, sub):
        return b.reshape(nh, sub).T.reshape(-1)

    # Fused QKV weight transposed to [Ctot, Cin]; 1/sqrt(dk) folded into wq/bq; the
    # trailing nh all-zero columns with bias 1.0 make the projection emit the ones
    # rows the flash kernel uses to fuse the softmax denominator into the P.V matmul.
    w_fused = jnp.concatenate(
        [perm_cols(params["wq"], dk) * inv_scale,
         perm_cols(params["wk"], dk),
         perm_cols(params["wv"], dv),
         jnp.zeros((C, nh), jnp.float32)], axis=1)
    w_fused_t = w_fused.T.astype(jnp.bfloat16)                       # [2Kf+Vf+nh, C]
    b_fused = jnp.concatenate(
        [perm_vec(params["bq"], dk) * inv_scale,
         perm_vec(params["bk"], dk),
         perm_vec(params["bv"], dv),
         jnp.ones((nh,), jnp.float32)]).reshape(-1, 1)

    wo_p = params["wo"].reshape(nh, dv, out_filters).transpose(1, 0, 2)
    wo_t = wo_p.reshape(value_filters, out_filters).T.astype(jnp.bfloat16)  # [Co, Vf]
    bo = params["bo"].reshape(out_filters, 1)

    # ---- fused QKV projection (feature-major bf16 outputs) ----------------------
    q, k, v = qkv_projection_pallas(x.reshape(B, C, S), w_fused_t, b_fused,
                                    kf=key_filters)

    # Head split == free reshape thanks to the (c, h) channel ordering:
    #   [dk*nh, B*S] -> [dk, nh*B*S]; the attention N axis is ordered (head, b, s).
    q = q.reshape(dk, n)
    k = k.reshape(dk, n)
    v = v.reshape(dv + 1, n)                 # last row is all ones

    # ---- global-softmax flash attention over the whole N axis -------------------
    o = flash_attention_pallas(q, k, v)      # [dv, N] bf16

    # Head merge == free reshape back to channel-major-per-position [Vf, B*S].
    o_cm = o.reshape(value_filters, npos)

    # ---- output 1x1x1 conv, emitted directly in NCDHW ----------------------------
    out = out_projection_pallas(o_cm, wo_t, bo, batch=B)             # [B, Co, S] f32
    return out.reshape(B, out_filters, D, H, W)


def reference_forward(x, params, num_heads):
    """Pure-jnp f32 reference replicating the PyTorch forward (eval mode)."""
    B, C, D, H, W = x.shape
    key_filters = params["wq"].shape[1]
    value_filters = params["wv"].shape[1]
    dk = key_filters // num_heads
    dv = value_filters // num_heads
    scale = float(dk) ** 0.5

    npos = B * D * H * W
    x_flat = jnp.transpose(x, (0, 2, 3, 4, 1)).reshape(npos, C)
    q = x_flat @ params["wq"] + params["bq"]
    k = x_flat @ params["wk"] + params["bk"]
    v = x_flat @ params["wv"] + params["bv"]
    n = npos * num_heads
    q = q.reshape(n, dk) / scale
    k = k.reshape(n, dk)
    v = v.reshape(n, dv)
    a = jax.nn.softmax(q @ k.T, axis=1)
    o = (a @ v).reshape(npos, num_heads * dv)
    out = o @ params["wo"] + params["bo"]
    co = params["wo"].shape[1]
    return jnp.transpose(out.reshape(B, D, H, W, co), (0, 4, 1, 2, 3))


# ---------------------------------------------------------------------------
# Deterministic parameter initialization (shapes from the module __init__)
# ---------------------------------------------------------------------------
def init_params(key, in_channel, key_filters, value_filters, output_filters):
    ks = jax.random.split(key, 8)
    s = 0.1
    return {
        "wq": s * jax.random.normal(ks[0], (in_channel, key_filters), jnp.float32),
        "bq": s * jax.random.normal(ks[1], (key_filters,), jnp.float32),
        "wk": s * jax.random.normal(ks[2], (in_channel, key_filters), jnp.float32),
        "bk": s * jax.random.normal(ks[3], (key_filters,), jnp.float32),
        "wv": s * jax.random.normal(ks[4], (in_channel, value_filters), jnp.float32),
        "bv": s * jax.random.normal(ks[5], (value_filters,), jnp.float32),
        "wo": s * jax.random.normal(ks[6], (value_filters, output_filters), jnp.float32),
        "bo": s * jax.random.normal(ks[7], (output_filters,), jnp.float32),
    }


if __name__ == "__main__":
    # Small shapes consistent with the module: B, C, D, H, W.
    # Npos = 2*8*8*8 = 1024 positions; attention axis N = Npos*num_heads = 2048.
    B, C, D, H, W = 2, 4, 8, 8, 8
    key_filters, value_filters, output_filters, num_heads = 8, 8, 4, 2

    root = jax.random.PRNGKey(0)
    kx, kp = jax.random.split(root)
    x = jax.random.normal(kx, (B, C, D, H, W), jnp.float32)
    params = init_params(kp, C, key_filters, value_filters, output_filters)

    fwd = jax.jit(multi_head_attention_3d_forward, static_argnums=2)
    out = fwd(x, params, num_heads)
    out = jax.block_until_ready(out)

    ref = reference_forward(x, params, num_heads)
    assert out.shape == (B, output_filters, D, H, W), out.shape
    # bf16 MXU inputs / bf16 intermediates + approximate reciprocal => loose tolerance.
    assert jnp.allclose(out, ref, atol=2e-2, rtol=2e-2), (
        "mismatch vs reference: max abs err = "
        + str(float(jnp.max(jnp.abs(out - ref)))))

    print("KERNEL_OK")
</pallas_src>

<mosaic_0001>
module attributes {stable_mosaic.version = 11 : i64} {
  func.func @kernel(%arg0: i32, %arg1: i32, %arg2: memref<1x4x512xf32, #tpu.memory_space<vmem>>, %arg3: memref<26x4xbf16, #tpu.memory_space<vmem>>, %arg4: memref<26x1xf32, #tpu.memory_space<vmem>>, %arg5: memref<8x512xbf16, #tpu.memory_space<vmem>>, %arg6: memref<8x512xbf16, #tpu.memory_space<vmem>>, %arg7: memref<10x512xbf16, #tpu.memory_space<vmem>>) attributes {dimension_semantics = [#tpu.dimension_semantics<parallel>, #tpu.dimension_semantics<parallel>], iteration_bounds = array<i64: 2, 1>, scalar_prefetch = 0 : i64, scratch_operands = 0 : i64, tpu.core_type = #tpu.core_type<tc>, window_params = [{transform_indices = @transform_0, window_bounds = array<i64: 1, 4, 512>}, {pipeline_mode = #tpu.pipeline_mode<synchronous>, transform_indices = @transform_1, window_bounds = array<i64: 26, 4>}, {pipeline_mode = #tpu.pipeline_mode<synchronous>, transform_indices = @transform_2, window_bounds = array<i64: 26, 1>}, {transform_indices = @transform_3, window_bounds = array<i64: 8, 512>}, {transform_indices = @transform_4, window_bounds = array<i64: 8, 512>}, {transform_indices = @transform_5, window_bounds = array<i64: 10, 512>}]} {
    %c0 = arith.constant 0 : index
    %c0_0 = arith.constant 0 : index
    %c0_1 = arith.constant 0 : index
    %0 = vector.load %arg2[%c0, %c0_0, %c0_1] : memref<1x4x512xf32, #tpu.memory_space<vmem>>, vector<1x4x512xf32>
    %1 = vector.shape_cast %0 : vector<1x4x512xf32> to vector<4x512xf32>
    %2 = arith.truncf %1 : vector<4x512xf32> to vector<4x512xbf16>
    %c0_2 = arith.constant 0 : index
    %c0_3 = arith.constant 0 : index
    %3 = vector.load %arg3[%c0_2, %c0_3] : memref<26x4xbf16, #tpu.memory_space<vmem>>, vector<26x4xbf16>
    %cst = arith.constant dense<0.000000e+00> : vector<26x512xf32>
    %4 = tpu.matmul %3, %2, %cst {dimension_numbers = #tpu.dot_dimension_numbers<[1], [0], [0], [1], [0, 0, 1, 1], [], []>} : vector<26x4xbf16>, vector<4x512xbf16>, vector<26x512xf32> -> vector<26x512xf32>
    %c0_4 = arith.constant 0 : index
    %c0_5 = arith.constant 0 : index
    %5 = vector.load %arg4[%c0_4, %c0_5] : memref<26x1xf32, #tpu.memory_space<vmem>>, vector<26x1xf32>
    %6 = vector.broadcast %5 : vector<26x1xf32> to vector<26x512xf32>
    %7 = arith.addf %4, %6 : vector<26x512xf32>
    %8 = vector.extract_strided_slice %7 {offsets = [0, 0], sizes = [8, 512], strides = [1, 1]} : vector<26x512xf32> to vector<8x512xf32>
    %9 = arith.truncf %8 : vector<8x512xf32> to vector<8x512xbf16>
    %c0_6 = arith.constant 0 : index
    %c0_7 = arith.constant 0 : index
    %10 = vector.load %arg5[%c0_6, %c0_7] : memref<8x512xbf16, #tpu.memory_space<vmem>>, vector<8x512xbf16>
    tpu.vector_store %arg5[%c0_6, %c0_7], %9 {strides = array<i32>} : memref<8x512xbf16, #tpu.memory_space<vmem>>, vector<8x512xbf16>,
    %11 = vector.extract_strided_slice %7 {offsets = [8, 0], sizes = [8, 512], strides = [1, 1]} : vector<26x512xf32> to vector<8x512xf32>
    %12 = arith.truncf %11 : vector<8x512xf32> to vector<8x512xbf16>
    %c0_8 = arith.constant 0 : index
    %c0_9 = arith.constant 0 : index
    %13 = vector.load %arg6[%c0_8, %c0_9] : memref<8x512xbf16, #tpu.memory_space<vmem>>, vector<8x512xbf16>
    tpu.vector_store %arg6[%c0_8, %c0_9], %12 {strides = array<i32>} : memref<8x512xbf16, #tpu.memory_space<vmem>>, vector<8x512xbf16>,
    %14 = vector.extract_strided_slice %7 {offsets = [16, 0], sizes = [10, 512], strides = [1, 1]} : vector<26x512xf32> to vector<10x512xf32>
    %15 = arith.truncf %14 : vector<10x512xf32> to vector<10x512xbf16>
    %c0_10 = arith.constant 0 : index
    %c0_11 = arith.constant 0 : index
    %16 = vector.load %arg7[%c0_10, %c0_11] : memref<10x512xbf16, #tpu.memory_space<vmem>>, vector<10x512xbf16>
    tpu.vector_store %arg7[%c0_10, %c0_11], %15 {strides = array<i32>} : memref<10x512xbf16, #tpu.memory_space<vmem>>, vector<10x512xbf16>,
    return
  }
  func.func @transform_0(%arg0: i32, %arg1: i32) -> (i32, i32, i32) {
    %c0_i32 = arith.constant 0 : i32
    %c0_i32_0 = arith.constant 0 : i32
    return %arg0, %c0_i32, %arg1 : i32, i32, i32
  }
  func.func @transform_1(%arg0: i32, %arg1: i32) -> (i32, i32) {
    %c0_i32 = arith.constant 0 : i32
    %c0_i32_0 = arith.constant 0 : i32
    %c0_i32_1 = arith.constant 0 : i32
    return %c0_i32, %c0_i32_0 : i32, i32
  }
  func.func @transform_2(%arg0: i32, %arg1: i32) -> (i32, i32) {
    %c0_i32 = arith.constant 0 : i32
    %c0_i32_0 = arith.constant 0 : i32
    %c0_i32_1 = arith.constant 0 : i32
    return %c0_i32, %c0_i32_0 : i32, i32
  }
  func.func @transform_3(%arg0: i32, %arg1: i32) -> (i32, i32) {
    %c1_i32 = arith.constant 1 : i32
    %0 = arith.muli %arg0, %c1_i32 : i32
    %1 = arith.addi %0, %arg1 : i32
    %c0_i32 = arith.constant 0 : i32
    %c0_i32_0 = arith.constant 0 : i32
    return %c0_i32, %1 : i32, i32
  }
  func.func @transform_4(%arg0: i32, %arg1: i32) -> (i32, i32) {
    %c1_i32 = arith.constant 1 : i32
    %0 = arith.muli %arg0, %c1_i32 : i32
    %1 = arith.addi %0, %arg1 : i32
    %c0_i32 = arith.constant 0 : i32
    %c0_i32_0 = arith.constant 0 : i32
    return %c0_i32, %1 : i32, i32
  }
  func.func @transform_5(%arg0: i32, %arg1: i32) -> (i32, i32) {
    %c1_i32 = arith.constant 1 : i32
    %0 = arith.muli %arg0, %c1_i32 : i32
    %1 = arith.addi %0, %arg1 : i32
    %c0_i32 = arith.constant 0 : i32
    %c0_i32_0 = arith.constant 0 : i32
    return %c0_i32, %1 : i32, i32
  }
}

module attributes {stable_mosaic.version = 11 : i64} {
  func.func @kernel(%arg0: i32, %arg1: i32, %arg2: memref<4x512xbf16, #tpu.memory_space<vmem>>, %arg3: memref<4x1024xbf16, #tpu.memory_space<vmem>>, %arg4: memref<5x1024xbf16, #tpu.memory_space<vmem>>, %arg5: memref<4x512xbf16, #tpu.memory_space<vmem>>, %arg6: memref<1x512xf32, #tpu.memory_space<vmem>>, %arg7: memref<5x512xf32, #tpu.memory_space<vmem>>) attributes {dimension_semantics = [#tpu.dimension_semantics<parallel>, #tpu.dimension_semantics<arbitrary>], iteration_bounds = array<i64: 4, 2>, scalar_prefetch = 0 : i64, scratch_operands = 2 : i64, tpu.core_type = #tpu.core_type<tc>, window_params = [{transform_indices = @transform_0, window_bounds = array<i64: 4, 512>}, {transform_indices = @transform_1, window_bounds = array<i64: 4, 1024>}, {transform_indices = @transform_2, window_bounds = array<i64: 5, 1024>}, {transform_indices = @transform_3, window_bounds = array<i64: 4, 512>}]} {
    %c0_i32 = arith.constant 0 : i32
    %0 = arith.cmpi eq, %arg1, %c0_i32 : i32
    %1 = arith.extui %0 : i1 to i32
    %c0_i32_0 = arith.constant 0 : i32
    %2 = arith.cmpi ne, %1, %c0_i32_0 : i32
    scf.if %2 {
      %cst_17 = arith.constant 0xFF800000 : f32
      %27 = vector.broadcast %cst_17 : f32 to vector<1x512xf32>
      %c0_18 = arith.constant 0 : index
      %c0_19 = arith.constant 0 : index
      %28 = vector.load %arg6[%c0_18, %c0_19] : memref<1x512xf32, #tpu.memory_space<vmem>>, vector<1x512xf32>
      tpu.vector_store %arg6[%c0_18, %c0_19], %27 {strides = array<i32>} : memref<1x512xf32, #tpu.memory_space<vmem>>, vector<1x512xf32>,
      %cst_20 = arith.constant 0.000000e+00 : f32
      %29 = vector.broadcast %cst_20 : f32 to vector<5x512xf32>
      %c0_21 = arith.constant 0 : index
      %c0_22 = arith.constant 0 : index
      %30 = vector.load %arg7[%c0_21, %c0_22] : memref<5x512xf32, #tpu.memory_space<vmem>>, vector<5x512xf32>
      tpu.vector_store %arg7[%c0_21, %c0_22], %29 {strides = array<i32>} : memref<5x512xf32, #tpu.memory_space<vmem>>, vector<5x512xf32>,
    } else {
    }
    %c0 = arith.constant 0 : index
    %c0_1 = arith.constant 0 : index
    %3 = vector.load %arg3[%c0, %c0_1] : memref<4x1024xbf16, #tpu.memory_space<vmem>>, vector<4x1024xbf16>
    %c0_2 = arith.constant 0 : index
    %c0_3 = arith.constant 0 : index
    %4 = vector.load %arg2[%c0_2, %c0_3] : memref<4x512xbf16, #tpu.memory_space<vmem>>, vector<4x512xbf16>
    %cst = arith.constant dense<0.000000e+00> : vector<1024x512xf32>
    %5 = tpu.matmul %3, %4, %cst {dimension_numbers = #tpu.dot_dimension_numbers<[0], [0], [1], [1], [0, 1, 1, 1], [], []>} : vector<4x1024xbf16>, vector<4x512xbf16>, vector<1024x512xf32> -> vector<1024x512xf32>
    %c0_4 = arith.constant 0 : index
    %c0_5 = arith.constant 0 : index
    %6 = vector.load %arg6[%c0_4, %c0_5] : memref<1x512xf32, #tpu.memory_space<vmem>>, vector<1x512xf32>
    %cst_6 = arith.constant dense<0xFF800000> : vector<512xf32>
    %7 = vector.multi_reduction <maximumf>, %5, %cst_6 [0] : vector<1024x512xf32> to vector<512xf32>
    %8 = vector.shape_cast %7 : vector<512xf32> to vector<1x512xf32>
    %9 = arith.maximumf %6, %8 : vector<1x512xf32>
    %10 = arith.subf %6, %9 : vector<1x512xf32>
    %11 = math.exp %10 : vector<1x512xf32>
    %12 = vector.broadcast %9 : vector<1x512xf32> to vector<1024x512xf32>
    %13 = arith.subf %5, %12 : vector<1024x512xf32>
    %14 = math.exp %13 : vector<1024x512xf32>
    %15 = arith.truncf %14 : vector<1024x512xf32> to vector<1024x512xbf16>
    %c0_7 = arith.constant 0 : index
    %c0_8 = arith.constant 0 : index
    %16 = vector.load %arg7[%c0_7, %c0_8] : memref<5x512xf32, #tpu.memory_space<vmem>>, vector<5x512xf32>
    %17 = vector.broadcast %11 : vector<1x512xf32> to vector<5x512xf32>
    %18 = arith.mulf %17, %16 : vector<5x512xf32>
    %c0_9 = arith.constant 0 : index
    %c0_10 = arith.constant 0 : index
    %19 = vector.load %arg4[%c0_9, %c0_10] : memref<5x1024xbf16, #tpu.memory_space<vmem>>, vector<5x1024xbf16>
    %cst_11 = arith.constant dense<0.000000e+00> : vector<5x512xf32>
    %20 = tpu.matmul %19, %15, %cst_11 {dimension_numbers = #tpu.dot_dimension_numbers<[1], [0], [0], [1], [0, 0, 1, 1], [], []>} : vector<5x1024xbf16>, vector<1024x512xbf16>, vector<5x512xf32> -> vector<5x512xf32>
    %21 = arith.addf %18, %20 : vector<5x512xf32>
    %c0_12 = arith.constant 0 : index
    %c0_13 = arith.constant 0 : index
    %22 = vector.load %arg7[%c0_12, %c0_13] : memref<5x512xf32, #tpu.memory_space<vmem>>, vector<5x512xf32>
    tpu.vector_store %arg7[%c0_12, %c0_13], %21 {strides = array<i32>} : memref<5x512xf32, #tpu.memory_space<vmem>>, vector<5x512xf32>,
    %c0_14 = arith.constant 0 : index
    %c0_15 = arith.constant 0 : index
    %23 = vector.load %arg6[%c0_14, %c0_15] : memref<1x512xf32, #tpu.memory_space<vmem>>, vector<1x512xf32>
    tpu.vector_store %arg6[%c0_14, %c0_15], %9 {strides = array<i32>} : memref<1x512xf32, #tpu.memory_space<vmem>>, vector<1x512xf32>,
    %c1_i32 = arith.constant 1 : i32
    %24 = arith.cmpi eq, %arg1, %c1_i32 : i32
    %25 = arith.extui %24 : i1 to i32
    %c0_i32_16 = arith.constant 0 : i32
    %26 = arith.cmpi ne, %25, %c0_i32_16 : i32
    scf.if %26 {
      %c4 = arith.constant 4 : index
      %c0_17 = arith.constant 0 : index
      %27 = vector.load %arg7[%c4, %c0_17] : memref<5x512xf32, #tpu.memory_space<vmem>>, vector<1x512xf32>
      %28 = tpu.reciprocal %27 {approx = true} : vector<1x512xf32> -> vector<1x512xf32>
      %c0_18 = arith.constant 0 : index
      %c0_19 = arith.constant 0 : index
      %29 = vector.load %arg7[%c0_18, %c0_19] : memref<5x512xf32, #tpu.memory_space<vmem>>, vector<4x512xf32>
      %30 = vector.broadcast %28 : vector<1x512xf32> to vector<4x512xf32>
      %31 = arith.mulf %29, %30 : vector<4x512xf32>
      %32 = arith.truncf %31 : vector<4x512xf32> to vector<4x512xbf16>
      %c0_20 = arith.constant 0 : index
      %c0_21 = arith.constant 0 : index
      %33 = vector.load %arg5[%c0_20, %c0_21] : memref<4x512xbf16, #tpu.memory_space<vmem>>, vector<4x512xbf16>
      tpu.vector_store %arg5[%c0_20, %c0_21], %32 {strides = array<i32>} : memref<4x512xbf16, #tpu.memory_space<vmem>>, vector<4x512xbf16>,
    } else {
    }
    return
  }
  func.func @transform_0(%arg0: i32, %arg1: i32) -> (i32, i32) {
    %c0_i32 = arith.constant 0 : i32
    %c0_i32_0 = arith.constant 0 : i32
    return %c0_i32, %arg0 : i32, i32
  }
  func.func @transform_1(%arg0: i32, %arg1: i32) -> (i32, i32) {
    %c0_i32 = arith.constant 0 : i32
    %c0_i32_0 = arith.constant 0 : i32
    return %c0_i32, %arg1 : i32, i32
  }
  func.func @transform_2(%arg0: i32, %arg1: i32) -> (i32, i32) {
    %c0_i32 = arith.constant 0 : i32
    %c0_i32_0 = arith.constant 0 : i32
    return %c0_i32, %arg1 : i32, i32
  }
  func.func @transform_3(%arg0: i32, %arg1: i32) -> (i32, i32) {
    %c0_i32 = arith.constant 0 : i32
    %c0_i32_0 = arith.constant 0 : i32
    return %c0_i32, %arg0 : i32, i32
  }
}

module attributes {stable_mosaic.version = 11 : i64} {
  func.func @_out_proj_kernel(%arg0: i32, %arg1: i32, %arg2: memref<8x512xbf16, #tpu.memory_space<vmem>>, %arg3: memref<4x8xbf16, #tpu.memory_space<vmem>>, %arg4: memref<4x1xf32, #tpu.memory_space<vmem>>, %arg5: memref<1x4x512xf32, #tpu.memory_space<vmem>>) attributes {dimension_semantics = [#tpu.dimension_semantics<parallel>, #tpu.dimension_semantics<parallel>], iteration_bounds = array<i64: 2, 1>, scalar_prefetch = 0 : i64, scratch_operands = 0 : i64, tpu.core_type = #tpu.core_type<tc>, window_params = [{transform_indices = @transform_0, window_bounds = array<i64: 8, 512>}, {pipeline_mode = #tpu.pipeline_mode<synchronous>, transform_indices = @transform_1, window_bounds = array<i64: 4, 8>}, {pipeline_mode = #tpu.pipeline_mode<synchronous>, transform_indices = @transform_2, window_bounds = array<i64: 4, 1>}, {transform_indices = @transform_3, window_bounds = array<i64: 1, 4, 512>}]} {
    %c0 = arith.constant 0 : index
    %c0_0 = arith.constant 0 : index
    %0 = vector.load %arg3[%c0, %c0_0] : memref<4x8xbf16, #tpu.memory_space<vmem>>, vector<4x8xbf16>
    %c0_1 = arith.constant 0 : index
    %c0_2 = arith.constant 0 : index
    %1 = vector.load %arg2[%c0_1, %c0_2] : memref<8x512xbf16, #tpu.memory_space<vmem>>, vector<8x512xbf16>
    %cst = arith.constant dense<0.000000e+00> : vector<4x512xf32>
    %2 = tpu.matmul %0, %1, %cst {dimension_numbers = #tpu.dot_dimension_numbers<[1], [0], [0], [1], [0, 0, 1, 1], [], []>} : vector<4x8xbf16>, vector<8x512xbf16>, vector<4x512xf32> -> vector<4x512xf32>
    %c0_3 = arith.constant 0 : index
    %c0_4 = arith.constant 0 : index
    %3 = vector.load %arg4[%c0_3, %c0_4] : memref<4x1xf32, #tpu.memory_space<vmem>>, vector<4x1xf32>
    %4 = vector.broadcast %3 : vector<4x1xf32> to vector<4x512xf32>
    %5 = arith.addf %2, %4 : vector<4x512xf32>
    %c0_5 = arith.constant 0 : index
    %c0_6 = arith.constant 0 : index
    %c0_7 = arith.constant 0 : index
    %6 = vector.load %arg5[%c0_5, %c0_6, %c0_7] : memref<1x4x512xf32, #tpu.memory_space<vmem>>, vector<1x4x512xf32>
    %7 = vector.shape_cast %6 : vector<1x4x512xf32> to vector<4x512xf32>
    %8 = vector.shape_cast %5 : vector<4x512xf32> to vector<1x4x512xf32>
    tpu.vector_store %arg5[%c0_5, %c0_6, %c0_7], %8 {strides = array<i32>} : memref<1x4x512xf32, #tpu.memory_space<vmem>>, vector<1x4x512xf32>,
    return
  }
  func.func @transform_0(%arg0: i32, %arg1: i32) -> (i32, i32) {
    %c1_i32 = arith.constant 1 : i32
    %0 = arith.muli %arg0, %c1_i32 : i32
    %1 = arith.addi %0, %arg1 : i32
    %c0_i32 = arith.constant 0 : i32
    %c0_i32_0 = arith.constant 0 : i32
    return %c0_i32, %1 : i32, i32
  }
  func.func @transform_1(%arg0: i32, %arg1: i32) -> (i32, i32) {
    %c0_i32 = arith.constant 0 : i32
    %c0_i32_0 = arith.constant 0 : i32
    %c0_i32_1 = arith.constant 0 : i32
    return %c0_i32, %c0_i32_0 : i32, i32
  }
  func.func @transform_2(%arg0: i32, %arg1: i32) -> (i32, i32) {
    %c0_i32 = arith.constant 0 : i32
    %c0_i32_0 = arith.constant 0 : i32
    %c0_i32_1 = arith.constant 0 : i32
    return %c0_i32, %c0_i32_0 : i32, i32
  }
  func.func @transform_3(%arg0: i32, %arg1: i32) -> (i32, i32, i32) {
    %c0_i32 = arith.constant 0 : i32
    %c0_i32_0 = arith.constant 0 : i32
    return %arg0, %c0_i32, %arg1 : i32, i32, i32
  }
}

</mosaic_0001>

<llo_original>
// kernel: multi_head_attention_3d_forward.3
$region0: #{multi_head_attention_3d_forward.3}
  #allocation0 [shape = 'u32[]', space=smem, size = 0x4, offset = 0x4, fixed_abs, tag = 'smem constant byte address 0x4 - core index']
  #allocation1 [shape = 'u32[144,128]{1,0:T(1,128)}', space=vmem, size = 0x12000, scoped, tag = 'internal scratch']
  %s0 = inlined_call_operand.vmem [shape: f32[2,4,512], index: 0, kind: input, shape index: {}]
  %s1 = inlined_call_operand.vmem [shape: bf16[26,4], index: 1, kind: input, shape index: {}]
  %s2 = inlined_call_operand.vmem [shape: f32[26,1], index: 2, kind: input, shape index: {}]
  %s3 = inlined_call_operand.vmem [shape: bf16[8,1024], index: 3, kind: output, shape index: {0}]
  %s4 = inlined_call_operand.vmem [shape: bf16[8,1024], index: 4, kind: output, shape index: {1}]
  %s5 = inlined_call_operand.vmem [shape: bf16[10,1024], index: 5, kind: output, shape index: {2}]
  %6 = xla_tuple %s3, %s4, %s5
  %s7 = sld [smem:[#allocation0]]
  $region80: #{multi_head_attention_3d_forward.3} parent=0
    _
  %s9 = ssub.s32 1, %s7
  %s10 = scalar_select 0, %s9, %s7
  $region1: #{multi_head_attention_3d_forward.3} parent=0
    #allocation2 [shape = 'u8[32768]{0}', space=vmem, size = 0x8000, scoped, tag = 'output window, operand 2']
    loop: start=0, step=1, limit=4
    $region2: #{multi_head_attention_3d_forward.3} parent=1 // loop_pre_header
      _
    $region3: #{multi_head_attention_3d_forward.3} parent=1 // loop_header
      %s12 = sphi 0, %s16
      %p13 = scmp.ge.s32.totalorder %s12, 4
      %s19 = sphi 0, %s31
      %s20 = sphi 0, %s27
      %s21 = sphi 0, %s19
      %s22 = sphi 0, %s20
      %s23 = sphi 0, %s21
      %s24 = sphi 0, %s22
      %s36 = sphi 0, %s38
      %s39 = sphi 0, %s36
      %s40 = sphi 0, %s39
      %s56 = sphi 0, %s40
      %s60 = sphi 0, %s60
      %s62 = sphi 0, %s60
      %s63 = sphi 0, %s62
      %s77 = sphi 0, %s63
      %s81 = sphi 0, %s81
      %s83 = sphi 0, %s81
      %s84 = sphi 0, %s83
      %s98 = sphi 0, %s84
      %s106 = sphi 0, %s108
      %s109 = sphi 0, %s106
      %s110 = sphi 0, %s109
      %s126 = sphi 0, %s110
      %s134 = sphi 0, %s136
      %s137 = sphi 0, %s134
      %s138 = sphi 0, %s137
      %s154 = sphi 0, %s138
      %s162 = sphi 0, %s164
      %s165 = sphi 0, %s162
      %s166 = sphi 0, %s165
      %s182 = sphi 0, %s166
    $region4: #{multi_head_attention_3d_forward.3} parent=1 // loop_header_branch
      %15 = sbr.rel (%p13) target = $region8
    $region5: #{multi_head_attention_3d_forward.3} parent=1 // loop_body
      %s17 = ssub.s32 %s12, 1
      %s18 = ssub.s32 %s12, 2
      %s25 = sadd.s32 1, %s20
      %p26 = scmp.ge.s32.totalorder %s25, 1
      %s27 = scalar_select %p26, 0, %s25
      %s28 = sadd.s32 1, %s19
      %s29 = scalar_select %p26, %s28, %s19
      %p30 = scmp.ge.s32.totalorder %s29, 2
      %s31 = scalar_select %p30, 0, %s29
      %s32 = ssub.s32 %s19, %s31
      %s33 = ssub.s32 %s20, %s27
      %s34 = sor.u32 %s32, %s33
      %p35 = scmp.eq.s32.totalorder %s34, 0
      %s37 = sadd.s32 %s36, 1
      %s38 = scalar_select %p35, %s36, %s37
      %p41 = pneg %p35
      %p42 = scmp.eq.s32.totalorder %s12, 1
      %p43 = por %p41, %p42
      %p44 = scmp.ne.s32.totalorder %s36, %s39
      %p45 = scmp.eq.s32.totalorder %s12, 0
      %p46 = por %p44, %p45
      %p47 = scmp.ne.s32.totalorder %s36, %s39
      %p48 = scmp.eq.s32.totalorder %s17, 1
      %p49 = por %p47, %p48
      %p50 = scmp.ne.s32.totalorder %s39, %s40
      %p51 = scmp.eq.s32.totalorder %s17, 0
      %p52 = por %p50, %p51
      %p53 = scmp.ne.s32.totalorder %s39, %s40
      %p54 = scmp.eq.s32.totalorder %s18, 1
      %p55 = por %p53, %p54
      %p57 = scmp.ne.s32.totalorder %s40, %s56
      %p58 = scmp.eq.s32.totalorder %s18, 0
      %p59 = por %p57, %p58
      %s61 = sadd.s32 %s60, 1
      %p64 = scmp.eq.s32.totalorder %s12, 1
      %p65 = scmp.ne.s32.totalorder %s60, %s62
      %p66 = scmp.eq.s32.totalorder %s12, 0
      %p67 = por %p65, %p66
      %p68 = scmp.ne.s32.totalorder %s60, %s62
      %p69 = scmp.eq.s32.totalorder %s17, 1
      %p70 = por %p68, %p69
      %p71 = scmp.ne.s32.totalorder %s62, %s63
      %p72 = scmp.eq.s32.totalorder %s17, 0
      %p73 = por %p71, %p72
      %p74 = scmp.ne.s32.totalorder %s62, %s63
      %p75 = scmp.eq.s32.totalorder %s18, 1
      %p76 = por %p74, %p75
      %p78 = scmp.ne.s32.totalorder %s63, %s77
      %p79 = scmp.eq.s32.totalorder %s18, 0
      %p80 = por %p78, %p79
      %s82 = sadd.s32 %s81, 1
      %p85 = scmp.eq.s32.totalorder %s12, 1
      %p86 = scmp.ne.s32.totalorder %s81, %s83
      %p87 = scmp.eq.s32.totalorder %s12, 0
      %p88 = por %p86, %p87
      %p89 = scmp.ne.s32.totalorder %s81, %s83
      %p90 = scmp.eq.s32.totalorder %s17, 1
      %p91 = por %p89, %p90
      %p92 = scmp.ne.s32.totalorder %s83, %s84
      %p93 = scmp.eq.s32.totalorder %s17, 0
      %p94 = por %p92, %p93
      %p95 = scmp.ne.s32.totalorder %s83, %s84
      %p96 = scmp.eq.s32.totalorder %s18, 1
      %p97 = por %p95, %p96
      %p99 = scmp.ne.s32.totalorder %s84, %s98
      %p100 = scmp.eq.s32.totalorder %s18, 0
      %p101 = por %p99, %p100
      %s102 = sadd.s32 %s19, %s20
      %s103 = sadd.s32 %s31, %s27
      %s104 = ssub.s32 %s102, %s103
      %p105 = scmp.eq.s32.totalorder %s104, 0
      %s107 = sadd.s32 %s106, 1
      %s108 = scalar_select %p105, %s106, %s107
      %p111 = pneg %p105
      %p112 = scmp.eq.s32.totalorder %s12, 1
      %p113 = por %p111, %p112
      %p114 = scmp.ne.s32.totalorder %s106, %s109
      %p115 = scmp.eq.s32.totalorder %s12, 0
      %p116 = por %p114, %p115
      %p117 = scmp.ne.s32.totalorder %s106, %s109
      %p118 = scmp.eq.s32.totalorder %s17, 1
      %p119 = por %p117, %p118
      %p120 = scmp.ne.s32.totalorder %s109, %s110
      %p121 = scmp.eq.s32.totalorder %s17, 0
      %p122 = por %p120, %p121
      %p123 = scmp.ne.s32.totalorder %s109, %s110
      %p124 = scmp.eq.s32.totalorder %s18, 1
      %p125 = por %p123, %p124
      %p127 = scmp.ne.s32.totalorder %s110, %s126
      %p128 = scmp.eq.s32.totalorder %s18, 0
      %p129 = por %p127, %p128
      %s130 = sadd.s32 %s19, %s20
      %s131 = sadd.s32 %s31, %s27
      %s132 = ssub.s32 %s130, %s131
      %p133 = scmp.eq.s32.totalorder %s132, 0
      %s135 = sadd.s32 %s134, 1
      %s136 = scalar_select %p133, %s134, %s135
      %p139 = pneg %p133
      %p140 = scmp.eq.s32.totalorder %s12, 1
      %p141 = por %p139, %p140
      %p142 = scmp.ne.s32.totalorder %s134, %s137
      %p143 = scmp.eq.s32.totalorder %s12, 0
      %p144 = por %p142, %p143
      %p145 = scmp.ne.s32.totalorder %s134, %s137
      %p146 = scmp.eq.s32.totalorder %s17, 1
      %p147 = por %p145, %p146
      %p148 = scmp.ne.s32.totalorder %s137, %s138
      %p149 = scmp.eq.s32.totalorder %s17, 0
      %p150 = por %p148, %p149
      %p151 = scmp.ne.s32.totalorder %s137, %s138
      %p152 = scmp.eq.s32.totalorder %s18, 1
      %p153 = por %p151, %p152
      %p155 = scmp.ne.s32.totalorder %s138, %s154
      %p156 = scmp.eq.s32.totalorder %s18, 0
      %p157 = por %p155, %p156
      %s158 = sadd.s32 %s19, %s20
      %s159 = sadd.s32 %s31, %s27
      %s160 = ssub.s32 %s158, %s159
      %p161 = scmp.eq.s32.totalorder %s160, 0
      %s163 = sadd.s32 %s162, 1
      %s164 = scalar_select %p161, %s162, %s163
      %p167 = pneg %p161
      %p168 = scmp.eq.s32.totalorder %s12, 1
      %p169 = por %p167, %p168
      %p170 = scmp.ne.s32.totalorder %s162, %s165
      %p171 = scmp.eq.s32.totalorder %s12, 0
      %p172 = por %p170, %p171
      %p173 = scmp.ne.s32.totalorder %s162, %s165
      %p174 = scmp.eq.s32.totalorder %s17, 1
      %p175 = por %p173, %p174
      %p176 = scmp.ne.s32.totalorder %s165, %s166
      %p177 = scmp.eq.s32.totalorder %s17, 0
      %p178 = por %p176, %p177
      %p179 = scmp.ne.s32.totalorder %s165, %s166
      %p180 = scmp.eq.s32.totalorder %s18, 1
      %p181 = por %p179, %p180
      %p183 = scmp.ne.s32.totalorder %s166, %s182
      %p184 = scmp.eq.s32.totalorder %s18, 0
      %p185 = por %p183, %p184
      %p186 = scmp.le.s32.totalorder 1, %s12
      %p187 = scmp.lt.s32.totalorder %s12, 3
      %p188 = pnand %p186, %p187
      %p189 = pneg %p188
      // Predicated region
      $region9: #{multi_head_attention_3d_forward.3} parent=5 // pred_check
        _
      $region10: #{multi_head_attention_3d_forward.3} parent=5 // pred_check_branch
        %191 = sbr.rel (%p188) target = $region12
      $region11: #{multi_head_attention_3d_forward.3} parent=5 // pred_region
        %s192 = ssub.s32 %s12, 1
        // Predicated region
        $region13: #{multi_head_attention_3d_forward.3} parent=11 // pred_check
          %p193 = pneg %p73
        $region14: #{multi_head_attention_3d_forward.3} parent=11 // pred_check_branch
          %195 = sbr.rel (%p193) target = $region16
        $region15: #{multi_head_attention_3d_forward.3} parent=11 // pred_region
          _
        $region16: #{multi_head_attention_3d_forward.3} parent=11 // pred_fallthru
          _
        // Predicated region
        $region17: #{multi_head_attention_3d_forward.3} parent=11 // pred_check
          %p196 = pneg %p94
        $region18: #{multi_head_attention_3d_forward.3} parent=11 // pred_check_branch
          %198 = sbr.rel (%p196) target = $region20
        $region19: #{multi_head_attention_3d_forward.3} parent=11 // pred_region
          _
        $region20: #{multi_head_attention_3d_forward.3} parent=11 // pred_fallthru
          _
      $region12: #{multi_head_attention_3d_forward.3} parent=5 // pred_fallthru
        _
      %p199 = scmp.lt.s32.totalorder %s12, 2
      // Predicated region
      $region21: #{multi_head_attention_3d_forward.3} parent=5 // pred_check
        %p200 = pneg %p199
      $region22: #{multi_head_attention_3d_forward.3} parent=5 // pred_check_branch
        %202 = sbr.rel (%p200) target = $region24
      $region23: #{multi_head_attention_3d_forward.3} parent=5 // pred_region
        // Predicated region
        $region25: #{multi_head_attention_3d_forward.3} parent=23 // pred_check
          %p203 = pneg %p46
        $region26: #{multi_head_attention_3d_forward.3} parent=23 // pred_check_branch
          %205 = sbr.rel (%p203) target = $region28
        $region27: #{multi_head_attention_3d_forward.3} parent=23 // pred_region
          %s206 = smul.u32 4, %s20
          %p207 = scmp.lt.s32.totalorder %s19, 1
          %s208 = scalar_select %p207, %s19, 1
          %p209 = scmp.lt.s32.totalorder %s206, 3
          %s210 = scalar_select %p209, %s206, 3
          %s211 = smul.addr %s208, 4
          %s212 = sadd.s32 %s210, %s211
          %s213 = smul.addr %s212, 4
          %s214 = scalar_lea.vmem %s0, %s213
          %s215 = smul.u32 4, %s20
        $region28: #{multi_head_attention_3d_forward.3} parent=23 // pred_fallthru
          _
      $region24: #{multi_head_attention_3d_forward.3} parent=5 // pred_fallthru
        _
      %p216 = scmp.le.s32.totalorder 1, %s12
      %p217 = scmp.lt.s32.totalorder %s12, 3
      %p218 = pnand %p216, %p217
      %p219 = pneg %p218
      // Predicated region
      $region29: #{multi_head_attention_3d_forward.3} parent=5 // pred_check
        _
      $region30: #{multi_head_attention_3d_forward.3} parent=5 // pred_check_branch
        %221 = sbr.rel (%p218) target = $region32
      $region31: #{multi_head_attention_3d_forward.3} parent=5 // pred_region
        %s222 = ssub.s32 %s12, 1
        %s223 = smul.u32 4, %s22
        %p224 = scmp.lt.s32.totalorder %s21, 1
        %s225 = scalar_select %p224, %s21, 1
        %p226 = scmp.lt.s32.totalorder %s223, 3
        %s227 = scalar_select %p226, %s223, 3
        %s228 = smul.addr %s225, 4
        %s229 = sadd.s32 %s227, %s228
        %s230 = smul.addr %s229, 4
        %s231 = scalar_lea.vmem %s0, %s230
        %p232 = pneg %p52
        %p233 = pneg %p49
        %p234 = pneg %p73
        %p235 = pneg %p70
        %p236 = pneg %p94
        %p237 = pneg %p91
        %p238 = pneg %p122
        %p239 = pneg %p119
        %s240 = sadd.s32 %s21, %s22
        %s241 = smul.u32 4, %s240
        %p242 = scmp.lt.s32.totalorder %s241, 7
        %s243 = scalar_select %p242, %s241, 7
        %s244 = smul.addr %s243, 4
        %s245 = scalar_lea.vmem %s3, %s244
        %p246 = pneg %p150
        %p247 = pneg %p147
        %s248 = sadd.s32 %s21, %s22
        %s249 = smul.u32 4, %s248
        %p250 = scmp.lt.s32.totalorder %s249, 7
        %s251 = scalar_select %p250, %s249, 7
        %s252 = smul.addr %s251, 4
        %s253 = scalar_lea.vmem %s4, %s252
        %p254 = pneg %p178
        %p255 = pneg %p175
        %s256 = sand.u32 %s165, 1
        %s257 = sand.u32 %s165, 1
        %s258 = smul.addr %s257, 32
        %s259 = scalar_lea.vmem [#allocation2], %s258
        %s260 = smul.u32 4, %s22
        %p261 = scmp.lt.s32.totalorder %s21, 1
        %s262 = scalar_select %p261, %s21, 1
        %p263 = scmp.lt.s32.totalorder %s260, 3
        %s264 = scalar_select %p263, %s260, 3
        %s265 = smul.addr %s262, 4
        %s266 = sadd.s32 %s264, %s265
        %s267 = smul.addr %s266, 4
        %s268 = scalar_lea.vmem %s0, %s267
        %s269 = smul.u32 4, %s22
        %s270 = sadd.s32 %s21, %s22
        %s271 = smul.u32 4, %s270
        %p272 = scmp.lt.s32.totalorder %s271, 7
        %s273 = scalar_select %p272, %s271, 7
        %s274 = smul.addr %s273, 4
        %s275 = scalar_lea.vmem %s3, %s274
        %s276 = sadd.s32 %s21, %s22
        %s277 = smul.u32 4, %s276
        %s278 = sadd.s32 %s21, %s22
        %s279 = smul.u32 4, %s278
        %p280 = scmp.lt.s32.totalorder %s279, 7
        %s281 = scalar_select %p280, %s279, 7
        %s282 = smul.addr %s281, 4
        %s283 = scalar_lea.vmem %s4, %s282
        %s284 = sadd.s32 %s21, %s22
        %s285 = smul.u32 4, %s284
        %s286 = sadd.s32 %s21, %s22
        %s287 = smul.u32 4, %s286
        %v289 = vld [vmem:[%s268] sm:$0xff]
        %v290 = vld [vmem:[%s268 + $0x8] sm:$0xff]
        %v293 = vcombine.high %v289, %v289
        %v294 = vcombine.high %v290, %v290
        %v297 = vpack.c.bf16 %v289, %v289
        %v298 = vpack.c.bf16 %v293, %v293
        %v299 = vpack.c.bf16 %v290, %v290
        %v300 = vpack.c.bf16 %v294, %v294
        %v301 = vld [vmem:[%s1] sm:$0xf]
        %v302 = vld [vmem:[%s1 + $0x4] sm:$0xf]
        %v303 = vld [vmem:[%s1 + $0x8] sm:$0xf]
        %v304 = vld [vmem:[%s1 + $0xc] sm:$0x1]
        %v305 = vld [vmem:[%s2] sm:$0xff]
        %v306 = vld [vmem:[%s2 + $0x8] sm:$0xff]
        %v307 = vld [vmem:[%s2 + $0x10] sm:$0xff]
        %v308 = vld [vmem:[%s2 + $0x18] sm:$0x3]
        %310 = vset.pattern.permute.xlu0 0
        %311 = vperm.xlu0 %310, %v305
        %v312 = vpop.permute.xlu0 %311
        %315 = vset.pattern.permute.xlu0 0
        %316 = vperm.xlu0 %315, %v306
        %v317 = vpop.permute.xlu0 %316
        %320 = vset.pattern.permute.xlu0 0
        %321 = vperm.xlu0 %320, %v307
        %v322 = vpop.permute.xlu0 %321
        %325 = vset.pattern.permute.xlu0 0
        %326 = vperm.xlu0 %325, %v308
        %v327 = vpop.permute.xlu0 %326
        %v333 = vunpack.c.l.b16 %v301
        %v334 = vunpack.c.l.b16 %v302
        %v335 = vunpack.c.l.b16 %v303
        %v336 = vunpack.c.l.b16 %v304
        %v337 = vpack.c.b16 %v334, %v333
        %v338 = vpack.c.b16 %v336, %v335
        %vm339 = vcmask 31744
        %v341 = vsel %vm339, %v337, 0
        %v344 = vsel %vm339, %v338, 0
        %vm346 = vcmask 1041408
        %v348 = vsel %vm346, %v297, 0
        %v351 = vsel %vm346, %v298, 0
        %v354 = vsel %vm346, %v299, 0
        %v357 = vsel %vm346, %v300, 0
        %359 = vmatprep.subr.bf16.mxu0 %v351
        %360 = vmatpush1.bf16.msra.mxu0 %v348
        %361 = vmatprep.subr.bf16.mxu0 0
        %362 = vmatpush1.bf16.msra.mxu0 0
        %363 = vmatprep.subr.bf16.mxu0 0
        %364 = vmatpush1.bf16.msra.mxu0 0
        %365 = vmatprep.subr.bf16.mxu0 0
        %366 = vmatpush1.bf16.msra.mxu0 0
        %367 = vmatprep.subr.bf16.mxu0 0
        %368 = vmatpush1.bf16.msra.mxu0 0
        %369 = vmatprep.subr.bf16.mxu0 0
        %370 = vmatpush1.bf16.msra.mxu0 0
        %371 = vmatprep.subr.bf16.mxu0 0
        %372 = vmatpush1.bf16.msra.mxu0 0
        %373 = vmatprep.subr.bf16.mxu0 0
        %374 = vmatpush1.bf16.msra.mxu0 0
        %375 = vmatprep.subr.bf16.mxu0 0
        %376 = vmatpush1.bf16.msra.mxu0 0
        %377 = vmatprep.subr.bf16.mxu0 0
        %378 = vmatpush1.bf16.msra.mxu0 0
        %379 = vmatprep.subr.bf16.mxu0 0
        %380 = vmatpush1.bf16.msra.mxu0 0
        %381 = vmatprep.subr.bf16.mxu0 0
        %382 = vmatpush1.bf16.msra.mxu0 0
        %383 = vmatprep.subr.bf16.mxu0 0
        %384 = vmatpush1.bf16.msra.mxu0 0
        %385 = vmatprep.subr.bf16.mxu0 0
        %386 = vmatpush1.bf16.msra.mxu0 0
        %387 = vmatprep.subr.bf16.mxu0 0
        %388 = vmatpush1.bf16.msra.mxu0 0
        %389 = vmatprep.subr.bf16.mxu0 0
        %390 = vmatpush1.bf16.msra.mxu0 0
        %391 = vmatprep.mubr.bf16.mxu0 0
        %392 = vmatmul.mubr.bf16.gmra.mrb[0].mxu0 %v341
        %v393 = vpop.f32.mrb[0].mxu0
        %v394 = vadd.f32 %v312, %v393
        %v395 = vpop.f32.mrb[0].mxu0
        %v396 = vadd.f32 %v312, %v395
        %v397 = vpop.f32.mrb[0].mxu0
        %v398 = vadd.f32 %v317, %v397
        %v399 = vpop.f32.mrb[0].mxu0
        %v400 = vadd.f32 %v317, %v399
        %401 = vmatprep.mubr.bf16.mxu0 0
        %402 = vmatmul.mubr.bf16.gmra.mrb[0].mxu0 %v344
        %v403 = vpop.f32.mrb[0].mxu0
        %v404 = vadd.f32 %v322, %v403
        %v405 = vpop.f32.mrb[0].mxu0
        %v406 = vadd.f32 %v322, %v405
        %v407 = vpop.f32.mrb[0].mxu0
        %v408 = vadd.f32 %v327, %v407
        %v409 = vpop.f32.mrb[0].mxu0
        %v410 = vadd.f32 %v327, %v409
        %411 = vdwg.mxu0
        %412 = vmatprep.subr.bf16.mxu0 %v357
        %413 = vmatpush1.bf16.msra.mxu0 %v354
        %414 = vmatprep.subr.bf16.mxu0 0
        %415 = vmatpush1.bf16.msra.mxu0 0
        %416 = vmatprep.subr.bf16.mxu0 0
        %417 = vmatpush1.bf16.msra.mxu0 0
        %418 = vmatprep.subr.bf16.mxu0 0
        %419 = vmatpush1.bf16.msra.mxu0 0
        %420 = vmatprep.subr.bf16.mxu0 0
        %421 = vmatpush1.bf16.msra.mxu0 0
        %422 = vmatprep.subr.bf16.mxu0 0
        %423 = vmatpush1.bf16.msra.mxu0 0
        %424 = vmatprep.subr.bf16.mxu0 0
        %425 = vmatpush1.bf16.msra.mxu0 0
        %426 = vmatprep.subr.bf16.mxu0 0
        %427 = vmatpush1.bf16.msra.mxu0 0
        %428 = vmatprep.subr.bf16.mxu0 0
        %429 = vmatpush1.bf16.msra.mxu0 0
        %430 = vmatprep.subr.bf16.mxu0 0
        %431 = vmatpush1.bf16.msra.mxu0 0
        %432 = vmatprep.subr.bf16.mxu0 0
        %433 = vmatpush1.bf16.msra.mxu0 0
        %434 = vmatprep.subr.bf16.mxu0 0
        %435 = vmatpush1.bf16.msra.mxu0 0
        %436 = vmatprep.subr.bf16.mxu0 0
        %437 = vmatpush1.bf16.msra.mxu0 0
        %438 = vmatprep.subr.bf16.mxu0 0
        %439 = vmatpush1.bf16.msra.mxu0 0
        %440 = vmatprep.subr.bf16.mxu0 0
        %441 = vmatpush1.bf16.msra.mxu0 0
        %442 = vmatprep.subr.bf16.mxu0 0
        %443 = vmatpush1.bf16.msra.mxu0 0
        %444 = vmatprep.mubr.bf16.mxu0 0
        %445 = vmatmul.mubr.bf16.gmra.mrb[0].mxu0 %v341
        %v446 = vpop.f32.mrb[0].mxu0
        %v447 = vadd.f32 %v312, %v446
        %v448 = vpop.f32.mrb[0].mxu0
        %v449 = vadd.f32 %v312, %v448
        %v450 = vpop.f32.mrb[0].mxu0
        %v451 = vadd.f32 %v317, %v450
        %v452 = vpop.f32.mrb[0].mxu0
        %v453 = vadd.f32 %v317, %v452
        %454 = vmatprep.mubr.bf16.mxu0 0
        %455 = vmatmul.mubr.bf16.gmra.mrb[0].mxu0 %v344
        %v456 = vpop.f32.mrb[0].mxu0
        %v457 = vadd.f32 %v322, %v456
        %v458 = vpop.f32.mrb[0].mxu0
        %v459 = vadd.f32 %v322, %v458
        %v460 = vpop.f32.mrb[0].mxu0
        %v461 = vadd.f32 %v327, %v460
        %v462 = vpop.f32.mrb[0].mxu0
        %v463 = vadd.f32 %v327, %v462
        %464 = vdwg.mxu0
        %v465 = vpack.c.bf16 %v394, %v394
        %v466 = vpack.c.bf16 %v396, %v396
        %v467 = vpack.c.bf16 %v447, %v447
        %v468 = vpack.c.bf16 %v449, %v449
        %v473 = vunpack.c.l.b16 %v465
        %v474 = vunpack.c.l.b16 %v466
        %v475 = vunpack.c.l.b16 %v467
        %v476 = vunpack.c.l.b16 %v468
        %v477 = vpack.c.b16 %v474, %v473
        %v478 = vpack.c.b16 %v476, %v475
        %481 = vst [vmem:[%s275] sm:$0xff] %v477
        %482 = vst [vmem:[%s275 + $0x8] sm:$0xff] %v478
        %v483 = vpack.c.bf16 %v398, %v398
        %v484 = vpack.c.bf16 %v400, %v400
        %v485 = vpack.c.bf16 %v451, %v451
        %v486 = vpack.c.bf16 %v453, %v453
        %v491 = vunpack.c.l.b16 %v483
        %v492 = vunpack.c.l.b16 %v484
        %v493 = vunpack.c.l.b16 %v485
        %v494 = vunpack.c.l.b16 %v486
        %v495 = vpack.c.b16 %v492, %v491
        %v496 = vpack.c.b16 %v494, %v493
        %499 = vst [vmem:[%s283] sm:$0xff] %v495
        %500 = vst [vmem:[%s283 + $0x8] sm:$0xff] %v496
        %v501 = vpack.c.bf16 %v408, %v404
        %v502 = vpack.c.bf16 %v410, %v406
        %v503 = vpack.c.bf16 %v461, %v457
        %v504 = vpack.c.bf16 %v463, %v459
        %v509 = vunpack.c.l.b16 %v501
        %v510 = vunpack.c.l.b16 %v502
        %v511 = vunpack.c.l.b16 %v503
        %v512 = vunpack.c.l.b16 %v504
        %v513 = vunpack.c.h.b16 %v501
        %v514 = vunpack.c.h.b16 %v502
        %v515 = vunpack.c.h.b16 %v503
        %v516 = vunpack.c.h.b16 %v504
        %v517 = vpack.c.b16 %v510, %v509
        %v518 = vpack.c.b16 %v512, %v511
        %v519 = vpack.c.b16 %v514, %v513
        %v520 = vpack.c.b16 %v516, %v515
        %525 = vst [vmem:[%s259] sm:$0xff] %v517
        %526 = vst [vmem:[%s259 + $0x8] sm:$0xff] %v518
        %527 = vst [vmem:[%s259 + $0x10] sm:$0x11] %v519
        %528 = vst [vmem:[%s259 + $0x18] sm:$0x11] %v520
        %s529 = sadd.s32 %s21, %s22
        %s530 = smul.u32 4, %s529
        %p531 = scmp.lt.s32.totalorder %s530, 7
        %s532 = scalar_select %p531, %s530, 7
        %s533 = smul.addr %s532, 4
        %s534 = scalar_lea.vmem %s3, %s533
        %s535 = sadd.s32 %s21, %s22
        %s536 = smul.u32 4, %s535
        %p537 = scmp.lt.s32.totalorder %s536, 7
        %s538 = scalar_select %p537, %s536, 7
        %s539 = smul.addr %s538, 4
        %s540 = scalar_lea.vmem %s4, %s539
        %s541 = sand.u32 %s165, 1
        %s542 = sand.u32 %s165, 1
        %s543 = smul.addr %s542, 32
        %s544 = scalar_lea.vmem [#allocation2], %s543
        // Predicated region
        $region33: #{multi_head_attention_3d_forward.3} parent=31 // pred_check
          %p545 = pneg %p119
        $region34: #{multi_head_attention_3d_forward.3} parent=31 // pred_check_branch
          %547 = sbr.rel (%p545) target = $region36
        $region35: #{multi_head_attention_3d_forward.3} parent=31 // pred_region
          %s548 = sadd.s32 %s21, %s22
          %s549 = smul.u32 4, %s548
        $region36: #{multi_head_attention_3d_forward.3} parent=31 // pred_fallthru
          _
        // Predicated region
        $region37: #{multi_head_attention_3d_forward.3} parent=31 // pred_check
          %p550 = pneg %p147
        $region38: #{multi_head_attention_3d_forward.3} parent=31 // pred_check_branch
          %552 = sbr.rel (%p550) target = $region40
        $region39: #{multi_head_attention_3d_forward.3} parent=31 // pred_region
          %s553 = sadd.s32 %s21, %s22
          %s554 = smul.u32 4, %s553
        $region40: #{multi_head_attention_3d_forward.3} parent=31 // pred_fallthru
          _
        // Predicated region
        $region41: #{multi_head_attention_3d_forward.3} parent=31 // pred_check
          %p555 = pneg %p175
        $region42: #{multi_head_attention_3d_forward.3} parent=31 // pred_check_branch
          %557 = sbr.rel (%p555) target = $region44
        $region43: #{multi_head_attention_3d_forward.3} parent=31 // pred_region
          %s558 = sadd.s32 %s21, %s22
          %s559 = smul.u32 4, %s558
          %s560 = smul.addr %s559, 4
          %s561 = scalar_lea.vmem %s5, %s560
          // Predicated region
          $region45: #{multi_head_attention_3d_forward.3} parent=43 // pred_check
            _
          $region46: #{multi_head_attention_3d_forward.3} parent=43 // pred_check_branch
            %563 = sbr.rel (0) target = $region48
          $region47: #{multi_head_attention_3d_forward.3} parent=43 // pred_region
            // Predicated region
            $region49: #{multi_head_attention_3d_forward.3} parent=47 // pred_check
              _
            $region50: #{multi_head_attention_3d_forward.3} parent=47 // pred_check_branch
              %565 = sbr.rel (0) target = $region52
            $region51: #{multi_head_attention_3d_forward.3} parent=47 // pred_region
              loop: start=0, step=1, limit=1
              $region53: #{multi_head_attention_3d_forward.3} parent=51 // loop_pre_header
                _
              $region54: #{multi_head_attention_3d_forward.3} parent=51 // loop_header
                %s567 = sphi 0, %s571
                %p568 = scmp.ge.s32.totalorder %s567, 1
                %s572 = sphi %s544, %s544
                %s573 = sphi %s561, %s561
              $region55: #{multi_head_attention_3d_forward.3} parent=51 // loop_header_branch
                %570 = sbr.rel (%p568) target = $region59
              $region56: #{multi_head_attention_3d_forward.3} parent=51 // loop_body
                %v574 = vld [vmem:[%s572] sm:$0xff]
                %575 = vst [vmem:[%s573] sm:$0xff] %v574
                %v576 = vld [vmem:[%s572 + $0x8] sm:$0xff]
                %577 = vst [vmem:[%s573 + $0x8] sm:$0xff] %v576
                %v578 = vld [vmem:[%s572 + $0x10] sm:$0xff]
                %579 = vst [vmem:[%s573 + $0x20] sm:$0xff] %v578
                %v580 = vld [vmem:[%s572 + $0x18] sm:$0xff]
                %581 = vst [vmem:[%s573 + $0x28] sm:$0xff] %v580
              $region57: #{multi_head_attention_3d_forward.3} parent=51 // loop_footer
                %s571 = sadd.s32 1, %s567
              $region58: #{multi_head_attention_3d_forward.3} parent=51 // loop_footer_branch
                %566 = sbr.rel target = $region54
              $region59: #{multi_head_attention_3d_forward.3} parent=51 // loop_exit
                _
            $region52: #{multi_head_attention_3d_forward.3} parent=47 // pred_fallthru
              _
            // Predicated region
            $region60: #{multi_head_attention_3d_forward.3} parent=47 // pred_check
              _
            $region61: #{multi_head_attention_3d_forward.3} parent=47 // pred_check_branch
              %583 = sbr.rel target = $region63
            $region62: #{multi_head_attention_3d_forward.3} parent=47 // pred_region
              _
            $region63: #{multi_head_attention_3d_forward.3} parent=47 // pred_fallthru
              _
          $region48: #{multi_head_attention_3d_forward.3} parent=43 // pred_fallthru
            _
          %584 = vnop
        $region44: #{multi_head_attention_3d_forward.3} parent=31 // pred_fallthru
          _
      $region32: #{multi_head_attention_3d_forward.3} parent=5 // pred_fallthru
        _
      %p585 = scmp.le.s32.totalorder 2, %s12
      // Predicated region
      $region64: #{multi_head_attention_3d_forward.3} parent=5 // pred_check
        %p586 = pneg %p585
      $region65: #{multi_head_attention_3d_forward.3} parent=5 // pred_check_branch
        %588 = sbr.rel (%p586) target = $region67
      $region66: #{multi_head_attention_3d_forward.3} parent=5 // pred_region
        %s589 = ssub.s32 %s12, 2
        // Predicated region
        $region68: #{multi_head_attention_3d_forward.3} parent=66 // pred_check
          %p590 = pneg %p125
        $region69: #{multi_head_attention_3d_forward.3} parent=66 // pred_check_branch
          %592 = sbr.rel (%p590) target = $region71
        $region70: #{multi_head_attention_3d_forward.3} parent=66 // pred_region
          %s593 = sadd.s32 %s23, %s24
          %s594 = smul.u32 4, %s593
          %p595 = scmp.lt.s32.totalorder %s594, 7
          %s596 = scalar_select %p595, %s594, 7
          %s597 = smul.addr %s596, 4
          %s598 = scalar_lea.vmem %s3, %s597
        $region71: #{multi_head_attention_3d_forward.3} parent=66 // pred_fallthru
          _
        // Predicated region
        $region72: #{multi_head_attention_3d_forward.3} parent=66 // pred_check
          %p599 = pneg %p153
        $region73: #{multi_head_attention_3d_forward.3} parent=66 // pred_check_branch
          %601 = sbr.rel (%p599) target = $region75
        $region74: #{multi_head_attention_3d_forward.3} parent=66 // pred_region
          %s602 = sadd.s32 %s23, %s24
          %s603 = smul.u32 4, %s602
          %p604 = scmp.lt.s32.totalorder %s603, 7
          %s605 = scalar_select %p604, %s603, 7
          %s606 = smul.addr %s605, 4
          %s607 = scalar_lea.vmem %s4, %s606
        $region75: #{multi_head_attention_3d_forward.3} parent=66 // pred_fallthru
          _
        // Predicated region
        $region76: #{multi_head_attention_3d_forward.3} parent=66 // pred_check
          %p608 = pneg %p181
        $region77: #{multi_head_attention_3d_forward.3} parent=66 // pred_check_branch
          %610 = sbr.rel (%p608) target = $region79
        $region78: #{multi_head_attention_3d_forward.3} parent=66 // pred_region
          %s611 = sand.u32 %s166, 1
          %s612 = sand.u32 %s166, 1
          %s613 = smul.addr %s612, 32
          %s614 = scalar_lea.vmem [#allocation2], %s613
        $region79: #{multi_head_attention_3d_forward.3} parent=66 // pred_fallthru
          _
      $region67: #{multi_head_attention_3d_forward.3} parent=5 // pred_fallthru
        _
    $region6: #{multi_head_attention_3d_forward.3} parent=1 // loop_footer
      %s16 = sadd.s32 1, %s12
    $region7: #{multi_head_attention_3d_forward.3} parent=1 // loop_footer_branch
      %11 = sbr.rel target = $region3
    $region8: #{multi_head_attention_3d_forward.3} parent=1 // loop_exit
      _

// kernel: multi_head_attention_3d_forward.5
$region0: #{multi_head_attention_3d_forward.5}
  #allocation0 [shape = 'u32[]', space=smem, size = 0x4, offset = 0x4, fixed_abs, tag = 'smem constant byte address 0x4 - core index']
  #allocation1 [shape = 'u32[144,128]{1,0:T(1,128)}', space=vmem, size = 0x12000, scoped, tag = 'internal scratch']
  %s0 = inlined_call_operand.vmem [shape: bf16[8,1024], index: 0, kind: input, shape index: {}]
  %s1 = inlined_call_operand.vmem [shape: bf16[4,8], index: 1, kind: input, shape index: {}]
  %s2 = inlined_call_operand.vmem [shape: f32[4,1], index: 2, kind: input, shape index: {}]
  %s3 = inlined_call_operand.vmem [shape: f32[2,4,512], index: 3, kind: output, shape index: {}]
  %s4 = sld [smem:[#allocation0]]
  $region45: #{multi_head_attention_3d_forward.5} parent=0
    _
  %s6 = ssub.s32 1, %s4
  %s7 = scalar_select 0, %s6, %s4
  loop: start=0, step=1, limit=4
  $region2: #{multi_head_attention_3d_forward.5} parent=0 // loop_pre_header
    _
  $region3: #{multi_head_attention_3d_forward.5} parent=0 // loop_header
    %s9 = sphi 0, %s13
    %p10 = scmp.ge.s32.totalorder %s9, 4
    %s16 = sphi 0, %s28
    %s17 = sphi 0, %s24
    %s18 = sphi 0, %s16
    %s19 = sphi 0, %s17
    %s20 = sphi 0, %s18
    %s21 = sphi 0, %s19
    %s33 = sphi 0, %s35
    %s36 = sphi 0, %s33
    %s37 = sphi 0, %s36
    %s53 = sphi 0, %s37
    %s57 = sphi 0, %s57
    %s59 = sphi 0, %s57
    %s60 = sphi 0, %s59
    %s74 = sphi 0, %s60
    %s78 = sphi 0, %s78
    %s80 = sphi 0, %s78
    %s81 = sphi 0, %s80
    %s95 = sphi 0, %s81
    %s103 = sphi 0, %s105
    %s106 = sphi 0, %s103
    %s107 = sphi 0, %s106
    %s123 = sphi 0, %s107
  $region4: #{multi_head_attention_3d_forward.5} parent=0 // loop_header_branch
    %12 = sbr.rel (%p10) target = $region8
  $region5: #{multi_head_attention_3d_forward.5} parent=0 // loop_body
    %s14 = ssub.s32 %s9, 1
    %s15 = ssub.s32 %s9, 2
    %s22 = sadd.s32 1, %s17
    %p23 = scmp.ge.s32.totalorder %s22, 1
    %s24 = scalar_select %p23, 0, %s22
    %s25 = sadd.s32 1, %s16
    %s26 = scalar_select %p23, %s25, %s16
    %p27 = scmp.ge.s32.totalorder %s26, 2
    %s28 = scalar_select %p27, 0, %s26
    %s29 = sadd.s32 %s16, %s17
    %s30 = sadd.s32 %s28, %s24
    %s31 = ssub.s32 %s29, %s30
    %p32 = scmp.eq.s32.totalorder %s31, 0
    %s34 = sadd.s32 %s33, 1
    %s35 = scalar_select %p32, %s33, %s34
    %p38 = pneg %p32
    %p39 = scmp.eq.s32.totalorder %s9, 1
    %p40 = por %p38, %p39
    %p41 = scmp.ne.s32.totalorder %s33, %s36
    %p42 = scmp.eq.s32.totalorder %s9, 0
    %p43 = por %p41, %p42
    %p44 = scmp.ne.s32.totalorder %s33, %s36
    %p45 = scmp.eq.s32.totalorder %s14, 1
    %p46 = por %p44, %p45
    %p47 = scmp.ne.s32.totalorder %s36, %s37
    %p48 = scmp.eq.s32.totalorder %s14, 0
    %p49 = por %p47, %p48
    %p50 = scmp.ne.s32.totalorder %s36, %s37
    %p51 = scmp.eq.s32.totalorder %s15, 1
    %p52 = por %p50, %p51
    %p54 = scmp.ne.s32.totalorder %s37, %s53
    %p55 = scmp.eq.s32.totalorder %s15, 0
    %p56 = por %p54, %p55
    %s58 = sadd.s32 %s57, 1
    %p61 = scmp.eq.s32.totalorder %s9, 1
    %p62 = scmp.ne.s32.totalorder %s57, %s59
    %p63 = scmp.eq.s32.totalorder %s9, 0
    %p64 = por %p62, %p63
    %p65 = scmp.ne.s32.totalorder %s57, %s59
    %p66 = scmp.eq.s32.totalorder %s14, 1
    %p67 = por %p65, %p66
    %p68 = scmp.ne.s32.totalorder %s59, %s60
    %p69 = scmp.eq.s32.totalorder %s14, 0
    %p70 = por %p68, %p69
    %p71 = scmp.ne.s32.totalorder %s59, %s60
    %p72 = scmp.eq.s32.totalorder %s15, 1
    %p73 = por %p71, %p72
    %p75 = scmp.ne.s32.totalorder %s60, %s74
    %p76 = scmp.eq.s32.totalorder %s15, 0
    %p77 = por %p75, %p76
    %s79 = sadd.s32 %s78, 1
    %p82 = scmp.eq.s32.totalorder %s9, 1
    %p83 = scmp.ne.s32.totalorder %s78, %s80
    %p84 = scmp.eq.s32.totalorder %s9, 0
    %p85 = por %p83, %p84
    %p86 = scmp.ne.s32.totalorder %s78, %s80
    %p87 = scmp.eq.s32.totalorder %s14, 1
    %p88 = por %p86, %p87
    %p89 = scmp.ne.s32.totalorder %s80, %s81
    %p90 = scmp.eq.s32.totalorder %s14, 0
    %p91 = por %p89, %p90
    %p92 = scmp.ne.s32.totalorder %s80, %s81
    %p93 = scmp.eq.s32.totalorder %s15, 1
    %p94 = por %p92, %p93
    %p96 = scmp.ne.s32.totalorder %s81, %s95
    %p97 = scmp.eq.s32.totalorder %s15, 0
    %p98 = por %p96, %p97
    %s99 = ssub.s32 %s16, %s28
    %s100 = ssub.s32 %s17, %s24
    %s101 = sor.u32 %s99, %s100
    %p102 = scmp.eq.s32.totalorder %s101, 0
    %s104 = sadd.s32 %s103, 1
    %s105 = scalar_select %p102, %s103, %s104
    %p108 = pneg %p102
    %p109 = scmp.eq.s32.totalorder %s9, 1
    %p110 = por %p108, %p109
    %p111 = scmp.ne.s32.totalorder %s103, %s106
    %p112 = scmp.eq.s32.totalorder %s9, 0
    %p113 = por %p111, %p112
    %p114 = scmp.ne.s32.totalorder %s103, %s106
    %p115 = scmp.eq.s32.totalorder %s14, 1
    %p116 = por %p114, %p115
    %p117 = scmp.ne.s32.totalorder %s106, %s107
    %p118 = scmp.eq.s32.totalorder %s14, 0
    %p119 = por %p117, %p118
    %p120 = scmp.ne.s32.totalorder %s106, %s107
    %p121 = scmp.eq.s32.totalorder %s15, 1
    %p122 = por %p120, %p121
    %p124 = scmp.ne.s32.totalorder %s107, %s123
    %p125 = scmp.eq.s32.totalorder %s15, 0
    %p126 = por %p124, %p125
    %p127 = scmp.le.s32.totalorder 1, %s9
    %p128 = scmp.lt.s32.totalorder %s9, 3
    %p129 = pnand %p127, %p128
    %p130 = pneg %p129
    // Predicated region
    $region9: #{multi_head_attention_3d_forward.5} parent=5 // pred_check
      _
    $region10: #{multi_head_attention_3d_forward.5} parent=5 // pred_check_branch
      %132 = sbr.rel (%p129) target = $region12
    $region11: #{multi_head_attention_3d_forward.5} parent=5 // pred_region
      %s133 = ssub.s32 %s9, 1
      // Predicated region
      $region13: #{multi_head_attention_3d_forward.5} parent=11 // pred_check
        %p134 = pneg %p70
      $region14: #{multi_head_attention_3d_forward.5} parent=11 // pred_check_branch
        %136 = sbr.rel (%p134) target = $region16
      $region15: #{multi_head_attention_3d_forward.5} parent=11 // pred_region
        _
      $region16: #{multi_head_attention_3d_forward.5} parent=11 // pred_fallthru
        _
      // Predicated region
      $region17: #{multi_head_attention_3d_forward.5} parent=11 // pred_check
        %p137 = pneg %p91
      $region18: #{multi_head_attention_3d_forward.5} parent=11 // pred_check_branch
        %139 = sbr.rel (%p137) target = $region20
      $region19: #{multi_head_attention_3d_forward.5} parent=11 // pred_region
        _
      $region20: #{multi_head_attention_3d_forward.5} parent=11 // pred_fallthru
        _
    $region12: #{multi_head_attention_3d_forward.5} parent=5 // pred_fallthru
      _
    %p140 = scmp.lt.s32.totalorder %s9, 2
    // Predicated region
    $region21: #{multi_head_attention_3d_forward.5} parent=5 // pred_check
      %p141 = pneg %p140
    $region22: #{multi_head_attention_3d_forward.5} parent=5 // pred_check_branch
      %143 = sbr.rel (%p141) target = $region24
    $region23: #{multi_head_attention_3d_forward.5} parent=5 // pred_region
      // Predicated region
      $region25: #{multi_head_attention_3d_forward.5} parent=23 // pred_check
        %p144 = pneg %p43
      $region26: #{multi_head_attention_3d_forward.5} parent=23 // pred_check_branch
        %146 = sbr.rel (%p144) target = $region28
      $region27: #{multi_head_attention_3d_forward.5} parent=23 // pred_region
        %s147 = sadd.s32 %s16, %s17
        %s148 = smul.u32 4, %s147
        %p149 = scmp.lt.s32.totalorder %s148, 7
        %s150 = scalar_select %p149, %s148, 7
        %s151 = smul.addr %s150, 4
        %s152 = scalar_lea.vmem %s0, %s151
        %s153 = sadd.s32 %s16, %s17
        %s154 = smul.u32 4, %s153
      $region28: #{multi_head_attention_3d_forward.5} parent=23 // pred_fallthru
        _
    $region24: #{multi_head_attention_3d_forward.5} parent=5 // pred_fallthru
      _
    %p155 = scmp.le.s32.totalorder 1, %s9
    %p156 = scmp.lt.s32.totalorder %s9, 3
    %p157 = pnand %p155, %p156
    %p158 = pneg %p157
    // Predicated region
    $region29: #{multi_head_attention_3d_forward.5} parent=5 // pred_check
      _
    $region30: #{multi_head_attention_3d_forward.5} parent=5 // pred_check_branch
      %160 = sbr.rel (%p157) target = $region32
    $region31: #{multi_head_attention_3d_forward.5} parent=5 // pred_region
      %s161 = ssub.s32 %s9, 1
      %s162 = sadd.s32 %s18, %s19
      %s163 = smul.u32 4, %s162
      %p164 = scmp.lt.s32.totalorder %s163, 7
      %s165 = scalar_select %p164, %s163, 7
      %s166 = smul.addr %s165, 4
      %s167 = scalar_lea.vmem %s0, %s166
      %p168 = pneg %p49
      %p169 = pneg %p46
      %p170 = pneg %p70
      %p171 = pneg %p67
      %p172 = pneg %p91
      %p173 = pneg %p88
      %p174 = pneg %p119
      %p175 = pneg %p116
      %s176 = smul.u32 4, %s19
      %p177 = scmp.lt.s32.totalorder %s18, 1
      %s178 = scalar_select %p177, %s18, 1
      %p179 = scmp.lt.s32.totalorder %s176, 3
      %s180 = scalar_select %p179, %s176, 3
      %s181 = smul.addr %s178, 4
      %s182 = sadd.s32 %s180, %s181
      %s183 = smul.addr %s182, 4
      %s184 = scalar_lea.vmem %s3, %s183
      %s185 = sadd.s32 %s18, %s19
      %s186 = smul.u32 4, %s185
      %p187 = scmp.lt.s32.totalorder %s186, 7
      %s188 = scalar_select %p187, %s186, 7
      %s189 = smul.addr %s188, 4
      %s190 = scalar_lea.vmem %s0, %s189
      %s191 = sadd.s32 %s18, %s19
      %s192 = smul.u32 4, %s191
      %s193 = smul.u32 4, %s19
      %p194 = scmp.lt.s32.totalorder %s18, 1
      %s195 = scalar_select %p194, %s18, 1
      %p196 = scmp.lt.s32.totalorder %s193, 3
      %s197 = scalar_select %p196, %s193, 3
      %s198 = smul.addr %s195, 4
      %s199 = sadd.s32 %s197, %s198
      %s200 = smul.addr %s199, 4
      %s201 = scalar_lea.vmem %s3, %s200
      %s202 = smul.u32 4, %s19
      %v204 = vld [vmem:[%s1] sm:$0x3]
      %v205 = vld [vmem:[%s190] sm:$0xff]
      %v206 = vld [vmem:[%s190 + $0x8] sm:$0xff]
      %v207 = vld [vmem:[%s2] sm:$0xf]
      %209 = vset.pattern.permute.xlu0 0
      %210 = vperm.xlu0 %209, %v207
      %v211 = vpop.permute.xlu0 %210
      %v215 = vunpack.c.l.b16 %v205
      %v216 = vunpack.c.h.b16 %v205
      %v217 = vunpack.c.l.b16 %v206
      %v218 = vunpack.c.h.b16 %v206
      %v219 = vpack.c.b16 %v215, %v215
      %v220 = vpack.c.b16 %v216, %v216
      %v221 = vpack.c.b16 %v217, %v217
      %v222 = vpack.c.b16 %v218, %v218
      %vm223 = vcmask 64512
      %v225 = vsel %vm223, %v204, 0
      %vm227 = vcmask 1043456
      %v229 = vsel %vm227, %v219, 0
      %v232 = vsel %vm227, %v220, 0
      %v235 = vsel %vm227, %v221, 0
      %v238 = vsel %vm227, %v222, 0
      %240 = vmatprep.subr.bf16.mxu0 %v232
      %241 = vmatpush1.bf16.msra.mxu0 %v229
      %242 = vmatprep.subr.bf16.mxu0 0
      %243 = vmatpush1.bf16.msra.mxu0 0
      %244 = vmatprep.subr.bf16.mxu0 0
      %245 = vmatpush1.bf16.msra.mxu0 0
      %246 = vmatprep.subr.bf16.mxu0 0
      %247 = vmatpush1.bf16.msra.mxu0 0
      %248 = vmatprep.subr.bf16.mxu0 0
      %249 = vmatpush1.bf16.msra.mxu0 0
      %250 = vmatprep.subr.bf16.mxu0 0
      %251 = vmatpush1.bf16.msra.mxu0 0
      %252 = vmatprep.subr.bf16.mxu0 0
      %253 = vmatpush1.bf16.msra.mxu0 0
      %254 = vmatprep.subr.bf16.mxu0 0
      %255 = vmatpush1.bf16.msra.mxu0 0
      %256 = vmatprep.subr.bf16.mxu0 0
      %257 = vmatpush1.bf16.msra.mxu0 0
      %258 = vmatprep.subr.bf16.mxu0 0
      %259 = vmatpush1.bf16.msra.mxu0 0
      %260 = vmatprep.subr.bf16.mxu0 0
      %261 = vmatpush1.bf16.msra.mxu0 0
      %262 = vmatprep.subr.bf16.mxu0 0
      %263 = vmatpush1.bf16.msra.mxu0 0
      %264 = vmatprep.subr.bf16.mxu0 0
      %265 = vmatpush1.bf16.msra.mxu0 0
      %266 = vmatprep.subr.bf16.mxu0 0
      %267 = vmatpush1.bf16.msra.mxu0 0
      %268 = vmatprep.subr.bf16.mxu0 0
      %269 = vmatpush1.bf16.msra.mxu0 0
      %270 = vmatprep.subr.bf16.mxu0 0
      %271 = vmatpush1.bf16.msra.mxu0 0
      %272 = vmatprep.mubr.bf16.mxu0 0
      %273 = vmatmul.mubr.bf16.gmra.mrb[0].mxu0 %v225
      %v274 = vpop.f32.mrb[0].mxu0
      %v275 = vadd.f32 %v211, %v274
      %v276 = vpop.f32.mrb[0].mxu0
      %v277 = vadd.f32 %v211, %v276
      %v278 = vpop.f32.mrb[0].mxu0
      %v279 = vpop.f32.mrb[0].mxu0
      %280 = vdwg.mxu0
      %281 = vmatprep.subr.bf16.mxu0 %v238
      %282 = vmatpush1.bf16.msra.mxu0 %v235
      %283 = vmatprep.subr.bf16.mxu0 0
      %284 = vmatpush1.bf16.msra.mxu0 0
      %285 = vmatprep.subr.bf16.mxu0 0
      %286 = vmatpush1.bf16.msra.mxu0 0
      %287 = vmatprep.subr.bf16.mxu0 0
      %288 = vmatpush1.bf16.msra.mxu0 0
      %289 = vmatprep.subr.bf16.mxu0 0
      %290 = vmatpush1.bf16.msra.mxu0 0
      %291 = vmatprep.subr.bf16.mxu0 0
      %292 = vmatpush1.bf16.msra.mxu0 0
      %293 = vmatprep.subr.bf16.mxu0 0
      %294 = vmatpush1.bf16.msra.mxu0 0
      %295 = vmatprep.subr.bf16.mxu0 0
      %296 = vmatpush1.bf16.msra.mxu0 0
      %297 = vmatprep.subr.bf16.mxu0 0
      %298 = vmatpush1.bf16.msra.mxu0 0
      %299 = vmatprep.subr.bf16.mxu0 0
      %300 = vmatpush1.bf16.msra.mxu0 0
      %301 = vmatprep.subr.bf16.mxu0 0
      %302 = vmatpush1.bf16.msra.mxu0 0
      %303 = vmatprep.subr.bf16.mxu0 0
      %304 = vmatpush1.bf16.msra.mxu0 0
      %305 = vmatprep.subr.bf16.mxu0 0
      %306 = vmatpush1.bf16.msra.mxu0 0
      %307 = vmatprep.subr.bf16.mxu0 0
      %308 = vmatpush1.bf16.msra.mxu0 0
      %309 = vmatprep.subr.bf16.mxu0 0
      %310 = vmatpush1.bf16.msra.mxu0 0
      %311 = vmatprep.subr.bf16.mxu0 0
      %312 = vmatpush1.bf16.msra.mxu0 0
      %313 = vmatprep.mubr.bf16.mxu0 0
      %314 = vmatmul.mubr.bf16.gmra.mrb[0].mxu0 %v225
      %v315 = vpop.f32.mrb[0].mxu0
      %v316 = vadd.f32 %v211, %v315
      %v317 = vpop.f32.mrb[0].mxu0
      %v318 = vadd.f32 %v211, %v317
      %v319 = vpop.f32.mrb[0].mxu0
      %v320 = vpop.f32.mrb[0].mxu0
      %321 = vdwg.mxu0
      %v326 = vcombine.low %v275, %v277
      %v327 = vcombine.low %v316, %v318
      %330 = vst [vmem:[%s201] sm:$0xff] %v326
      %331 = vst [vmem:[%s201 + $0x8] sm:$0xff] %v327
      %s332 = smul.u32 4, %s19
      %p333 = scmp.lt.s32.totalorder %s18, 1
      %s334 = scalar_select %p333, %s18, 1
      %p335 = scmp.lt.s32.totalorder %s332, 3
      %s336 = scalar_select %p335, %s332, 3
      %s337 = smul.addr %s334, 4
      %s338 = sadd.s32 %s336, %s337
      %s339 = smul.addr %s338, 4
      %s340 = scalar_lea.vmem %s3, %s339
      // Predicated region
      $region33: #{multi_head_attention_3d_forward.5} parent=31 // pred_check
        %p341 = pneg %p116
      $region34: #{multi_head_attention_3d_forward.5} parent=31 // pred_check_branch
        %343 = sbr.rel (%p341) target = $region36
      $region35: #{multi_head_attention_3d_forward.5} parent=31 // pred_region
        %s344 = smul.u32 4, %s19
      $region36: #{multi_head_attention_3d_forward.5} parent=31 // pred_fallthru
        _
    $region32: #{multi_head_attention_3d_forward.5} parent=5 // pred_fallthru
      _
    %p345 = scmp.le.s32.totalorder 2, %s9
    // Predicated region
    $region37: #{multi_head_attention_3d_forward.5} parent=5 // pred_check
      %p346 = pneg %p345
    $region38: #{multi_head_attention_3d_forward.5} parent=5 // pred_check_branch
      %348 = sbr.rel (%p346) target = $region40
    $region39: #{multi_head_attention_3d_forward.5} parent=5 // pred_region
      %s349 = ssub.s32 %s9, 2
      // Predicated region
      $region41: #{multi_head_attention_3d_forward.5} parent=39 // pred_check
        %p350 = pneg %p122
      $region42: #{multi_head_attention_3d_forward.5} parent=39 // pred_check_branch
        %352 = sbr.rel (%p350) target = $region44
      $region43: #{multi_head_attention_3d_forward.5} parent=39 // pred_region
        %s353 = smul.u32 4, %s21
        %p354 = scmp.lt.s32.totalorder %s20, 1
        %s355 = scalar_select %p354, %s20, 1
        %p356 = scmp.lt.s32.totalorder %s353, 3
        %s357 = scalar_select %p356, %s353, 3
        %s358 = smul.addr %s355, 4
        %s359 = sadd.s32 %s357, %s358
        %s360 = smul.addr %s359, 4
        %s361 = scalar_lea.vmem %s3, %s360
      $region44: #{multi_head_attention_3d_forward.5} parent=39 // pred_fallthru
        _
    $region40: #{multi_head_attention_3d_forward.5} parent=5 // pred_fallthru
      _
  $region6: #{multi_head_attention_3d_forward.5} parent=0 // loop_footer
    %s13 = sadd.s32 1, %s9
  $region7: #{multi_head_attention_3d_forward.5} parent=0 // loop_footer_branch
    %8 = sbr.rel target = $region3
  $region8: #{multi_head_attention_3d_forward.5} parent=0 // loop_exit
    _

// kernel: multi_head_attention_3d_forward.4
$region0: #{multi_head_attention_3d_forward.4}
  #allocation0 [shape = 'u32[]', space=smem, size = 0x4, offset = 0x4, fixed_abs, tag = 'smem constant byte address 0x4 - core index']
  #allocation1 [shape = 'u32[144,128]{1,0:T(1,128)}', space=vmem, size = 0x12000, scoped, tag = 'internal scratch']
  #allocation2 [shape = 'f32[1,512]{1,0:T(1,128)}', space=vmem, size = 0x800, scoped, tag = 'scratch operand']
  #allocation3 [shape = 'f32[5,512]{1,0:T(8,128)}', space=vmem, size = 0x4000, scoped, tag = 'scratch operand']
  %s0 = inlined_call_operand.vmem [shape: bf16[4,2048], index: 0, kind: input, shape index: {}]
  %s1 = inlined_call_operand.vmem [shape: bf16[4,2048], index: 1, kind: input, shape index: {}]
  %s2 = inlined_call_operand.vmem [shape: bf16[5,2048], index: 2, kind: input, shape index: {}]
  %s3 = inlined_call_operand.vmem [shape: bf16[4,2048], index: 3, kind: output, shape index: {}]
  %s4 = sld [smem:[#allocation0]]
  $region53: #{multi_head_attention_3d_forward.4} parent=0
    _
  %s6 = ssub.s32 1, %s4
  %s7 = scalar_select 0, %s6, %s4
  loop: start=0, step=1, limit=10
  $region2: #{multi_head_attention_3d_forward.4} parent=0 // loop_pre_header
    _
  $region3: #{multi_head_attention_3d_forward.4} parent=0 // loop_header
    %s9 = sphi 0, %s13
    %p10 = scmp.ge.s32.totalorder %s9, 10
    %s16 = sphi 0, %s28
    %s17 = sphi 0, %s24
    %s18 = sphi 0, %s16
    %s19 = sphi 0, %s17
    %s20 = sphi 0, %s18
    %s21 = sphi 0, %s19
    %s31 = sphi 0, %s33
    %s34 = sphi 0, %s31
    %s35 = sphi 0, %s34
    %s51 = sphi 0, %s35
    %s57 = sphi 0, %s59
    %s60 = sphi 0, %s57
    %s61 = sphi 0, %s60
    %s77 = sphi 0, %s61
    %s83 = sphi 0, %s85
    %s86 = sphi 0, %s83
    %s87 = sphi 0, %s86
    %s103 = sphi 0, %s87
    %s109 = sphi 0, %s111
    %s112 = sphi 0, %s109
    %s113 = sphi 0, %s112
    %s129 = sphi 0, %s113
  $region4: #{multi_head_attention_3d_forward.4} parent=0 // loop_header_branch
    %12 = sbr.rel (%p10) target = $region8
  $region5: #{multi_head_attention_3d_forward.4} parent=0 // loop_body
    %s14 = ssub.s32 %s9, 1
    %s15 = ssub.s32 %s9, 2
    %s22 = sadd.s32 1, %s17
    %p23 = scmp.ge.s32.totalorder %s22, 2
    %s24 = scalar_select %p23, 0, %s22
    %s25 = sadd.s32 1, %s16
    %s26 = scalar_select %p23, %s25, %s16
    %p27 = scmp.ge.s32.totalorder %s26, 4
    %s28 = scalar_select %p27, 0, %s26
    %s29 = ssub.s32 %s16, %s28
    %p30 = scmp.eq.s32.totalorder %s29, 0
    %s32 = sadd.s32 %s31, 1
    %s33 = scalar_select %p30, %s31, %s32
    %p36 = pneg %p30
    %p37 = scmp.eq.s32.totalorder %s9, 7
    %p38 = por %p36, %p37
    %p39 = scmp.ne.s32.totalorder %s31, %s34
    %p40 = scmp.eq.s32.totalorder %s9, 0
    %p41 = por %p39, %p40
    %p42 = scmp.ne.s32.totalorder %s31, %s34
    %p43 = scmp.eq.s32.totalorder %s14, 7
    %p44 = por %p42, %p43
    %p45 = scmp.ne.s32.totalorder %s34, %s35
    %p46 = scmp.eq.s32.totalorder %s14, 0
    %p47 = por %p45, %p46
    %p48 = scmp.ne.s32.totalorder %s34, %s35
    %p49 = scmp.eq.s32.totalorder %s15, 7
    %p50 = por %p48, %p49
    %p52 = scmp.ne.s32.totalorder %s35, %s51
    %p53 = scmp.eq.s32.totalorder %s15, 0
    %p54 = por %p52, %p53
    %s55 = ssub.s32 %s17, %s24
    %p56 = scmp.eq.s32.totalorder %s55, 0
    %s58 = sadd.s32 %s57, 1
    %s59 = scalar_select %p56, %s57, %s58
    %p62 = pneg %p56
    %p63 = scmp.eq.s32.totalorder %s9, 7
    %p64 = por %p62, %p63
    %p65 = scmp.ne.s32.totalorder %s57, %s60
    %p66 = scmp.eq.s32.totalorder %s9, 0
    %p67 = por %p65, %p66
    %p68 = scmp.ne.s32.totalorder %s57, %s60
    %p69 = scmp.eq.s32.totalorder %s14, 7
    %p70 = por %p68, %p69
    %p71 = scmp.ne.s32.totalorder %s60, %s61
    %p72 = scmp.eq.s32.totalorder %s14, 0
    %p73 = por %p71, %p72
    %p74 = scmp.ne.s32.totalorder %s60, %s61
    %p75 = scmp.eq.s32.totalorder %s15, 7
    %p76 = por %p74, %p75
    %p78 = scmp.ne.s32.totalorder %s61, %s77
    %p79 = scmp.eq.s32.totalorder %s15, 0
    %p80 = por %p78, %p79
    %s81 = ssub.s32 %s17, %s24
    %p82 = scmp.eq.s32.totalorder %s81, 0
    %s84 = sadd.s32 %s83, 1
    %s85 = scalar_select %p82, %s83, %s84
    %p88 = pneg %p82
    %p89 = scmp.eq.s32.totalorder %s9, 7
    %p90 = por %p88, %p89
    %p91 = scmp.ne.s32.totalorder %s83, %s86
    %p92 = scmp.eq.s32.totalorder %s9, 0
    %p93 = por %p91, %p92
    %p94 = scmp.ne.s32.totalorder %s83, %s86
    %p95 = scmp.eq.s32.totalorder %s14, 7
    %p96 = por %p94, %p95
    %p97 = scmp.ne.s32.totalorder %s86, %s87
    %p98 = scmp.eq.s32.totalorder %s14, 0
    %p99 = por %p97, %p98
    %p100 = scmp.ne.s32.totalorder %s86, %s87
    %p101 = scmp.eq.s32.totalorder %s15, 7
    %p102 = por %p100, %p101
    %p104 = scmp.ne.s32.totalorder %s87, %s103
    %p105 = scmp.eq.s32.totalorder %s15, 0
    %p106 = por %p104, %p105
    %s107 = ssub.s32 %s16, %s28
    %p108 = scmp.eq.s32.totalorder %s107, 0
    %s110 = sadd.s32 %s109, 1
    %s111 = scalar_select %p108, %s109, %s110
    %p114 = pneg %p108
    %p115 = scmp.eq.s32.totalorder %s9, 7
    %p116 = por %p114, %p115
    %p117 = scmp.ne.s32.totalorder %s109, %s112
    %p118 = scmp.eq.s32.totalorder %s9, 0
    %p119 = por %p117, %p118
    %p120 = scmp.ne.s32.totalorder %s109, %s112
    %p121 = scmp.eq.s32.totalorder %s14, 7
    %p122 = por %p120, %p121
    %p123 = scmp.ne.s32.totalorder %s112, %s113
    %p124 = scmp.eq.s32.totalorder %s14, 0
    %p125 = por %p123, %p124
    %p126 = scmp.ne.s32.totalorder %s112, %s113
    %p127 = scmp.eq.s32.totalorder %s15, 7
    %p128 = por %p126, %p127
    %p130 = scmp.ne.s32.totalorder %s113, %s129
    %p131 = scmp.eq.s32.totalorder %s15, 0
    %p132 = por %p130, %p131
    %p133 = scmp.le.s32.totalorder 1, %s9
    %p134 = scmp.lt.s32.totalorder %s9, 9
    %p135 = pnand %p133, %p134
    %p136 = pneg %p135
    // Predicated region
    $region9: #{multi_head_attention_3d_forward.4} parent=5 // pred_check
      _
    $region10: #{multi_head_attention_3d_forward.4} parent=5 // pred_check_branch
      %138 = sbr.rel (%p135) target = $region12
    $region11: #{multi_head_attention_3d_forward.4} parent=5 // pred_region
      %s139 = ssub.s32 %s9, 1
    $region12: #{multi_head_attention_3d_forward.4} parent=5 // pred_fallthru
      _
    %p140 = scmp.lt.s32.totalorder %s9, 8
    // Predicated region
    $region13: #{multi_head_attention_3d_forward.4} parent=5 // pred_check
      %p141 = pneg %p140
    $region14: #{multi_head_attention_3d_forward.4} parent=5 // pred_check_branch
      %143 = sbr.rel (%p141) target = $region16
    $region15: #{multi_head_attention_3d_forward.4} parent=5 // pred_region
      // Predicated region
      $region17: #{multi_head_attention_3d_forward.4} parent=15 // pred_check
        %p144 = pneg %p41
      $region18: #{multi_head_attention_3d_forward.4} parent=15 // pred_check_branch
        %146 = sbr.rel (%p144) target = $region20
      $region19: #{multi_head_attention_3d_forward.4} parent=15 // pred_region
        %s147 = smul.u32 4, %s16
        %p148 = scmp.lt.s32.totalorder %s147, 15
        %s149 = scalar_select %p148, %s147, 15
        %s150 = smul.addr %s149, 2
        %s151 = scalar_lea.vmem %s0, %s150
        %s152 = smul.u32 4, %s16
      $region20: #{multi_head_attention_3d_forward.4} parent=15 // pred_fallthru
        _
      // Predicated region
      $region21: #{multi_head_attention_3d_forward.4} parent=15 // pred_check
        %p153 = pneg %p67
      $region22: #{multi_head_attention_3d_forward.4} parent=15 // pred_check_branch
        %155 = sbr.rel (%p153) target = $region24
      $region23: #{multi_head_attention_3d_forward.4} parent=15 // pred_region
        %s156 = smul.u32 8, %s17
        %p157 = scmp.lt.s32.totalorder %s156, 15
        %s158 = scalar_select %p157, %s156, 15
        %s159 = smul.addr %s158, 2
        %s160 = scalar_lea.vmem %s1, %s159
        %s161 = smul.u32 8, %s17
      $region24: #{multi_head_attention_3d_forward.4} parent=15 // pred_fallthru
        _
      // Predicated region
      $region25: #{multi_head_attention_3d_forward.4} parent=15 // pred_check
        %p162 = pneg %p93
      $region26: #{multi_head_attention_3d_forward.4} parent=15 // pred_check_branch
        %164 = sbr.rel (%p162) target = $region28
      $region27: #{multi_head_attention_3d_forward.4} parent=15 // pred_region
        %s165 = smul.u32 8, %s17
        %p166 = scmp.lt.s32.totalorder %s165, 15
        %s167 = scalar_select %p166, %s165, 15
        %s168 = smul.addr %s167, 4
        %s169 = scalar_lea.vmem %s2, %s168
        %s170 = smul.u32 8, %s17
      $region28: #{multi_head_attention_3d_forward.4} parent=15 // pred_fallthru
        _
    $region16: #{multi_head_attention_3d_forward.4} parent=5 // pred_fallthru
      _
    %p171 = scmp.le.s32.totalorder 1, %s9
    %p172 = scmp.lt.s32.totalorder %s9, 9
    %p173 = pnand %p171, %p172
    %p174 = pneg %p173
    // Predicated region
    $region29: #{multi_head_attention_3d_forward.4} parent=5 // pred_check
      _
    $region30: #{multi_head_attention_3d_forward.4} parent=5 // pred_check_branch
      %176 = sbr.rel (%p173) target = $region32
    $region31: #{multi_head_attention_3d_forward.4} parent=5 // pred_region
      %s177 = ssub.s32 %s9, 1
      %s178 = smul.u32 4, %s18
      %p179 = scmp.lt.s32.totalorder %s178, 15
      %s180 = scalar_select %p179, %s178, 15
      %s181 = smul.addr %s180, 2
      %s182 = scalar_lea.vmem %s0, %s181
      %p183 = pneg %p47
      %p184 = pneg %p44
      %s185 = smul.u32 8, %s19
      %p186 = scmp.lt.s32.totalorder %s185, 15
      %s187 = scalar_select %p186, %s185, 15
      %s188 = smul.addr %s187, 2
      %s189 = scalar_lea.vmem %s1, %s188
      %p190 = pneg %p73
      %p191 = pneg %p70
      %s192 = smul.u32 8, %s19
      %p193 = scmp.lt.s32.totalorder %s192, 15
      %s194 = scalar_select %p193, %s192, 15
      %s195 = smul.addr %s194, 4
      %s196 = scalar_lea.vmem %s2, %s195
      %p197 = pneg %p99
      %p198 = pneg %p96
      %p199 = pneg %p125
      %p200 = pneg %p122
      %s201 = smul.u32 4, %s18
      %p202 = scmp.lt.s32.totalorder %s201, 15
      %s203 = scalar_select %p202, %s201, 15
      %s204 = smul.addr %s203, 2
      %s205 = scalar_lea.vmem %s3, %s204
      %s206 = smul.u32 4, %s18
      %p207 = scmp.lt.s32.totalorder %s206, 15
      %s208 = scalar_select %p207, %s206, 15
      %s209 = smul.addr %s208, 2
      %s210 = scalar_lea.vmem %s0, %s209
      %s211 = smul.u32 4, %s18
      %s212 = smul.u32 8, %s19
      %p213 = scmp.lt.s32.totalorder %s212, 15
      %s214 = scalar_select %p213, %s212, 15
      %s215 = smul.addr %s214, 2
      %s216 = scalar_lea.vmem %s1, %s215
      %s217 = smul.u32 8, %s19
      %s218 = smul.u32 8, %s19
      %p219 = scmp.lt.s32.totalorder %s218, 15
      %s220 = scalar_select %p219, %s218, 15
      %s221 = smul.addr %s220, 4
      %s222 = scalar_lea.vmem %s2, %s221
      %s223 = smul.u32 8, %s19
      %s224 = smul.u32 4, %s18
      %p225 = scmp.lt.s32.totalorder %s224, 15
      %s226 = scalar_select %p225, %s224, 15
      %s227 = smul.addr %s226, 2
      %s228 = scalar_lea.vmem %s3, %s227
      %s229 = smul.u32 4, %s18
      %p231 = scmp.eq.s32.totalorder %s19, 0
      // Predicated region
      $region33: #{multi_head_attention_3d_forward.4} parent=31 // pred_check
        %p232 = pneg %p231
      $region34: #{multi_head_attention_3d_forward.4} parent=31 // pred_check_branch
        %234 = sbr.rel (%p232) target = $region36
      $region35: #{multi_head_attention_3d_forward.4} parent=31 // pred_region
        %v235 = vlaneseq
        %vm236 = vcmp.ge.s32.totalorder %v235, 0
        %vm237 = vcmp.lt.s32.totalorder %v235, 512
        %vm238 = vmand %vm236, %vm237
        %239 = vst.msk [vmem:[#allocation2] sm:$0xf] %vm238, -inf
        %240 = vst [vmem:[#allocation3] sm:$0x1f] 0.0
        %241 = vst [vmem:[#allocation3 + $0x8] sm:$0x1f] 0.0
        %242 = vst [vmem:[#allocation3 + $0x10] sm:$0x1f] 0.0
        %243 = vst [vmem:[#allocation3 + $0x18] sm:$0x1f] 0.0
      $region36: #{multi_head_attention_3d_forward.4} parent=31 // pred_fallthru
        _
      %v244 = vld [vmem:[%s216] sm:$0xff]
      %v245 = vld [vmem:[%s216 + $0x8] sm:$0xff]
      %v246 = vld [vmem:[%s210] sm:$0xff]
      %v249 = vcombine.high %v244, %v244
      %v251 = vunpack.c.l.s4 1983009808
      %v252 = vunpack.c.0.s8 %v251
      %v253 = vlaneseq
      %v254 = vshrl.u32 %v253, 7
      %v255 = vsub.s32 %v252, %v254
      %v256 = vrot.slane %v244, %v255
      %v258 = vunpack.c.l.s4 1983009808
      %v259 = vunpack.c.0.s8 %v258
      %v260 = vlaneseq
      %v261 = vshrl.u32 %v260, 7
      %v262 = vsub.s32 %v259, %v261
      %v263 = vrot.slane %v249, %v262
      %v264 = vcombine.high %v256, %v256
      %v265 = vcombine.high %v263, %v263
      %v266 = vcombine.high %v245, %v245
      %v268 = vunpack.c.l.s4 1983009808
      %v269 = vunpack.c.0.s8 %v268
      %v270 = vlaneseq
      %v271 = vshrl.u32 %v270, 7
      %v272 = vsub.s32 %v269, %v271
      %v273 = vrot.slane %v245, %v272
      %v275 = vunpack.c.l.s4 1983009808
      %v276 = vunpack.c.0.s8 %v275
      %v277 = vlaneseq
      %v278 = vshrl.u32 %v277, 7
      %v279 = vsub.s32 %v276, %v278
      %v280 = vrot.slane %v266, %v279
      %v281 = vcombine.high %v273, %v273
      %v282 = vcombine.high %v280, %v280
      %291 = vxpose.xlu0.c.b16.start [1/8] %v256, 128
      %292 = vxpose.xlu0.c.b16.cont [2/8] 0, 128
      %293 = vxpose.xlu0.c.b16.cont [3/8] 0, 128
      %294 = vxpose.xlu0.c.b16.cont [4/8] 0, 128
      %295 = vxpose.xlu0.c.b16.cont [5/8] 0, 128
      %296 = vxpose.xlu0.c.b16.cont [6/8] 0, 128
      %297 = vxpose.xlu0.c.b16.cont [7/8] 0, 128
      %298 = vxpose.xlu0.c.b16.end [8/8] 0, 128
      %v299 = vpop.trf.xlu0
      %v300 = vpop.trf.xlu0
      %v301 = vpop.trf.xlu0
      %v302 = vpop.trf.xlu0
      %v303 = vpop.trf.xlu0
      %v304 = vpop.trf.xlu0
      %v305 = vpop.trf.xlu0
      %v306 = vpop.trf.xlu0
      %307 = vxpose.xlu0.c.b16.start [1/8] %v264, 128
      %308 = vxpose.xlu0.c.b16.cont [2/8] 0, 128
      %309 = vxpose.xlu0.c.b16.cont [3/8] 0, 128
      %310 = vxpose.xlu0.c.b16.cont [4/8] 0, 128
      %311 = vxpose.xlu0.c.b16.cont [5/8] 0, 128
      %312 = vxpose.xlu0.c.b16.cont [6/8] 0, 128
      %313 = vxpose.xlu0.c.b16.cont [7/8] 0, 128
      %314 = vxpose.xlu0.c.b16.end [8/8] 0, 128
      %v315 = vpop.trf.xlu0
      %v316 = vpop.trf.xlu0
      %v317 = vpop.trf.xlu0
      %v318 = vpop.trf.xlu0
      %v319 = vpop.trf.xlu0
      %v320 = vpop.trf.xlu0
      %v321 = vpop.trf.xlu0
      %v322 = vpop.trf.xlu0
      %323 = vxpose.xlu0.c.b16.start [1/8] %v263, 128
      %324 = vxpose.xlu0.c.b16.cont [2/8] 0, 128
      %325 = vxpose.xlu0.c.b16.cont [3/8] 0, 128
      %326 = vxpose.xlu0.c.b16.cont [4/8] 0, 128
      %327 = vxpose.xlu0.c.b16.cont [5/8] 0, 128
      %328 = vxpose.xlu0.c.b16.cont [6/8] 0, 128
      %329 = vxpose.xlu0.c.b16.cont [7/8] 0, 128
      %330 = vxpose.xlu0.c.b16.end [8/8] 0, 128
      %v331 = vpop.trf.xlu0
      %v332 = vpop.trf.xlu0
      %v333 = vpop.trf.xlu0
      %v334 = vpop.trf.xlu0
      %v335 = vpop.trf.xlu0
      %v336 = vpop.trf.xlu0
      %v337 = vpop.trf.xlu0
      %v338 = vpop.trf.xlu0
      %339 = vxpose.xlu0.c.b16.start [1/8] %v265, 128
      %340 = vxpose.xlu0.c.b16.cont [2/8] 0, 128
      %341 = vxpose.xlu0.c.b16.cont [3/8] 0, 128
      %342 = vxpose.xlu0.c.b16.cont [4/8] 0, 128
      %343 = vxpose.xlu0.c.b16.cont [5/8] 0, 128
      %344 = vxpose.xlu0.c.b16.cont [6/8] 0, 128
      %345 = vxpose.xlu0.c.b16.cont [7/8] 0, 128
      %346 = vxpose.xlu0.c.b16.end [8/8] 0, 128
      %v347 = vpop.trf.xlu0
      %v348 = vpop.trf.xlu0
      %v349 = vpop.trf.xlu0
      %v350 = vpop.trf.xlu0
      %v351 = vpop.trf.xlu0
      %v352 = vpop.trf.xlu0
      %v353 = vpop.trf.xlu0
      %v354 = vpop.trf.xlu0
      %355 = vxpose.xlu0.c.b16.start [1/8] %v273, 128
      %356 = vxpose.xlu0.c.b16.cont [2/8] 0, 128
      %357 = vxpose.xlu0.c.b16.cont [3/8] 0, 128
      %358 = vxpose.xlu0.c.b16.cont [4/8] 0, 128
      %359 = vxpose.xlu0.c.b16.cont [5/8] 0, 128
      %360 = vxpose.xlu0.c.b16.cont [6/8] 0, 128
      %361 = vxpose.xlu0.c.b16.cont [7/8] 0, 128
      %362 = vxpose.xlu0.c.b16.end [8/8] 0, 128
      %v363 = vpop.trf.xlu0
      %v364 = vpop.trf.xlu0
      %v365 = vpop.trf.xlu0
      %v366 = vpop.trf.xlu0
      %v367 = vpop.trf.xlu0
      %v368 = vpop.trf.xlu0
      %v369 = vpop.trf.xlu0
      %v370 = vpop.trf.xlu0
      %371 = vxpose.xlu0.c.b16.start [1/8] %v281, 128
      %372 = vxpose.xlu0.c.b16.cont [2/8] 0, 128
      %373 = vxpose.xlu0.c.b16.cont [3/8] 0, 128
      %374 = vxpose.xlu0.c.b16.cont [4/8] 0, 128
      %375 = vxpose.xlu0.c.b16.cont [5/8] 0, 128
      %376 = vxpose.xlu0.c.b16.cont [6/8] 0, 128
      %377 = vxpose.xlu0.c.b16.cont [7/8] 0, 128
      %378 = vxpose.xlu0.c.b16.end [8/8] 0, 128
      %v379 = vpop.trf.xlu0
      %v380 = vpop.trf.xlu0
      %v381 = vpop.trf.xlu0
      %v382 = vpop.trf.xlu0
      %v383 = vpop.trf.xlu0
      %v384 = vpop.trf.xlu0
      %v385 = vpop.trf.xlu0
      %v386 = vpop.trf.xlu0
      %387 = vxpose.xlu0.c.b16.start [1/8] %v280, 128
      %388 = vxpose.xlu0.c.b16.cont [2/8] 0, 128
      %389 = vxpose.xlu0.c.b16.cont [3/8] 0, 128
      %390 = vxpose.xlu0.c.b16.cont [4/8] 0, 128
      %391 = vxpose.xlu0.c.b16.cont [5/8] 0, 128
      %392 = vxpose.xlu0.c.b16.cont [6/8] 0, 128
      %393 = vxpose.xlu0.c.b16.cont [7/8] 0, 128
      %394 = vxpose.xlu0.c.b16.end [8/8] 0, 128
      %v395 = vpop.trf.xlu0
      %v396 = vpop.trf.xlu0
      %v397 = vpop.trf.xlu0
      %v398 = vpop.trf.xlu0
      %v399 = vpop.trf.xlu0
      %v400 = vpop.trf.xlu0
      %v401 = vpop.trf.xlu0
      %v402 = vpop.trf.xlu0
      %403 = vxpose.xlu0.c.b16.start [1/8] %v282, 128
      %404 = vxpose.xlu0.c.b16.cont [2/8] 0, 128
      %405 = vxpose.xlu0.c.b16.cont [3/8] 0, 128
      %406 = vxpose.xlu0.c.b16.cont [4/8] 0, 128
      %407 = vxpose.xlu0.c.b16.cont [5/8] 0, 128
      %408 = vxpose.xlu0.c.b16.cont [6/8] 0, 128
      %409 = vxpose.xlu0.c.b16.cont [7/8] 0, 128
      %410 = vxpose.xlu0.c.b16.end [8/8] 0, 128
      %v411 = vpop.trf.xlu0
      %v412 = vpop.trf.xlu0
      %v413 = vpop.trf.xlu0
      %v414 = vpop.trf.xlu0
      %v415 = vpop.trf.xlu0
      %v416 = vpop.trf.xlu0
      %v417 = vpop.trf.xlu0
      %v418 = vpop.trf.xlu0
      %v420 = vcombine.high %v246, %v246
      %v422 = vunpack.c.l.s4 1983009808
      %v423 = vunpack.c.0.s8 %v422
      %v424 = vlaneseq
      %v425 = vshrl.u32 %v424, 7
      %v426 = vsub.s32 %v423, %v425
      %v427 = vrot.slane %v246, %v426
      %v429 = vunpack.c.l.s4 1983009808
      %v430 = vunpack.c.0.s8 %v429
      %v431 = vlaneseq
      %v432 = vshrl.u32 %v431, 7
      %v433 = vsub.s32 %v430, %v432
      %v434 = vrot.slane %v420, %v433
      %v435 = vcombine.high %v427, %v427
      %v436 = vcombine.high %v434, %v434
      %vm437 = vcmask 31744
      %v439 = vsel %vm437, %v299, 0
      %v442 = vsel %vm437, %v300, 0
      %v445 = vsel %vm437, %v301, 0
      %v448 = vsel %vm437, %v302, 0
      %v451 = vsel %vm437, %v303, 0
      %v454 = vsel %vm437, %v304, 0
      %v457 = vsel %vm437, %v305, 0
      %v460 = vsel %vm437, %v306, 0
      %v463 = vsel %vm437, %v315, 0
      %v466 = vsel %vm437, %v316, 0
      %v469 = vsel %vm437, %v317, 0
      %v472 = vsel %vm437, %v318, 0
      %v475 = vsel %vm437, %v319, 0
      %v478 = vsel %vm437, %v320, 0
      %v481 = vsel %vm437, %v321, 0
      %v484 = vsel %vm437, %v322, 0
      %v487 = vsel %vm437, %v331, 0
      %v490 = vsel %vm437, %v332, 0
      %v493 = vsel %vm437, %v333, 0
      %v496 = vsel %vm437, %v334, 0
      %v499 = vsel %vm437, %v335, 0
      %v502 = vsel %vm437, %v336, 0
      %v505 = vsel %vm437, %v337, 0
      %v508 = vsel %vm437, %v338, 0
      %v511 = vsel %vm437, %v347, 0
      %v514 = vsel %vm437, %v348, 0
      %v517 = vsel %vm437, %v349, 0
      %v520 = vsel %vm437, %v350, 0
      %v523 = vsel %vm437, %v351, 0
      %v526 = vsel %vm437, %v352, 0
      %v529 = vsel %vm437, %v353, 0
      %v532 = vsel %vm437, %v354, 0
      %v535 = vsel %vm437, %v363, 0
      %v538 = vsel %vm437, %v364, 0
      %v541 = vsel %vm437, %v365, 0
      %v544 = vsel %vm437, %v366, 0
      %v547 = vsel %vm437, %v367, 0
      %v550 = vsel %vm437, %v368, 0
      %v553 = vsel %vm437, %v369, 0
      %v556 = vsel %vm437, %v370, 0
      %v559 = vsel %vm437, %v379, 0
      %v562 = vsel %vm437, %v380, 0
      %v565 = vsel %vm437, %v381, 0
      %v568 = vsel %vm437, %v382, 0
      %v571 = vsel %vm437, %v383, 0
      %v574 = vsel %vm437, %v384, 0
      %v577 = vsel %vm437, %v385, 0
      %v580 = vsel %vm437, %v386, 0
      %v583 = vsel %vm437, %v395, 0
      %v586 = vsel %vm437, %v396, 0
      %v589 = vsel %vm437, %v397, 0
      %v592 = vsel %vm437, %v398, 0
      %v595 = vsel %vm437, %v399, 0
      %v598 = vsel %vm437, %v400, 0
      %v601 = vsel %vm437, %v401, 0
      %v604 = vsel %vm437, %v402, 0
      %v607 = vsel %vm437, %v411, 0
      %v610 = vsel %vm437, %v412, 0
      %v613 = vsel %vm437, %v413, 0
      %v616 = vsel %vm437, %v414, 0
      %v619 = vsel %vm437, %v415, 0
      %v622 = vsel %vm437, %v416, 0
      %v625 = vsel %vm437, %v417, 0
      %v628 = vsel %vm437, %v418, 0
      %vm630 = vcmask 1041408
      %v632 = vsel %vm630, %v427, 0
      %v635 = vsel %vm630, %v435, 0
      %v638 = vsel %vm630, %v434, 0
      %v641 = vsel %vm630, %v436, 0
      %643 = vmatprep.subr.bf16.mxu0 %v635
      %644 = vmatpush1.bf16.msra.mxu0 %v632
      %645 = vmatprep.subr.bf16.mxu0 0
      %646 = vmatpush1.bf16.msra.mxu0 0
      %647 = vmatprep.subr.bf16.mxu0 0
      %648 = vmatpush1.bf16.msra.mxu0 0
      %649 = vmatprep.subr.bf16.mxu0 0
      %650 = vmatpush1.bf16.msra.mxu0 0
      %651 = vmatprep.subr.bf16.mxu0 0
      %652 = vmatpush1.bf16.msra.mxu0 0
      %653 = vmatprep.subr.bf16.mxu0 0
      %654 = vmatpush1.bf16.msra.mxu0 0
      %655 = vmatprep.subr.bf16.mxu0 0
      %656 = vmatpush1.bf16.msra.mxu0 0
      %657 = vmatprep.subr.bf16.mxu0 0
      %658 = vmatpush1.bf16.msra.mxu0 0
      %659 = vmatprep.subr.bf16.mxu0 0
      %660 = vmatpush1.bf16.msra.mxu0 0
      %661 = vmatprep.subr.bf16.mxu0 0
      %662 = vmatpush1.bf16.msra.mxu0 0
      %663 = vmatprep.subr.bf16.mxu0 0
      %664 = vmatpush1.bf16.msra.mxu0 0
      %665 = vmatprep.subr.bf16.mxu0 0
      %666 = vmatpush1.bf16.msra.mxu0 0
      %667 = vmatprep.subr.bf16.mxu0 0
      %668 = vmatpush1.bf16.msra.mxu0 0
      %669 = vmatprep.subr.bf16.mxu0 0
      %670 = vmatpush1.bf16.msra.mxu0 0
      %671 = vmatprep.subr.bf16.mxu0 0
      %672 = vmatpush1.bf16.msra.mxu0 0
      %673 = vmatprep.subr.bf16.mxu0 0
      %674 = vmatpush1.bf16.msra.mxu0 0
      %675 = vmatprep.mubr.bf16.mxu0 0
      %676 = vmatmul.mubr.bf16.gmra.mrb[0].mxu0 %v439
      %v677 = vpop.f32.mrb[0].mxu0
      %v678 = vadd.f32 0.0, %v677
      %v679 = vpop.f32.mrb[0].mxu0
      %v680 = vadd.f32 0.0, %v679
      %v681 = vpop.f32.mrb[0].mxu0
      %v682 = vadd.f32 0.0, %v681
      %v683 = vpop.f32.mrb[0].mxu0
      %v684 = vadd.f32 0.0, %v683
      %685 = vmatprep.mubr.bf16.mxu0 0
      %686 = vmatmul.mubr.bf16.gmra.mrb[0].mxu0 %v442
      %v687 = vpop.f32.mrb[0].mxu0
      %v688 = vadd.f32 0.0, %v687
      %v689 = vpop.f32.mrb[0].mxu0
      %v690 = vadd.f32 0.0, %v689
      %v691 = vpop.f32.mrb[0].mxu0
      %v692 = vadd.f32 0.0, %v691
      %v693 = vpop.f32.mrb[0].mxu0
      %v694 = vadd.f32 0.0, %v693
      %695 = vmatprep.mubr.bf16.mxu0 0
      %696 = vmatmul.mubr.bf16.gmra.mrb[0].mxu0 %v445
      %v697 = vpop.f32.mrb[0].mxu0
      %v698 = vadd.f32 0.0, %v697
      %v699 = vpop.f32.mrb[0].mxu0
      %v700 = vadd.f32 0.0, %v699
      %v701 = vpop.f32.mrb[0].mxu0
      %v702 = vadd.f32 0.0, %v701
      %v703 = vpop.f32.mrb[0].mxu0
      %v704 = vadd.f32 0.0, %v703
      %705 = vmatprep.mubr.bf16.mxu0 0
      %706 = vmatmul.mubr.bf16.gmra.mrb[0].mxu0 %v448
      %v707 = vpop.f32.mrb[0].mxu0
      %v708 = vadd.f32 0.0, %v707
      %v709 = vpop.f32.mrb[0].mxu0
      %v710 = vadd.f32 0.0, %v709
      %v711 = vpop.f32.mrb[0].mxu0
      %v712 = vadd.f32 0.0, %v711
      %v713 = vpop.f32.mrb[0].mxu0
      %v714 = vadd.f32 0.0, %v713
      %715 = vmatprep.mubr.bf16.mxu0 0
      %716 = vmatmul.mubr.bf16.gmra.mrb[0].mxu0 %v451
      %v717 = vpop.f32.mrb[0].mxu0
      %v718 = vadd.f32 0.0, %v717
      %v719 = vpop.f32.mrb[0].mxu0
      %v720 = vadd.f32 0.0, %v719
      %v721 = vpop.f32.mrb[0].mxu0
      %v722 = vadd.f32 0.0, %v721
      %v723 = vpop.f32.mrb[0].mxu0
      %v724 = vadd.f32 0.0, %v723
      %725 = vmatprep.mubr.bf16.mxu0 0
      %726 = vmatmul.mubr.bf16.gmra.mrb[0].mxu0 %v454
      %v727 = vpop.f32.mrb[0].mxu0
      %v728 = vadd.f32 0.0, %v727
      %v729 = vpop.f32.mrb[0].mxu0
      %v730 = vadd.f32 0.0, %v729
      %v731 = vpop.f32.mrb[0].mxu0
      %v732 = vadd.f32 0.0, %v731
      %v733 = vpop.f32.mrb[0].mxu0
      %v734 = vadd.f32 0.0, %v733
      %735 = vmatprep.mubr.bf16.mxu0 0
      %736 = vmatmul.mubr.bf16.gmra.mrb[0].mxu0 %v457
      %v737 = vpop.f32.mrb[0].mxu0
      %v738 = vadd.f32 0.0, %v737
      %v739 = vpop.f32.mrb[0].mxu0
      %v740 = vadd.f32 0.0, %v739
      %v741 = vpop.f32.mrb[0].mxu0
      %v742 = vadd.f32 0.0, %v741
      %v743 = vpop.f32.mrb[0].mxu0
      %v744 = vadd.f32 0.0, %v743
      %745 = vmatprep.mubr.bf16.mxu0 0
      %746 = vmatmul.mubr.bf16.gmra.mrb[0].mxu0 %v460
      %v747 = vpop.f32.mrb[0].mxu0
      %v748 = vadd.f32 0.0, %v747
      %v749 = vpop.f32.mrb[0].mxu0
      %v750 = vadd.f32 0.0, %v749
      %v751 = vpop.f32.mrb[0].mxu0
      %v752 = vadd.f32 0.0, %v751
      %v753 = vpop.f32.mrb[0].mxu0
      %v754 = vadd.f32 0.0, %v753
      %755 = vmatprep.mubr.bf16.mxu0 0
      %756 = vmatmul.mubr.bf16.gmra.mrb[0].mxu0 %v463
      %v757 = vpop.f32.mrb[0].mxu0
      %v758 = vadd.f32 0.0, %v757
      %v759 = vpop.f32.mrb[0].mxu0
      %v760 = vadd.f32 0.0, %v759
      %v761 = vpop.f32.mrb[0].mxu0
      %v762 = vadd.f32 0.0, %v761
      %v763 = vpop.f32.mrb[0].mxu0
      %v764 = vadd.f32 0.0, %v763
      %765 = vmatprep.mubr.bf16.mxu0 0
      %766 = vmatmul.mubr.bf16.gmra.mrb[0].mxu0 %v466
      %v767 = vpop.f32.mrb[0].mxu0
      %v768 = vadd.f32 0.0, %v767
      %v769 = vpop.f32.mrb[0].mxu0
      %v770 = vadd.f32 0.0, %v769
      %v771 = vpop.f32.mrb[0].mxu0
      %v772 = vadd.f32 0.0, %v771
      %v773 = vpop.f32.mrb[0].mxu0
      %v774 = vadd.f32 0.0, %v773
      %775 = vmatprep.mubr.bf16.mxu0 0
      %776 = vmatmul.mubr.bf16.gmra.mrb[0].mxu0 %v469
      %v777 = vpop.f32.mrb[0].mxu0
      %v778 = vadd.f32 0.0, %v777
      %v779 = vpop.f32.mrb[0].mxu0
      %v780 = vadd.f32 0.0, %v779
      %v781 = vpop.f32.mrb[0].mxu0
      %v782 = vadd.f32 0.0, %v781
      %v783 = vpop.f32.mrb[0].mxu0
      %v784 = vadd.f32 0.0, %v783
      %785 = vmatprep.mubr.bf16.mxu0 0
      %786 = vmatmul.mubr.bf16.gmra.mrb[0].mxu0 %v472
      %v787 = vpop.f32.mrb[0].mxu0
      %v788 = vadd.f32 0.0, %v787
      %v789 = vpop.f32.mrb[0].mxu0
      %v790 = vadd.f32 0.0, %v789
      %v791 = vpop.f32.mrb[0].mxu0
      %v792 = vadd.f32 0.0, %v791
      %v793 = vpop.f32.mrb[0].mxu0
      %v794 = vadd.f32 0.0, %v793
      %795 = vmatprep.mubr.bf16.mxu0 0
      %796 = vmatmul.mubr.bf16.gmra.mrb[0].mxu0 %v475
      %v797 = vpop.f32.mrb[0].mxu0
      %v798 = vadd.f32 0.0, %v797
      %v799 = vpop.f32.mrb[0].mxu0
      %v800 = vadd.f32 0.0, %v799
      %v801 = vpop.f32.mrb[0].mxu0
      %v802 = vadd.f32 0.0, %v801
      %v803 = vpop.f32.mrb[0].mxu0
      %v804 = vadd.f32 0.0, %v803
      %805 = vmatprep.mubr.bf16.mxu0 0
      %806 = vmatmul.mubr.bf16.gmra.mrb[0].mxu0 %v478
      %v807 = vpop.f32.mrb[0].mxu0
      %v808 = vadd.f32 0.0, %v807
      %v809 = vpop.f32.mrb[0].mxu0
      %v810 = vadd.f32 0.0, %v809
      %v811 = vpop.f32.mrb[0].mxu0
      %v812 = vadd.f32 0.0, %v811
      %v813 = vpop.f32.mrb[0].mxu0
      %v814 = vadd.f32 0.0, %v813
      %815 = vmatprep.mubr.bf16.mxu0 0
      %816 = vmatmul.mubr.bf16.gmra.mrb[0].mxu0 %v481
      %v817 = vpop.f32.mrb[0].mxu0
      %v818 = vadd.f32 0.0, %v817
      %v819 = vpop.f32.mrb[0].mxu0
      %v820 = vadd.f32 0.0, %v819
      %v821 = vpop.f32.mrb[0].mxu0
      %v822 = vadd.f32 0.0, %v821
      %v823 = vpop.f32.mrb[0].mxu0
      %v824 = vadd.f32 0.0, %v823
      %825 = vmatprep.mubr.bf16.mxu0 0
      %826 = vmatmul.mubr.bf16.gmra.mrb[0].mxu0 %v484
      %v827 = vpop.f32.mrb[0].mxu0
      %v828 = vadd.f32 0.0, %v827
      %v829 = vpop.f32.mrb[0].mxu0
      %v830 = vadd.f32 0.0, %v829
      %v831 = vpop.f32.mrb[0].mxu0
      %v832 = vadd.f32 0.0, %v831
      %v833 = vpop.f32.mrb[0].mxu0
      %v834 = vadd.f32 0.0, %v833
      %835 = vmatprep.mubr.bf16.mxu0 0
      %836 = vmatmul.mubr.bf16.gmra.mrb[0].mxu0 %v487
      %v837 = vpop.f32.mrb[0].mxu0
      %v838 = vadd.f32 0.0, %v837
      %v839 = vpop.f32.mrb[0].mxu0
      %v840 = vadd.f32 0.0, %v839
      %v841 = vpop.f32.mrb[0].mxu0
      %v842 = vadd.f32 0.0, %v841
      %v843 = vpop.f32.mrb[0].mxu0
      %v844 = vadd.f32 0.0, %v843
      %845 = vmatprep.mubr.bf16.mxu0 0
      %846 = vmatmul.mubr.bf16.gmra.mrb[0].mxu0 %v490
      %v847 = vpop.f32.mrb[0].mxu0
      %v848 = vadd.f32 0.0, %v847
      %v849 = vpop.f32.mrb[0].mxu0
      %v850 = vadd.f32 0.0, %v849
      %v851 = vpop.f32.mrb[0].mxu0
      %v852 = vadd.f32 0.0, %v851
      %v853 = vpop.f32.mrb[0].mxu0
      %v854 = vadd.f32 0.0, %v853
      %855 = vmatprep.mubr.bf16.mxu0 0
      %856 = vmatmul.mubr.bf16.gmra.mrb[0].mxu0 %v493
      %v857 = vpop.f32.mrb[0].mxu0
      %v858 = vadd.f32 0.0, %v857
      %v859 = vpop.f32.mrb[0].mxu0
      %v860 = vadd.f32 0.0, %v859
      %v861 = vpop.f32.mrb[0].mxu0
      %v862 = vadd.f32 0.0, %v861
      %v863 = vpop.f32.mrb[0].mxu0
      %v864 = vadd.f32 0.0, %v863
      %865 = vmatprep.mubr.bf16.mxu0 0
      %866 = vmatmul.mubr.bf16.gmra.mrb[0].mxu0 %v496
      %v867 = vpop.f32.mrb[0].mxu0
      %v868 = vadd.f32 0.0, %v867
      %v869 = vpop.f32.mrb[0].mxu0
      %v870 = vadd.f32 0.0, %v869
      %v871 = vpop.f32.mrb[0].mxu0
      %v872 = vadd.f32 0.0, %v871
      %v873 = vpop.f32.mrb[0].mxu0
      %v874 = vadd.f32 0.0, %v873
      %875 = vmatprep.mubr.bf16.mxu0 0
      %876 = vmatmul.mubr.bf16.gmra.mrb[0].mxu0 %v499
      %v877 = vpop.f32.mrb[0].mxu0
      %v878 = vadd.f32 0.0, %v877
      %v879 = vpop.f32.mrb[0].mxu0
      %v880 = vadd.f32 0.0, %v879
      %v881 = vpop.f32.mrb[0].mxu0
      %v882 = vadd.f32 0.0, %v881
      %v883 = vpop.f32.mrb[0].mxu0
      %v884 = vadd.f32 0.0, %v883
      %885 = vmatprep.mubr.bf16.mxu0 0
      %886 = vmatmul.mubr.bf16.gmra.mrb[0].mxu0 %v502
      %v887 = vpop.f32.mrb[0].mxu0
      %v888 = vadd.f32 0.0, %v887
      %v889 = vpop.f32.mrb[0].mxu0
      %v890 = vadd.f32 0.0, %v889
      %v891 = vpop.f32.mrb[0].mxu0
      %v892 = vadd.f32 0.0, %v891
      %v893 = vpop.f32.mrb[0].mxu0
      %v894 = vadd.f32 0.0, %v893
      %895 = vmatprep.mubr.bf16.mxu0 0
      %896 = vmatmul.mubr.bf16.gmra.mrb[0].mxu0 %v505
      %v897 = vpop.f32.mrb[0].mxu0
      %v898 = vadd.f32 0.0, %v897
      %v899 = vpop.f32.mrb[0].mxu0
      %v900 = vadd.f32 0.0, %v899
      %v901 = vpop.f32.mrb[0].mxu0
      %v902 = vadd.f32 0.0, %v901
      %v903 = vpop.f32.mrb[0].mxu0
      %v904 = vadd.f32 0.0, %v903
      %905 = vmatprep.mubr.bf16.mxu0 0
      %906 = vmatmul.mubr.bf16.gmra.mrb[0].mxu0 %v508
      %v907 = vpop.f32.mrb[0].mxu0
      %v908 = vadd.f32 0.0, %v907
      %v909 = vpop.f32.mrb[0].mxu0
      %v910 = vadd.f32 0.0, %v909
      %v911 = vpop.f32.mrb[0].mxu0
      %v912 = vadd.f32 0.0, %v911
      %v913 = vpop.f32.mrb[0].mxu0
      %v914 = vadd.f32 0.0, %v913
      %915 = vmatprep.mubr.bf16.mxu0 0
      %916 = vmatmul.mubr.bf16.gmra.mrb[0].mxu0 %v511
      %v917 = vpop.f32.mrb[0].mxu0
      %v918 = vadd.f32 0.0, %v917
      %v919 = vpop.f32.mrb[0].mxu0
      %v920 = vadd.f32 0.0, %v919
      %v921 = vpop.f32.mrb[0].mxu0
      %v922 = vadd.f32 0.0, %v921
      %v923 = vpop.f32.mrb[0].mxu0
      %v924 = vadd.f32 0.0, %v923
      %925 = vmatprep.mubr.bf16.mxu0 0
      %926 = vmatmul.mubr.bf16.gmra.mrb[0].mxu0 %v514
      %v927 = vpop.f32.mrb[0].mxu0
      %v928 = vadd.f32 0.0, %v927
      %v929 = vpop.f32.mrb[0].mxu0
      %v930 = vadd.f32 0.0, %v929
      %v931 = vpop.f32.mrb[0].mxu0
      %v932 = vadd.f32 0.0, %v931
      %v933 = vpop.f32.mrb[0].mxu0
      %v934 = vadd.f32 0.0, %v933
      %935 = vmatprep.mubr.bf16.mxu0 0
      %936 = vmatmul.mubr.bf16.gmra.mrb[0].mxu0 %v517
      %v937 = vpop.f32.mrb[0].mxu0
      %v938 = vadd.f32 0.0, %v937
      %v939 = vpop.f32.mrb[0].mxu0
      %v940 = vadd.f32 0.0, %v939
      %v941 = vpop.f32.mrb[0].mxu0
      %v942 = vadd.f32 0.0, %v941
      %v943 = vpop.f32.mrb[0].mxu0
      %v944 = vadd.f32 0.0, %v943
      %945 = vmatprep.mubr.bf16.mxu0 0
      %946 = vmatmul.mubr.bf16.gmra.mrb[0].mxu0 %v520
      %v947 = vpop.f32.mrb[0].mxu0
      %v948 = vadd.f32 0.0, %v947
      %v949 = vpop.f32.mrb[0].mxu0
      %v950 = vadd.f32 0.0, %v949
      %v951 = vpop.f32.mrb[0].mxu0
      %v952 = vadd.f32 0.0, %v951
      %v953 = vpop.f32.mrb[0].mxu0
      %v954 = vadd.f32 0.0, %v953
      %955 = vmatprep.mubr.bf16.mxu0 0
      %956 = vmatmul.mubr.bf16.gmra.mrb[0].mxu0 %v523
      %v957 = vpop.f32.mrb[0].mxu0
      %v958 = vadd.f32 0.0, %v957
      %v959 = vpop.f32.mrb[0].mxu0
      %v960 = vadd.f32 0.0, %v959
      %v961 = vpop.f32.mrb[0].mxu0
      %v962 = vadd.f32 0.0, %v961
      %v963 = vpop.f32.mrb[0].mxu0
      %v964 = vadd.f32 0.0, %v963
      %965 = vmatprep.mubr.bf16.mxu0 0
      %966 = vmatmul.mubr.bf16.gmra.mrb[0].mxu0 %v526
      %v967 = vpop.f32.mrb[0].mxu0
      %v968 = vadd.f32 0.0, %v967
      %v969 = vpop.f32.mrb[0].mxu0
      %v970 = vadd.f32 0.0, %v969
      %v971 = vpop.f32.mrb[0].mxu0
      %v972 = vadd.f32 0.0, %v971
      %v973 = vpop.f32.mrb[0].mxu0
      %v974 = vadd.f32 0.0, %v973
      %975 = vmatprep.mubr.bf16.mxu0 0
      %976 = vmatmul.mubr.bf16.gmra.mrb[0].mxu0 %v529
      %v977 = vpop.f32.mrb[0].mxu0
      %v978 = vadd.f32 0.0, %v977
      %v979 = vpop.f32.mrb[0].mxu0
      %v980 = vadd.f32 0.0, %v979
      %v981 = vpop.f32.mrb[0].mxu0
      %v982 = vadd.f32 0.0, %v981
      %v983 = vpop.f32.mrb[0].mxu0
      %v984 = vadd.f32 0.0, %v983
      %985 = vmatprep.mubr.bf16.mxu0 0
      %986 = vmatmul.mubr.bf16.gmra.mrb[0].mxu0 %v532
      %v987 = vpop.f32.mrb[0].mxu0
      %v988 = vadd.f32 0.0, %v987
      %v989 = vpop.f32.mrb[0].mxu0
      %v990 = vadd.f32 0.0, %v989
      %v991 = vpop.f32.mrb[0].mxu0
      %v992 = vadd.f32 0.0, %v991
      %v993 = vpop.f32.mrb[0].mxu0
      %v994 = vadd.f32 0.0, %v993
      %995 = vmatprep.mubr.bf16.mxu0 0
      %996 = vmatmul.mubr.bf16.gmra.mrb[0].mxu0 %v535
      %v997 = vpop.f32.mrb[0].mxu0
      %v998 = vadd.f32 0.0, %v997
      %v999 = vpop.f32.mrb[0].mxu0
      %v1000 = vadd.f32 0.0, %v999
      %v1001 = vpop.f32.mrb[0].mxu0
      %v1002 = vadd.f32 0.0, %v1001
      %v1003 = vpop.f32.mrb[0].mxu0
      %v1004 = vadd.f32 0.0, %v1003
      %1005 = vmatprep.mubr.bf16.mxu0 0
      %1006 = vmatmul.mubr.bf16.gmra.mrb[0].mxu0 %v538
      %v1007 = vpop.f32.mrb[0].mxu0
      %v1008 = vadd.f32 0.0, %v1007
      %v1009 = vpop.f32.mrb[0].mxu0
      %v1010 = vadd.f32 0.0, %v1009
      %v1011 = vpop.f32.mrb[0].mxu0
      %v1012 = vadd.f32 0.0, %v1011
      %v1013 = vpop.f32.mrb[0].mxu0
      %v1014 = vadd.f32 0.0, %v1013
      %1015 = vmatprep.mubr.bf16.mxu0 0
      %1016 = vmatmul.mubr.bf16.gmra.mrb[0].mxu0 %v541
      %v1017 = vpop.f32.mrb[0].mxu0
      %v1018 = vadd.f32 0.0, %v1017
      %v1019 = vpop.f32.mrb[0].mxu0
      %v1020 = vadd.f32 0.0, %v1019
      %v1021 = vpop.f32.mrb[0].mxu0
      %v1022 = vadd.f32 0.0, %v1021
      %v1023 = vpop.f32.mrb[0].mxu0
      %v1024 = vadd.f32 0.0, %v1023
      %1025 = vmatprep.mubr.bf16.mxu0 0
      %1026 = vmatmul.mubr.bf16.gmra.mrb[0].mxu0 %v544
      %v1027 = vpop.f32.mrb[0].mxu0
      %v1028 = vadd.f32 0.0, %v1027
      %v1029 = vpop.f32.mrb[0].mxu0
      %v1030 = vadd.f32 0.0, %v1029
      %v1031 = vpop.f32.mrb[0].mxu0
      %v1032 = vadd.f32 0.0, %v1031
      %v1033 = vpop.f32.mrb[0].mxu0
      %v1034 = vadd.f32 0.0, %v1033
      %1035 = vmatprep.mubr.bf16.mxu0 0
      %1036 = vmatmul.mubr.bf16.gmra.mrb[0].mxu0 %v547
      %v1037 = vpop.f32.mrb[0].mxu0
      %v1038 = vadd.f32 0.0, %v1037
      %v1039 = vpop.f32.mrb[0].mxu0
      %v1040 = vadd.f32 0.0, %v1039
      %v1041 = vpop.f32.mrb[0].mxu0
      %v1042 = vadd.f32 0.0, %v1041
      %v1043 = vpop.f32.mrb[0].mxu0
      %v1044 = vadd.f32 0.0, %v1043
      %1045 = vmatprep.mubr.bf16.mxu0 0
      %1046 = vmatmul.mubr.bf16.gmra.mrb[0].mxu0 %v550
      %v1047 = vpop.f32.mrb[0].mxu0
      %v1048 = vadd.f32 0.0, %v1047
      %v1049 = vpop.f32.mrb[0].mxu0
      %v1050 = vadd.f32 0.0, %v1049
      %v1051 = vpop.f32.mrb[0].mxu0
      %v1052 = vadd.f32 0.0, %v1051
      %v1053 = vpop.f32.mrb[0].mxu0
      %v1054 = vadd.f32 0.0, %v1053
      %1055 = vmatprep.mubr.bf16.mxu0 0
      %1056 = vmatmul.mubr.bf16.gmra.mrb[0].mxu0 %v553
      %v1057 = vpop.f32.mrb[0].mxu0
      %v1058 = vadd.f32 0.0, %v1057
      %v1059 = vpop.f32.mrb[0].mxu0
      %v1060 = vadd.f32 0.0, %v1059
      %v1061 = vpop.f32.mrb[0].mxu0
      %v1062 = vadd.f32 0.0, %v1061
      %v1063 = vpop.f32.mrb[0].mxu0
      %v1064 = vadd.f32 0.0, %v1063
      %1065 = vmatprep.mubr.bf16.mxu0 0
      %1066 = vmatmul.mubr.bf16.gmra.mrb[0].mxu0 %v556
      %v1067 = vpop.f32.mrb[0].mxu0
      %v1068 = vadd.f32 0.0, %v1067
      %v1069 = vpop.f32.mrb[0].mxu0
      %v1070 = vadd.f32 0.0, %v1069
      %v1071 = vpop.f32.mrb[0].mxu0
      %v1072 = vadd.f32 0.0, %v1071
      %v1073 = vpop.f32.mrb[0].mxu0
      %v1074 = vadd.f32 0.0, %v1073
      %1075 = vmatprep.mubr.bf16.mxu0 0
      %1076 = vmatmul.mubr.bf16.gmra.mrb[0].mxu0 %v559
      %v1077 = vpop.f32.mrb[0].mxu0
      %v1078 = vadd.f32 0.0, %v1077
      %v1079 = vpop.f32.mrb[0].mxu0
      %v1080 = vadd.f32 0.0, %v1079
      %v1081 = vpop.f32.mrb[0].mxu0
      %v1082 = vadd.f32 0.0, %v1081
      %v1083 = vpop.f32.mrb[0].mxu0
      %v1084 = vadd.f32 0.0, %v1083
      %1085 = vmatprep.mubr.bf16.mxu0 0
      %1086 = vmatmul.mubr.bf16.gmra.mrb[0].mxu0 %v562
      %v1087 = vpop.f32.mrb[0].mxu0
      %v1088 = vadd.f32 0.0, %v1087
      %v1089 = vpop.f32.mrb[0].mxu0
      %v1090 = vadd.f32 0.0, %v1089
      %v1091 = vpop.f32.mrb[0].mxu0
      %v1092 = vadd.f32 0.0, %v1091
      %v1093 = vpop.f32.mrb[0].mxu0
      %v1094 = vadd.f32 0.0, %v1093
      %1095 = vmatprep.mubr.bf16.mxu0 0
      %1096 = vmatmul.mubr.bf16.gmra.mrb[0].mxu0 %v565
      %v1097 = vpop.f32.mrb[0].mxu0
      %v1098 = vadd.f32 0.0, %v1097
      %v1099 = vpop.f32.mrb[0].mxu0
      %v1100 = vadd.f32 0.0, %v1099
      %v1101 = vpop.f32.mrb[0].mxu0
      %v1102 = vadd.f32 0.0, %v1101
      %v1103 = vpop.f32.mrb[0].mxu0
      %v1104 = vadd.f32 0.0, %v1103
      %1105 = vmatprep.mubr.bf16.mxu0 0
      %1106 = vmatmul.mubr.bf16.gmra.mrb[0].mxu0 %v568
      %v1107 = vpop.f32.mrb[0].mxu0
      %v1108 = vadd.f32 0.0, %v1107
      %v1109 = vpop.f32.mrb[0].mxu0
      %v1110 = vadd.f32 0.0, %v1109
      %v1111 = vpop.f32.mrb[0].mxu0
      %v1112 = vadd.f32 0.0, %v1111
      %v1113 = vpop.f32.mrb[0].mxu0
      %v1114 = vadd.f32 0.0, %v1113
      %1115 = vmatprep.mubr.bf16.mxu0 0
      %1116 = vmatmul.mubr.bf16.gmra.mrb[0].mxu0 %v571
      %v1117 = vpop.f32.mrb[0].mxu0
      %v1118 = vadd.f32 0.0, %v1117
      %v1119 = vpop.f32.mrb[0].mxu0
      %v1120 = vadd.f32 0.0, %v1119
      %v1121 = vpop.f32.mrb[0].mxu0
      %v1122 = vadd.f32 0.0, %v1121
      %v1123 = vpop.f32.mrb[0].mxu0
      %v1124 = vadd.f32 0.0, %v1123
      %1125 = vmatprep.mubr.bf16.mxu0 0
      %1126 = vmatmul.mubr.bf16.gmra.mrb[0].mxu0 %v574
      %v1127 = vpop.f32.mrb[0].mxu0
      %v1128 = vadd.f32 0.0, %v1127
      %v1129 = vpop.f32.mrb[0].mxu0
      %v1130 = vadd.f32 0.0, %v1129
      %v1131 = vpop.f32.mrb[0].mxu0
      %v1132 = vadd.f32 0.0, %v1131
      %v1133 = vpop.f32.mrb[0].mxu0
      %v1134 = vadd.f32 0.0, %v1133
      %1135 = vmatprep.mubr.bf16.mxu0 0
      %1136 = vmatmul.mubr.bf16.gmra.mrb[0].mxu0 %v577
      %v1137 = vpop.f32.mrb[0].mxu0
      %v1138 = vadd.f32 0.0, %v1137
      %v1139 = vpop.f32.mrb[0].mxu0
      %v1140 = vadd.f32 0.0, %v1139
      %v1141 = vpop.f32.mrb[0].mxu0
      %v1142 = vadd.f32 0.0, %v1141
      %v1143 = vpop.f32.mrb[0].mxu0
      %v1144 = vadd.f32 0.0, %v1143
      %1145 = vmatprep.mubr.bf16.mxu0 0
      %1146 = vmatmul.mubr.bf16.gmra.mrb[0].mxu0 %v580
      %v1147 = vpop.f32.mrb[0].mxu0
      %v1148 = vadd.f32 0.0, %v1147
      %v1149 = vpop.f32.mrb[0].mxu0
      %v1150 = vadd.f32 0.0, %v1149
      %v1151 = vpop.f32.mrb[0].mxu0
      %v1152 = vadd.f32 0.0, %v1151
      %v1153 = vpop.f32.mrb[0].mxu0
      %v1154 = vadd.f32 0.0, %v1153
      %1155 = vmatprep.mubr.bf16.mxu0 0
      %1156 = vmatmul.mubr.bf16.gmra.mrb[0].mxu0 %v583
      %v1157 = vpop.f32.mrb[0].mxu0
      %v1158 = vadd.f32 0.0, %v1157
      %v1159 = vpop.f32.mrb[0].mxu0
      %v1160 = vadd.f32 0.0, %v1159
      %v1161 = vpop.f32.mrb[0].mxu0
      %v1162 = vadd.f32 0.0, %v1161
      %v1163 = vpop.f32.mrb[0].mxu0
      %v1164 = vadd.f32 0.0, %v1163
      %1165 = vmatprep.mubr.bf16.mxu0 0
      %1166 = vmatmul.mubr.bf16.gmra.mrb[0].mxu0 %v586
      %v1167 = vpop.f32.mrb[0].mxu0
      %v1168 = vadd.f32 0.0, %v1167
      %v1169 = vpop.f32.mrb[0].mxu0
      %v1170 = vadd.f32 0.0, %v1169
      %v1171 = vpop.f32.mrb[0].mxu0
      %v1172 = vadd.f32 0.0, %v1171
      %v1173 = vpop.f32.mrb[0].mxu0
      %v1174 = vadd.f32 0.0, %v1173
      %1175 = vmatprep.mubr.bf16.mxu0 0
      %1176 = vmatmul.mubr.bf16.gmra.mrb[0].mxu0 %v589
      %v1177 = vpop.f32.mrb[0].mxu0
      %v1178 = vadd.f32 0.0, %v1177
      %v1179 = vpop.f32.mrb[0].mxu0
      %v1180 = vadd.f32 0.0, %v1179
      %v1181 = vpop.f32.mrb[0].mxu0
      %v1182 = vadd.f32 0.0, %v1181
      %v1183 = vpop.f32.mrb[0].mxu0
      %v1184 = vadd.f32 0.0, %v1183
      %1185 = vmatprep.mubr.bf16.mxu0 0
      %1186 = vmatmul.mubr.bf16.gmra.mrb[0].mxu0 %v592
      %v1187 = vpop.f32.mrb[0].mxu0
      %v1188 = vadd.f32 0.0, %v1187
      %v1189 = vpop.f32.mrb[0].mxu0
      %v1190 = vadd.f32 0.0, %v1189
      %v1191 = vpop.f32.mrb[0].mxu0
      %v1192 = vadd.f32 0.0, %v1191
      %v1193 = vpop.f32.mrb[0].mxu0
      %v1194 = vadd.f32 0.0, %v1193
      %1195 = vmatprep.mubr.bf16.mxu0 0
      %1196 = vmatmul.mubr.bf16.gmra.mrb[0].mxu0 %v595
      %v1197 = vpop.f32.mrb[0].mxu0
      %v1198 = vadd.f32 0.0, %v1197
      %v1199 = vpop.f32.mrb[0].mxu0
      %v1200 = vadd.f32 0.0, %v1199
      %v1201 = vpop.f32.mrb[0].mxu0
      %v1202 = vadd.f32 0.0, %v1201
      %v1203 = vpop.f32.mrb[0].mxu0
      %v1204 = vadd.f32 0.0, %v1203
      %1205 = vmatprep.mubr.bf16.mxu0 0
      %1206 = vmatmul.mubr.bf16.gmra.mrb[0].mxu0 %v598
      %v1207 = vpop.f32.mrb[0].mxu0
      %v1208 = vadd.f32 0.0, %v1207
      %v1209 = vpop.f32.mrb[0].mxu0
      %v1210 = vadd.f32 0.0, %v1209
      %v1211 = vpop.f32.mrb[0].mxu0
      %v1212 = vadd.f32 0.0, %v1211
      %v1213 = vpop.f32.mrb[0].mxu0
      %v1214 = vadd.f32 0.0, %v1213
      %1215 = vmatprep.mubr.bf16.mxu0 0
      %1216 = vmatmul.mubr.bf16.gmra.mrb[0].mxu0 %v601
      %v1217 = vpop.f32.mrb[0].mxu0
      %v1218 = vadd.f32 0.0, %v1217
      %v1219 = vpop.f32.mrb[0].mxu0
      %v1220 = vadd.f32 0.0, %v1219
      %v1221 = vpop.f32.mrb[0].mxu0
      %v1222 = vadd.f32 0.0, %v1221
      %v1223 = vpop.f32.mrb[0].mxu0
      %v1224 = vadd.f32 0.0, %v1223
      %1225 = vmatprep.mubr.bf16.mxu0 0
      %1226 = vmatmul.mubr.bf16.gmra.mrb[0].mxu0 %v604
      %v1227 = vpop.f32.mrb[0].mxu0
      %v1228 = vadd.f32 0.0, %v1227
      %v1229 = vpop.f32.mrb[0].mxu0
      %v1230 = vadd.f32 0.0, %v1229
      %v1231 = vpop.f32.mrb[0].mxu0
      %v1232 = vadd.f32 0.0, %v1231
      %v1233 = vpop.f32.mrb[0].mxu0
      %v1234 = vadd.f32 0.0, %v1233
      %1235 = vmatprep.mubr.bf16.mxu0 0
      %1236 = vmatmul.mubr.bf16.gmra.mrb[0].mxu0 %v607
      %v1237 = vpop.f32.mrb[0].mxu0
      %v1238 = vadd.f32 0.0, %v1237
      %v1239 = vpop.f32.mrb[0].mxu0
      %v1240 = vadd.f32 0.0, %v1239
      %v1241 = vpop.f32.mrb[0].mxu0
      %v1242 = vadd.f32 0.0, %v1241
      %v1243 = vpop.f32.mrb[0].mxu0
      %v1244 = vadd.f32 0.0, %v1243
      %1245 = vmatprep.mubr.bf16.mxu0 0
      %1246 = vmatmul.mubr.bf16.gmra.mrb[0].mxu0 %v610
      %v1247 = vpop.f32.mrb[0].mxu0
      %v1248 = vadd.f32 0.0, %v1247
      %v1249 = vpop.f32.mrb[0].mxu0
      %v1250 = vadd.f32 0.0, %v1249
      %v1251 = vpop.f32.mrb[0].mxu0
      %v1252 = vadd.f32 0.0, %v1251
      %v1253 = vpop.f32.mrb[0].mxu0
      %v1254 = vadd.f32 0.0, %v1253
      %1255 = vmatprep.mubr.bf16.mxu0 0
      %1256 = vmatmul.mubr.bf16.gmra.mrb[0].mxu0 %v613
      %v1257 = vpop.f32.mrb[0].mxu0
      %v1258 = vadd.f32 0.0, %v1257
      %v1259 = vpop.f32.mrb[0].mxu0
      %v1260 = vadd.f32 0.0, %v1259
      %v1261 = vpop.f32.mrb[0].mxu0
      %v1262 = vadd.f32 0.0, %v1261
      %v1263 = vpop.f32.mrb[0].mxu0
      %v1264 = vadd.f32 0.0, %v1263
      %1265 = vmatprep.mubr.bf16.mxu0 0
      %1266 = vmatmul.mubr.bf16.gmra.mrb[0].mxu0 %v616
      %v1267 = vpop.f32.mrb[0].mxu0
      %v1268 = vadd.f32 0.0, %v1267
      %v1269 = vpop.f32.mrb[0].mxu0
      %v1270 = vadd.f32 0.0, %v1269
      %v1271 = vpop.f32.mrb[0].mxu0
      %v1272 = vadd.f32 0.0, %v1271
      %v1273 = vpop.f32.mrb[0].mxu0
      %v1274 = vadd.f32 0.0, %v1273
      %1275 = vmatprep.mubr.bf16.mxu0 0
      %1276 = vmatmul.mubr.bf16.gmra.mrb[0].mxu0 %v619
      %v1277 = vpop.f32.mrb[0].mxu0
      %v1278 = vadd.f32 0.0, %v1277
      %v1279 = vpop.f32.mrb[0].mxu0
      %v1280 = vadd.f32 0.0, %v1279
      %v1281 = vpop.f32.mrb[0].mxu0
      %v1282 = vadd.f32 0.0, %v1281
      %v1283 = vpop.f32.mrb[0].mxu0
      %v1284 = vadd.f32 0.0, %v1283
      %1285 = vmatprep.mubr.bf16.mxu0 0
      %1286 = vmatmul.mubr.bf16.gmra.mrb[0].mxu0 %v622
      %v1287 = vpop.f32.mrb[0].mxu0
      %v1288 = vadd.f32 0.0, %v1287
      %v1289 = vpop.f32.mrb[0].mxu0
      %v1290 = vadd.f32 0.0, %v1289
      %v1291 = vpop.f32.mrb[0].mxu0
      %v1292 = vadd.f32 0.0, %v1291
      %v1293 = vpop.f32.mrb[0].mxu0
      %v1294 = vadd.f32 0.0, %v1293
      %1295 = vmatprep.mubr.bf16.mxu0 0
      %1296 = vmatmul.mubr.bf16.gmra.mrb[0].mxu0 %v625
      %v1297 = vpop.f32.mrb[0].mxu0
      %v1298 = vadd.f32 0.0, %v1297
      %v1299 = vpop.f32.mrb[0].mxu0
      %v1300 = vadd.f32 0.0, %v1299
      %v1301 = vpop.f32.mrb[0].mxu0
      %v1302 = vadd.f32 0.0, %v1301
      %v1303 = vpop.f32.mrb[0].mxu0
      %v1304 = vadd.f32 0.0, %v1303
      %1305 = vmatprep.mubr.bf16.mxu0 0
      %1306 = vmatmul.mubr.bf16.gmra.mrb[0].mxu0 %v628
      %v1307 = vpop.f32.mrb[0].mxu0
      %v1308 = vadd.f32 0.0, %v1307
      %v1309 = vpop.f32.mrb[0].mxu0
      %v1310 = vadd.f32 0.0, %v1309
      %v1311 = vpop.f32.mrb[0].mxu0
      %v1312 = vadd.f32 0.0, %v1311
      %v1313 = vpop.f32.mrb[0].mxu0
      %v1314 = vadd.f32 0.0, %v1313
      %1315 = vdwg.mxu0
      %1316 = vmatprep.subr.bf16.mxu0 %v641
      %1317 = vmatpush1.bf16.msra.mxu0 %v638
      %1318 = vmatprep.subr.bf16.mxu0 0
      %1319 = vmatpush1.bf16.msra.mxu0 0
      %1320 = vmatprep.subr.bf16.mxu0 0
      %1321 = vmatpush1.bf16.msra.mxu0 0
      %1322 = vmatprep.subr.bf16.mxu0 0
      %1323 = vmatpush1.bf16.msra.mxu0 0
      %1324 = vmatprep.subr.bf16.mxu0 0
      %1325 = vmatpush1.bf16.msra.mxu0 0
      %1326 = vmatprep.subr.bf16.mxu0 0
      %1327 = vmatpush1.bf16.msra.mxu0 0
      %1328 = vmatprep.subr.bf16.mxu0 0
      %1329 = vmatpush1.bf16.msra.mxu0 0
      %1330 = vmatprep.subr.bf16.mxu0 0
      %1331 = vmatpush1.bf16.msra.mxu0 0
      %1332 = vmatprep.subr.bf16.mxu0 0
      %1333 = vmatpush1.bf16.msra.mxu0 0
      %1334 = vmatprep.subr.bf16.mxu0 0
      %1335 = vmatpush1.bf16.msra.mxu0 0
      %1336 = vmatprep.subr.bf16.mxu0 0
      %1337 = vmatpush1.bf16.msra.mxu0 0
      %1338 = vmatprep.subr.bf16.mxu0 0
      %1339 = vmatpush1.bf16.msra.mxu0 0
      %1340 = vmatprep.subr.bf16.mxu0 0
      %1341 = vmatpush1.bf16.msra.mxu0 0
      %1342 = vmatprep.subr.bf16.mxu0 0
      %1343 = vmatpush1.bf16.msra.mxu0 0
      %1344 = vmatprep.subr.bf16.mxu0 0
      %1345 = vmatpush1.bf16.msra.mxu0 0
      %1346 = vmatprep.subr.bf16.mxu0 0
      %1347 = vmatpush1.bf16.msra.mxu0 0
      %1348 = vmatprep.mubr.bf16.mxu0 0
      %1349 = vmatmul.mubr.bf16.gmra.mrb[0].mxu0 %v439
      %v1350 = vpop.f32.mrb[0].mxu0
      %v1351 = vadd.f32 0.0, %v1350
      %v1352 = vpop.f32.mrb[0].mxu0
      %v1353 = vadd.f32 0.0, %v1352
      %v1354 = vpop.f32.mrb[0].mxu0
      %v1355 = vadd.f32 0.0, %v1354
      %v1356 = vpop.f32.mrb[0].mxu0
      %v1357 = vadd.f32 0.0, %v1356
      %1358 = vmatprep.mubr.bf16.mxu0 0
      %1359 = vmatmul.mubr.bf16.gmra.mrb[0].mxu0 %v442
      %v1360 = vpop.f32.mrb[0].mxu0
      %v1361 = vadd.f32 0.0, %v1360
      %v1362 = vpop.f32.mrb[0].mxu0
      %v1363 = vadd.f32 0.0, %v1362
      %v1364 = vpop.f32.mrb[0].mxu0
      %v1365 = vadd.f32 0.0, %v1364
      %v1366 = vpop.f32.mrb[0].mxu0
      %v1367 = vadd.f32 0.0, %v1366
      %1368 = vmatprep.mubr.bf16.mxu0 0
      %1369 = vmatmul.mubr.bf16.gmra.mrb[0].mxu0 %v445
      %v1370 = vpop.f32.mrb[0].mxu0
      %v1371 = vadd.f32 0.0, %v1370
      %v1372 = vpop.f32.mrb[0].mxu0
      %v1373 = vadd.f32 0.0, %v1372
      %v1374 = vpop.f32.mrb[0].mxu0
      %v1375 = vadd.f32 0.0, %v1374
      %v1376 = vpop.f32.mrb[0].mxu0
      %v1377 = vadd.f32 0.0, %v1376
      %1378 = vmatprep.mubr.bf16.mxu0 0
      %1379 = vmatmul.mubr.bf16.gmra.mrb[0].mxu0 %v448
      %v1380 = vpop.f32.mrb[0].mxu0
      %v1381 = vadd.f32 0.0, %v1380
      %v1382 = vpop.f32.mrb[0].mxu0
      %v1383 = vadd.f32 0.0, %v1382
      %v1384 = vpop.f32.mrb[0].mxu0
      %v1385 = vadd.f32 0.0, %v1384
      %v1386 = vpop.f32.mrb[0].mxu0
      %v1387 = vadd.f32 0.0, %v1386
      %1388 = vmatprep.mubr.bf16.mxu0 0
      %1389 = vmatmul.mubr.bf16.gmra.mrb[0].mxu0 %v451
      %v1390 = vpop.f32.mrb[0].mxu0
      %v1391 = vadd.f32 0.0, %v1390
      %v1392 = vpop.f32.mrb[0].mxu0
      %v1393 = vadd.f32 0.0, %v1392
      %v1394 = vpop.f32.mrb[0].mxu0
      %v1395 = vadd.f32 0.0, %v1394
      %v1396 = vpop.f32.mrb[0].mxu0
      %v1397 = vadd.f32 0.0, %v1396
      %1398 = vmatprep.mubr.bf16.mxu0 0
      %1399 = vmatmul.mubr.bf16.gmra.mrb[0].mxu0 %v454
      %v1400 = vpop.f32.mrb[0].mxu0
      %v1401 = vadd.f32 0.0, %v1400
      %v1402 = vpop.f32.mrb[0].mxu0
      %v1403 = vadd.f32 0.0, %v1402
      %v1404 = vpop.f32.mrb[0].mxu0
      %v1405 = vadd.f32 0.0, %v1404
      %v1406 = vpop.f32.mrb[0].mxu0
      %v1407 = vadd.f32 0.0, %v1406
      %1408 = vmatprep.mubr.bf16.mxu0 0
      %1409 = vmatmul.mubr.bf16.gmra.mrb[0].mxu0 %v457
      %v1410 = vpop.f32.mrb[0].mxu0
      %v1411 = vadd.f32 0.0, %v1410
      %v1412 = vpop.f32.mrb[0].mxu0
      %v1413 = vadd.f32 0.0, %v1412
      %v1414 = vpop.f32.mrb[0].mxu0
      %v1415 = vadd.f32 0.0, %v1414
      %v1416 = vpop.f32.mrb[0].mxu0
      %v1417 = vadd.f32 0.0, %v1416
      %1418 = vmatprep.mubr.bf16.mxu0 0
      %1419 = vmatmul.mubr.bf16.gmra.mrb[0].mxu0 %v460
      %v1420 = vpop.f32.mrb[0].mxu0
      %v1421 = vadd.f32 0.0, %v1420
      %v1422 = vpop.f32.mrb[0].mxu0
      %v1423 = vadd.f32 0.0, %v1422
      %v1424 = vpop.f32.mrb[0].mxu0
      %v1425 = vadd.f32 0.0, %v1424
      %v1426 = vpop.f32.mrb[0].mxu0
      %v1427 = vadd.f32 0.0, %v1426
      %1428 = vmatprep.mubr.bf16.mxu0 0
      %1429 = vmatmul.mubr.bf16.gmra.mrb[0].mxu0 %v463
      %v1430 = vpop.f32.mrb[0].mxu0
      %v1431 = vadd.f32 0.0, %v1430
      %v1432 = vpop.f32.mrb[0].mxu0
      %v1433 = vadd.f32 0.0, %v1432
      %v1434 = vpop.f32.mrb[0].mxu0
      %v1435 = vadd.f32 0.0, %v1434
      %v1436 = vpop.f32.mrb[0].mxu0
      %v1437 = vadd.f32 0.0, %v1436
      %1438 = vmatprep.mubr.bf16.mxu0 0
      %1439 = vmatmul.mubr.bf16.gmra.mrb[0].mxu0 %v466
      %v1440 = vpop.f32.mrb[0].mxu0
      %v1441 = vadd.f32 0.0, %v1440
      %v1442 = vpop.f32.mrb[0].mxu0
      %v1443 = vadd.f32 0.0, %v1442
      %v1444 = vpop.f32.mrb[0].mxu0
      %v1445 = vadd.f32 0.0, %v1444
      %v1446 = vpop.f32.mrb[0].mxu0
      %v1447 = vadd.f32 0.0, %v1446
      %1448 = vmatprep.mubr.bf16.mxu0 0
      %1449 = vmatmul.mubr.bf16.gmra.mrb[0].mxu0 %v469
      %v1450 = vpop.f32.mrb[0].mxu0
      %v1451 = vadd.f32 0.0, %v1450
      %v1452 = vpop.f32.mrb[0].mxu0
      %v1453 = vadd.f32 0.0, %v1452
      %v1454 = vpop.f32.mrb[0].mxu0
      %v1455 = vadd.f32 0.0, %v1454
      %v1456 = vpop.f32.mrb[0].mxu0
      %v1457 = vadd.f32 0.0, %v1456
      %1458 = vmatprep.mubr.bf16.mxu0 0
      %1459 = vmatmul.mubr.bf16.gmra.mrb[0].mxu0 %v472
      %v1460 = vpop.f32.mrb[0].mxu0
      %v1461 = vadd.f32 0.0, %v1460
      %v1462 = vpop.f32.mrb[0].mxu0
      %v1463 = vadd.f32 0.0, %v1462
      %v1464 = vpop.f32.mrb[0].mxu0
      %v1465 = vadd.f32 0.0, %v1464
      %v1466 = vpop.f32.mrb[0].mxu0
      %v1467 = vadd.f32 0.0, %v1466
      %1468 = vmatprep.mubr.bf16.mxu0 0
      %1469 = vmatmul.mubr.bf16.gmra.mrb[0].mxu0 %v475
      %v1470 = vpop.f32.mrb[0].mxu0
      %v1471 = vadd.f32 0.0, %v1470
      %v1472 = vpop.f32.mrb[0].mxu0
      %v1473 = vadd.f32 0.0, %v1472
      %v1474 = vpop.f32.mrb[0].mxu0
      %v1475 = vadd.f32 0.0, %v1474
      %v1476 = vpop.f32.mrb[0].mxu0
      %v1477 = vadd.f32 0.0, %v1476
      %1478 = vmatprep.mubr.bf16.mxu0 0
      %1479 = vmatmul.mubr.bf16.gmra.mrb[0].mxu0 %v478
      %v1480 = vpop.f32.mrb[0].mxu0
      %v1481 = vadd.f32 0.0, %v1480
      %v1482 = vpop.f32.mrb[0].mxu0
      %v1483 = vadd.f32 0.0, %v1482
      %v1484 = vpop.f32.mrb[0].mxu0
      %v1485 = vadd.f32 0.0, %v1484
      %v1486 = vpop.f32.mrb[0].mxu0
      %v1487 = vadd.f32 0.0, %v1486
      %1488 = vmatprep.mubr.bf16.mxu0 0
      %1489 = vmatmul.mubr.bf16.gmra.mrb[0].mxu0 %v481
      %v1490 = vpop.f32.mrb[0].mxu0
      %v1491 = vadd.f32 0.0, %v1490
      %v1492 = vpop.f32.mrb[0].mxu0
      %v1493 = vadd.f32 0.0, %v1492
      %v1494 = vpop.f32.mrb[0].mxu0
      %v1495 = vadd.f32 0.0, %v1494
      %v1496 = vpop.f32.mrb[0].mxu0
      %v1497 = vadd.f32 0.0, %v1496
      %1498 = vmatprep.mubr.bf16.mxu0 0
      %1499 = vmatmul.mubr.bf16.gmra.mrb[0].mxu0 %v484
      %v1500 = vpop.f32.mrb[0].mxu0
      %v1501 = vadd.f32 0.0, %v1500
      %v1502 = vpop.f32.mrb[0].mxu0
      %v1503 = vadd.f32 0.0, %v1502
      %v1504 = vpop.f32.mrb[0].mxu0
      %v1505 = vadd.f32 0.0, %v1504
      %v1506 = vpop.f32.mrb[0].mxu0
      %v1507 = vadd.f32 0.0, %v1506
      %1508 = vmatprep.mubr.bf16.mxu0 0
      %1509 = vmatmul.mubr.bf16.gmra.mrb[0].mxu0 %v487
      %v1510 = vpop.f32.mrb[0].mxu0
      %v1511 = vadd.f32 0.0, %v1510
      %v1512 = vpop.f32.mrb[0].mxu0
      %v1513 = vadd.f32 0.0, %v1512
      %v1514 = vpop.f32.mrb[0].mxu0
      %v1515 = vadd.f32 0.0, %v1514
      %v1516 = vpop.f32.mrb[0].mxu0
      %v1517 = vadd.f32 0.0, %v1516
      %1518 = vmatprep.mubr.bf16.mxu0 0
      %1519 = vmatmul.mubr.bf16.gmra.mrb[0].mxu0 %v490
      %v1520 = vpop.f32.mrb[0].mxu0
      %v1521 = vadd.f32 0.0, %v1520
      %v1522 = vpop.f32.mrb[0].mxu0
      %v1523 = vadd.f32 0.0, %v1522
      %v1524 = vpop.f32.mrb[0].mxu0
      %v1525 = vadd.f32 0.0, %v1524
      %v1526 = vpop.f32.mrb[0].mxu0
      %v1527 = vadd.f32 0.0, %v1526
      %1528 = vmatprep.mubr.bf16.mxu0 0
      %1529 = vmatmul.mubr.bf16.gmra.mrb[0].mxu0 %v493
      %v1530 = vpop.f32.mrb[0].mxu0
      %v1531 = vadd.f32 0.0, %v1530
      %v1532 = vpop.f32.mrb[0].mxu0
      %v1533 = vadd.f32 0.0, %v1532
      %v1534 = vpop.f32.mrb[0].mxu0
      %v1535 = vadd.f32 0.0, %v1534
      %v1536 = vpop.f32.mrb[0].mxu0
      %v1537 = vadd.f32 0.0, %v1536
      %1538 = vmatprep.mubr.bf16.mxu0 0
      %1539 = vmatmul.mubr.bf16.gmra.mrb[0].mxu0 %v496
      %v1540 = vpop.f32.mrb[0].mxu0
      %v1541 = vadd.f32 0.0, %v1540
      %v1542 = vpop.f32.mrb[0].mxu0
      %v1543 = vadd.f32 0.0, %v1542
      %v1544 = vpop.f32.mrb[0].mxu0
      %v1545 = vadd.f32 0.0, %v1544
      %v1546 = vpop.f32.mrb[0].mxu0
      %v1547 = vadd.f32 0.0, %v1546
      %1548 = vmatprep.mubr.bf16.mxu0 0
      %1549 = vmatmul.mubr.bf16.gmra.mrb[0].mxu0 %v499
      %v1550 = vpop.f32.mrb[0].mxu0
      %v1551 = vadd.f32 0.0, %v1550
      %v1552 = vpop.f32.mrb[0].mxu0
      %v1553 = vadd.f32 0.0, %v1552
      %v1554 = vpop.f32.mrb[0].mxu0
      %v1555 = vadd.f32 0.0, %v1554
      %v1556 = vpop.f32.mrb[0].mxu0
      %v1557 = vadd.f32 0.0, %v1556
      %1558 = vmatprep.mubr.bf16.mxu0 0
      %1559 = vmatmul.mubr.bf16.gmra.mrb[0].mxu0 %v502
      %v1560 = vpop.f32.mrb[0].mxu0
      %v1561 = vadd.f32 0.0, %v1560
      %v1562 = vpop.f32.mrb[0].mxu0
      %v1563 = vadd.f32 0.0, %v1562
      %v1564 = vpop.f32.mrb[0].mxu0
      %v1565 = vadd.f32 0.0, %v1564
      %v1566 = vpop.f32.mrb[0].mxu0
      %v1567 = vadd.f32 0.0, %v1566
      %1568 = vmatprep.mubr.bf16.mxu0 0
      %1569 = vmatmul.mubr.bf16.gmra.mrb[0].mxu0 %v505
      %v1570 = vpop.f32.mrb[0].mxu0
      %v1571 = vadd.f32 0.0, %v1570
      %v1572 = vpop.f32.mrb[0].mxu0
      %v1573 = vadd.f32 0.0, %v1572
      %v1574 = vpop.f32.mrb[0].mxu0
      %v1575 = vadd.f32 0.0, %v1574
      %v1576 = vpop.f32.mrb[0].mxu0
      %v1577 = vadd.f32 0.0, %v1576
      %1578 = vmatprep.mubr.bf16.mxu0 0
      %1579 = vmatmul.mubr.bf16.gmra.mrb[0].mxu0 %v508
      %v1580 = vpop.f32.mrb[0].mxu0
      %v1581 = vadd.f32 0.0, %v1580
      %v1582 = vpop.f32.mrb[0].mxu0
      %v1583 = vadd.f32 0.0, %v1582
      %v1584 = vpop.f32.mrb[0].mxu0
      %v1585 = vadd.f32 0.0, %v1584
      %v1586 = vpop.f32.mrb[0].mxu0
      %v1587 = vadd.f32 0.0, %v1586
      %1588 = vmatprep.mubr.bf16.mxu0 0
      %1589 = vmatmul.mubr.bf16.gmra.mrb[0].mxu0 %v511
      %v1590 = vpop.f32.mrb[0].mxu0
      %v1591 = vadd.f32 0.0, %v1590
      %v1592 = vpop.f32.mrb[0].mxu0
      %v1593 = vadd.f32 0.0, %v1592
      %v1594 = vpop.f32.mrb[0].mxu0
      %v1595 = vadd.f32 0.0, %v1594
      %v1596 = vpop.f32.mrb[0].mxu0
      %v1597 = vadd.f32 0.0, %v1596
      %1598 = vmatprep.mubr.bf16.mxu0 0
      %1599 = vmatmul.mubr.bf16.gmra.mrb[0].mxu0 %v514
      %v1600 = vpop.f32.mrb[0].mxu0
      %v1601 = vadd.f32 0.0, %v1600
      %v1602 = vpop.f32.mrb[0].mxu0
      %v1603 = vadd.f32 0.0, %v1602
      %v1604 = vpop.f32.mrb[0].mxu0
      %v1605 = vadd.f32 0.0, %v1604
      %v1606 = vpop.f32.mrb[0].mxu0
      %v1607 = vadd.f32 0.0, %v1606
      %1608 = vmatprep.mubr.bf16.mxu0 0
      %1609 = vmatmul.mubr.bf16.gmra.mrb[0].mxu0 %v517
      %v1610 = vpop.f32.mrb[0].mxu0
      %v1611 = vadd.f32 0.0, %v1610
      %v1612 = vpop.f32.mrb[0].mxu0
      %v1613 = vadd.f32 0.0, %v1612
      %v1614 = vpop.f32.mrb[0].mxu0
      %v1615 = vadd.f32 0.0, %v1614
      %v1616 = vpop.f32.mrb[0].mxu0
      %v1617 = vadd.f32 0.0, %v1616
      %1618 = vmatprep.mubr.bf16.mxu0 0
      %1619 = vmatmul.mubr.bf16.gmra.mrb[0].mxu0 %v520
      %v1620 = vpop.f32.mrb[0].mxu0
      %v1621 = vadd.f32 0.0, %v1620
      %v1622 = vpop.f32.mrb[0].mxu0
      %v1623 = vadd.f32 0.0, %v1622
      %v1624 = vpop.f32.mrb[0].mxu0
      %v1625 = vadd.f32 0.0, %v1624
      %v1626 = vpop.f32.mrb[0].mxu0
      %v1627 = vadd.f32 0.0, %v1626
      %1628 = vmatprep.mubr.bf16.mxu0 0
      %1629 = vmatmul.mubr.bf16.gmra.mrb[0].mxu0 %v523
      %v1630 = vpop.f32.mrb[0].mxu0
      %v1631 = vadd.f32 0.0, %v1630
      %v1632 = vpop.f32.mrb[0].mxu0
      %v1633 = vadd.f32 0.0, %v1632
      %v1634 = vpop.f32.mrb[0].mxu0
      %v1635 = vadd.f32 0.0, %v1634
      %v1636 = vpop.f32.mrb[0].mxu0
      %v1637 = vadd.f32 0.0, %v1636
      %1638 = vmatprep.mubr.bf16.mxu0 0
      %1639 = vmatmul.mubr.bf16.gmra.mrb[0].mxu0 %v526
      %v1640 = vpop.f32.mrb[0].mxu0
      %v1641 = vadd.f32 0.0, %v1640
      %v1642 = vpop.f32.mrb[0].mxu0
      %v1643 = vadd.f32 0.0, %v1642
      %v1644 = vpop.f32.mrb[0].mxu0
      %v1645 = vadd.f32 0.0, %v1644
      %v1646 = vpop.f32.mrb[0].mxu0
      %v1647 = vadd.f32 0.0, %v1646
      %1648 = vmatprep.mubr.bf16.mxu0 0
      %1649 = vmatmul.mubr.bf16.gmra.mrb[0].mxu0 %v529
      %v1650 = vpop.f32.mrb[0].mxu0
      %v1651 = vadd.f32 0.0, %v1650
      %v1652 = vpop.f32.mrb[0].mxu0
      %v1653 = vadd.f32 0.0, %v1652
      %v1654 = vpop.f32.mrb[0].mxu0
      %v1655 = vadd.f32 0.0, %v1654
      %v1656 = vpop.f32.mrb[0].mxu0
      %v1657 = vadd.f32 0.0, %v1656
      %1658 = vmatprep.mubr.bf16.mxu0 0
      %1659 = vmatmul.mubr.bf16.gmra.mrb[0].mxu0 %v532
      %v1660 = vpop.f32.mrb[0].mxu0
      %v1661 = vadd.f32 0.0, %v1660
      %v1662 = vpop.f32.mrb[0].mxu0
      %v1663 = vadd.f32 0.0, %v1662
      %v1664 = vpop.f32.mrb[0].mxu0
      %v1665 = vadd.f32 0.0, %v1664
      %v1666 = vpop.f32.mrb[0].mxu0
      %v1667 = vadd.f32 0.0, %v1666
      %1668 = vmatprep.mubr.bf16.mxu0 0
      %1669 = vmatmul.mubr.bf16.gmra.mrb[0].mxu0 %v535
      %v1670 = vpop.f32.mrb[0].mxu0
      %v1671 = vadd.f32 0.0, %v1670
      %v1672 = vpop.f32.mrb[0].mxu0
      %v1673 = vadd.f32 0.0, %v1672
      %v1674 = vpop.f32.mrb[0].mxu0
      %v1675 = vadd.f32 0.0, %v1674
      %v1676 = vpop.f32.mrb[0].mxu0
      %v1677 = vadd.f32 0.0, %v1676
      %1678 = vmatprep.mubr.bf16.mxu0 0
      %1679 = vmatmul.mubr.bf16.gmra.mrb[0].mxu0 %v538
      %v1680 = vpop.f32.mrb[0].mxu0
      %v1681 = vadd.f32 0.0, %v1680
      %v1682 = vpop.f32.mrb[0].mxu0
      %v1683 = vadd.f32 0.0, %v1682
      %v1684 = vpop.f32.mrb[0].mxu0
      %v1685 = vadd.f32 0.0, %v1684
      %v1686 = vpop.f32.mrb[0].mxu0
      %v1687 = vadd.f32 0.0, %v1686
      %1688 = vmatprep.mubr.bf16.mxu0 0
      %1689 = vmatmul.mubr.bf16.gmra.mrb[0].mxu0 %v541
      %v1690 = vpop.f32.mrb[0].mxu0
      %v1691 = vadd.f32 0.0, %v1690
      %v1692 = vpop.f32.mrb[0].mxu0
      %v1693 = vadd.f32 0.0, %v1692
      %v1694 = vpop.f32.mrb[0].mxu0
      %v1695 = vadd.f32 0.0, %v1694
      %v1696 = vpop.f32.mrb[0].mxu0
      %v1697 = vadd.f32 0.0, %v1696
      %1698 = vmatprep.mubr.bf16.mxu0 0
      %1699 = vmatmul.mubr.bf16.gmra.mrb[0].mxu0 %v544
      %v1700 = vpop.f32.mrb[0].mxu0
      %v1701 = vadd.f32 0.0, %v1700
      %v1702 = vpop.f32.mrb[0].mxu0
      %v1703 = vadd.f32 0.0, %v1702
      %v1704 = vpop.f32.mrb[0].mxu0
      %v1705 = vadd.f32 0.0, %v1704
      %v1706 = vpop.f32.mrb[0].mxu0
      %v1707 = vadd.f32 0.0, %v1706
      %1708 = vmatprep.mubr.bf16.mxu0 0
      %1709 = vmatmul.mubr.bf16.gmra.mrb[0].mxu0 %v547
      %v1710 = vpop.f32.mrb[0].mxu0
      %v1711 = vadd.f32 0.0, %v1710
      %v1712 = vpop.f32.mrb[0].mxu0
      %v1713 = vadd.f32 0.0, %v1712
      %v1714 = vpop.f32.mrb[0].mxu0
      %v1715 = vadd.f32 0.0, %v1714
      %v1716 = vpop.f32.mrb[0].mxu0
      %v1717 = vadd.f32 0.0, %v1716
      %1718 = vmatprep.mubr.bf16.mxu0 0
      %1719 = vmatmul.mubr.bf16.gmra.mrb[0].mxu0 %v550
      %v1720 = vpop.f32.mrb[0].mxu0
      %v1721 = vadd.f32 0.0, %v1720
      %v1722 = vpop.f32.mrb[0].mxu0
      %v1723 = vadd.f32 0.0, %v1722
      %v1724 = vpop.f32.mrb[0].mxu0
      %v1725 = vadd.f32 0.0, %v1724
      %v1726 = vpop.f32.mrb[0].mxu0
      %v1727 = vadd.f32 0.0, %v1726
      %1728 = vmatprep.mubr.bf16.mxu0 0
      %1729 = vmatmul.mubr.bf16.gmra.mrb[0].mxu0 %v553
      %v1730 = vpop.f32.mrb[0].mxu0
      %v1731 = vadd.f32 0.0, %v1730
      %v1732 = vpop.f32.mrb[0].mxu0
      %v1733 = vadd.f32 0.0, %v1732
      %v1734 = vpop.f32.mrb[0].mxu0
      %v1735 = vadd.f32 0.0, %v1734
      %v1736 = vpop.f32.mrb[0].mxu0
      %v1737 = vadd.f32 0.0, %v1736
      %1738 = vmatprep.mubr.bf16.mxu0 0
      %1739 = vmatmul.mubr.bf16.gmra.mrb[0].mxu0 %v556
      %v1740 = vpop.f32.mrb[0].mxu0
      %v1741 = vadd.f32 0.0, %v1740
      %v1742 = vpop.f32.mrb[0].mxu0
      %v1743 = vadd.f32 0.0, %v1742
      %v1744 = vpop.f32.mrb[0].mxu0
      %v1745 = vadd.f32 0.0, %v1744
      %v1746 = vpop.f32.mrb[0].mxu0
      %v1747 = vadd.f32 0.0, %v1746
      %1748 = vmatprep.mubr.bf16.mxu0 0
      %1749 = vmatmul.mubr.bf16.gmra.mrb[0].mxu0 %v559
      %v1750 = vpop.f32.mrb[0].mxu0
      %v1751 = vadd.f32 0.0, %v1750
      %v1752 = vpop.f32.mrb[0].mxu0
      %v1753 = vadd.f32 0.0, %v1752
      %v1754 = vpop.f32.mrb[0].mxu0
      %v1755 = vadd.f32 0.0, %v1754
      %v1756 = vpop.f32.mrb[0].mxu0
      %v1757 = vadd.f32 0.0, %v1756
      %1758 = vmatprep.mubr.bf16.mxu0 0
      %1759 = vmatmul.mubr.bf16.gmra.mrb[0].mxu0 %v562
      %v1760 = vpop.f32.mrb[0].mxu0
      %v1761 = vadd.f32 0.0, %v1760
      %v1762 = vpop.f32.mrb[0].mxu0
      %v1763 = vadd.f32 0.0, %v1762
      %v1764 = vpop.f32.mrb[0].mxu0
      %v1765 = vadd.f32 0.0, %v1764
      %v1766 = vpop.f32.mrb[0].mxu0
      %v1767 = vadd.f32 0.0, %v1766
      %1768 = vmatprep.mubr.bf16.mxu0 0
      %1769 = vmatmul.mubr.bf16.gmra.mrb[0].mxu0 %v565
      %v1770 = vpop.f32.mrb[0].mxu0
      %v1771 = vadd.f32 0.0, %v1770
      %v1772 = vpop.f32.mrb[0].mxu0
      %v1773 = vadd.f32 0.0, %v1772
      %v1774 = vpop.f32.mrb[0].mxu0
      %v1775 = vadd.f32 0.0, %v1774
      %v1776 = vpop.f32.mrb[0].mxu0
      %v1777 = vadd.f32 0.0, %v1776
      %1778 = vmatprep.mubr.bf16.mxu0 0
      %1779 = vmatmul.mubr.bf16.gmra.mrb[0].mxu0 %v568
      %v1780 = vpop.f32.mrb[0].mxu0
      %v1781 = vadd.f32 0.0, %v1780
      %v1782 = vpop.f32.mrb[0].mxu0
      %v1783 = vadd.f32 0.0, %v1782
      %v1784 = vpop.f32.mrb[0].mxu0
      %v1785 = vadd.f32 0.0, %v1784
      %v1786 = vpop.f32.mrb[0].mxu0
      %v1787 = vadd.f32 0.0, %v1786
      %1788 = vmatprep.mubr.bf16.mxu0 0
      %1789 = vmatmul.mubr.bf16.gmra.mrb[0].mxu0 %v571
      %v1790 = vpop.f32.mrb[0].mxu0
      %v1791 = vadd.f32 0.0, %v1790
      %v1792 = vpop.f32.mrb[0].mxu0
      %v1793 = vadd.f32 0.0, %v1792
      %v1794 = vpop.f32.mrb[0].mxu0
      %v1795 = vadd.f32 0.0, %v1794
      %v1796 = vpop.f32.mrb[0].mxu0
      %v1797 = vadd.f32 0.0, %v1796
      %1798 = vmatprep.mubr.bf16.mxu0 0
      %1799 = vmatmul.mubr.bf16.gmra.mrb[0].mxu0 %v574
      %v1800 = vpop.f32.mrb[0].mxu0
      %v1801 = vadd.f32 0.0, %v1800
      %v1802 = vpop.f32.mrb[0].mxu0
      %v1803 = vadd.f32 0.0, %v1802
      %v1804 = vpop.f32.mrb[0].mxu0
      %v1805 = vadd.f32 0.0, %v1804
      %v1806 = vpop.f32.mrb[0].mxu0
      %v1807 = vadd.f32 0.0, %v1806
      %1808 = vmatprep.mubr.bf16.mxu0 0
      %1809 = vmatmul.mubr.bf16.gmra.mrb[0].mxu0 %v577
      %v1810 = vpop.f32.mrb[0].mxu0
      %v1811 = vadd.f32 0.0, %v1810
      %v1812 = vpop.f32.mrb[0].mxu0
      %v1813 = vadd.f32 0.0, %v1812
      %v1814 = vpop.f32.mrb[0].mxu0
      %v1815 = vadd.f32 0.0, %v1814
      %v1816 = vpop.f32.mrb[0].mxu0
      %v1817 = vadd.f32 0.0, %v1816
      %1818 = vmatprep.mubr.bf16.mxu0 0
      %1819 = vmatmul.mubr.bf16.gmra.mrb[0].mxu0 %v580
      %v1820 = vpop.f32.mrb[0].mxu0
      %v1821 = vadd.f32 0.0, %v1820
      %v1822 = vpop.f32.mrb[0].mxu0
      %v1823 = vadd.f32 0.0, %v1822
      %v1824 = vpop.f32.mrb[0].mxu0
      %v1825 = vadd.f32 0.0, %v1824
      %v1826 = vpop.f32.mrb[0].mxu0
      %v1827 = vadd.f32 0.0, %v1826
      %1828 = vmatprep.mubr.bf16.mxu0 0
      %1829 = vmatmul.mubr.bf16.gmra.mrb[0].mxu0 %v583
      %v1830 = vpop.f32.mrb[0].mxu0
      %v1831 = vadd.f32 0.0, %v1830
      %v1832 = vpop.f32.mrb[0].mxu0
      %v1833 = vadd.f32 0.0, %v1832
      %v1834 = vpop.f32.mrb[0].mxu0
      %v1835 = vadd.f32 0.0, %v1834
      %v1836 = vpop.f32.mrb[0].mxu0
      %v1837 = vadd.f32 0.0, %v1836
      %1838 = vmatprep.mubr.bf16.mxu0 0
      %1839 = vmatmul.mubr.bf16.gmra.mrb[0].mxu0 %v586
      %v1840 = vpop.f32.mrb[0].mxu0
      %v1841 = vadd.f32 0.0, %v1840
      %v1842 = vpop.f32.mrb[0].mxu0
      %v1843 = vadd.f32 0.0, %v1842
      %v1844 = vpop.f32.mrb[0].mxu0
      %v1845 = vadd.f32 0.0, %v1844
      %v1846 = vpop.f32.mrb[0].mxu0
      %v1847 = vadd.f32 0.0, %v1846
      %1848 = vmatprep.mubr.bf16.mxu0 0
      %1849 = vmatmul.mubr.bf16.gmra.mrb[0].mxu0 %v589
      %v1850 = vpop.f32.mrb[0].mxu0
      %v1851 = vadd.f32 0.0, %v1850
      %v1852 = vpop.f32.mrb[0].mxu0
      %v1853 = vadd.f32 0.0, %v1852
      %v1854 = vpop.f32.mrb[0].mxu0
      %v1855 = vadd.f32 0.0, %v1854
      %v1856 = vpop.f32.mrb[0].mxu0
      %v1857 = vadd.f32 0.0, %v1856
      %1858 = vmatprep.mubr.bf16.mxu0 0
      %1859 = vmatmul.mubr.bf16.gmra.mrb[0].mxu0 %v592
      %v1860 = vpop.f32.mrb[0].mxu0
      %v1861 = vadd.f32 0.0, %v1860
      %v1862 = vpop.f32.mrb[0].mxu0
      %v1863 = vadd.f32 0.0, %v1862
      %v1864 = vpop.f32.mrb[0].mxu0
      %v1865 = vadd.f32 0.0, %v1864
      %v1866 = vpop.f32.mrb[0].mxu0
      %v1867 = vadd.f32 0.0, %v1866
      %1868 = vmatprep.mubr.bf16.mxu0 0
      %1869 = vmatmul.mubr.bf16.gmra.mrb[0].mxu0 %v595
      %v1870 = vpop.f32.mrb[0].mxu0
      %v1871 = vadd.f32 0.0, %v1870
      %v1872 = vpop.f32.mrb[0].mxu0
      %v1873 = vadd.f32 0.0, %v1872
      %v1874 = vpop.f32.mrb[0].mxu0
      %v1875 = vadd.f32 0.0, %v1874
      %v1876 = vpop.f32.mrb[0].mxu0
      %v1877 = vadd.f32 0.0, %v1876
      %1878 = vmatprep.mubr.bf16.mxu0 0
      %1879 = vmatmul.mubr.bf16.gmra.mrb[0].mxu0 %v598
      %v1880 = vpop.f32.mrb[0].mxu0
      %v1881 = vadd.f32 0.0, %v1880
      %v1882 = vpop.f32.mrb[0].mxu0
      %v1883 = vadd.f32 0.0, %v1882
      %v1884 = vpop.f32.mrb[0].mxu0
      %v1885 = vadd.f32 0.0, %v1884
      %v1886 = vpop.f32.mrb[0].mxu0
      %v1887 = vadd.f32 0.0, %v1886
      %1888 = vmatprep.mubr.bf16.mxu0 0
      %1889 = vmatmul.mubr.bf16.gmra.mrb[0].mxu0 %v601
      %v1890 = vpop.f32.mrb[0].mxu0
      %v1891 = vadd.f32 0.0, %v1890
      %v1892 = vpop.f32.mrb[0].mxu0
      %v1893 = vadd.f32 0.0, %v1892
      %v1894 = vpop.f32.mrb[0].mxu0
      %v1895 = vadd.f32 0.0, %v1894
      %v1896 = vpop.f32.mrb[0].mxu0
      %v1897 = vadd.f32 0.0, %v1896
      %1898 = vmatprep.mubr.bf16.mxu0 0
      %1899 = vmatmul.mubr.bf16.gmra.mrb[0].mxu0 %v604
      %v1900 = vpop.f32.mrb[0].mxu0
      %v1901 = vadd.f32 0.0, %v1900
      %v1902 = vpop.f32.mrb[0].mxu0
      %v1903 = vadd.f32 0.0, %v1902
      %v1904 = vpop.f32.mrb[0].mxu0
      %v1905 = vadd.f32 0.0, %v1904
      %v1906 = vpop.f32.mrb[0].mxu0
      %v1907 = vadd.f32 0.0, %v1906
      %1908 = vmatprep.mubr.bf16.mxu0 0
      %1909 = vmatmul.mubr.bf16.gmra.mrb[0].mxu0 %v607
      %v1910 = vpop.f32.mrb[0].mxu0
      %v1911 = vadd.f32 0.0, %v1910
      %v1912 = vpop.f32.mrb[0].mxu0
      %v1913 = vadd.f32 0.0, %v1912
      %v1914 = vpop.f32.mrb[0].mxu0
      %v1915 = vadd.f32 0.0, %v1914
      %v1916 = vpop.f32.mrb[0].mxu0
      %v1917 = vadd.f32 0.0, %v1916
      %1918 = vmatprep.mubr.bf16.mxu0 0
      %1919 = vmatmul.mubr.bf16.gmra.mrb[0].mxu0 %v610
      %v1920 = vpop.f32.mrb[0].mxu0
      %v1921 = vadd.f32 0.0, %v1920
      %v1922 = vpop.f32.mrb[0].mxu0
      %v1923 = vadd.f32 0.0, %v1922
      %v1924 = vpop.f32.mrb[0].mxu0
      %v1925 = vadd.f32 0.0, %v1924
      %v1926 = vpop.f32.mrb[0].mxu0
      %v1927 = vadd.f32 0.0, %v1926
      %1928 = vmatprep.mubr.bf16.mxu0 0
      %1929 = vmatmul.mubr.bf16.gmra.mrb[0].mxu0 %v613
      %v1930 = vpop.f32.mrb[0].mxu0
      %v1931 = vadd.f32 0.0, %v1930
      %v1932 = vpop.f32.mrb[0].mxu0
      %v1933 = vadd.f32 0.0, %v1932
      %v1934 = vpop.f32.mrb[0].mxu0
      %v1935 = vadd.f32 0.0, %v1934
      %v1936 = vpop.f32.mrb[0].mxu0
      %v1937 = vadd.f32 0.0, %v1936
      %1938 = vmatprep.mubr.bf16.mxu0 0
      %1939 = vmatmul.mubr.bf16.gmra.mrb[0].mxu0 %v616
      %v1940 = vpop.f32.mrb[0].mxu0
      %v1941 = vadd.f32 0.0, %v1940
      %v1942 = vpop.f32.mrb[0].mxu0
      %v1943 = vadd.f32 0.0, %v1942
      %v1944 = vpop.f32.mrb[0].mxu0
      %v1945 = vadd.f32 0.0, %v1944
      %v1946 = vpop.f32.mrb[0].mxu0
      %v1947 = vadd.f32 0.0, %v1946
      %1948 = vmatprep.mubr.bf16.mxu0 0
      %1949 = vmatmul.mubr.bf16.gmra.mrb[0].mxu0 %v619
      %v1950 = vpop.f32.mrb[0].mxu0
      %v1951 = vadd.f32 0.0, %v1950
      %v1952 = vpop.f32.mrb[0].mxu0
      %v1953 = vadd.f32 0.0, %v1952
      %v1954 = vpop.f32.mrb[0].mxu0
      %v1955 = vadd.f32 0.0, %v1954
      %v1956 = vpop.f32.mrb[0].mxu0
      %v1957 = vadd.f32 0.0, %v1956
      %1958 = vmatprep.mubr.bf16.mxu0 0
      %1959 = vmatmul.mubr.bf16.gmra.mrb[0].mxu0 %v622
      %v1960 = vpop.f32.mrb[0].mxu0
      %v1961 = vadd.f32 0.0, %v1960
      %v1962 = vpop.f32.mrb[0].mxu0
      %v1963 = vadd.f32 0.0, %v1962
      %v1964 = vpop.f32.mrb[0].mxu0
      %v1965 = vadd.f32 0.0, %v1964
      %v1966 = vpop.f32.mrb[0].mxu0
      %v1967 = vadd.f32 0.0, %v1966
      %1968 = vmatprep.mubr.bf16.mxu0 0
      %1969 = vmatmul.mubr.bf16.gmra.mrb[0].mxu0 %v625
      %v1970 = vpop.f32.mrb[0].mxu0
      %v1971 = vadd.f32 0.0, %v1970
      %v1972 = vpop.f32.mrb[0].mxu0
      %v1973 = vadd.f32 0.0, %v1972
      %v1974 = vpop.f32.mrb[0].mxu0
      %v1975 = vadd.f32 0.0, %v1974
      %v1976 = vpop.f32.mrb[0].mxu0
      %v1977 = vadd.f32 0.0, %v1976
      %1978 = vmatprep.mubr.bf16.mxu0 0
      %1979 = vmatmul.mubr.bf16.gmra.mrb[0].mxu0 %v628
      %v1980 = vpop.f32.mrb[0].mxu0
      %v1981 = vadd.f32 0.0, %v1980
      %v1982 = vpop.f32.mrb[0].mxu0
      %v1983 = vadd.f32 0.0, %v1982
      %v1984 = vpop.f32.mrb[0].mxu0
      %v1985 = vadd.f32 0.0, %v1984
      %v1986 = vpop.f32.mrb[0].mxu0
      %v1987 = vadd.f32 0.0, %v1986
      %1988 = vdwg.mxu0
      %v1989 = vld [vmem:[#allocation2] sm:$0xf]
      %v1990 = vmax.f32 %v678, %v682
      %v1991 = vmax.f32 %v1990, %v688
      %v1992 = vmax.f32 %v1991, %v692
      %v1993 = vmax.f32 %v1992, %v698
      %v1994 = vmax.f32 %v1993, %v702
      %v1995 = vmax.f32 %v1994, %v708
      %v1996 = vmax.f32 %v1995, %v712
      %v1997 = vmax.f32 %v1996, %v718
      %v1998 = vmax.f32 %v1997, %v722
      %v1999 = vmax.f32 %v1998, %v728
      %v2000 = vmax.f32 %v1999, %v732
      %v2001 = vmax.f32 %v2000, %v738
      %v2002 = vmax.f32 %v2001, %v742
      %v2003 = vmax.f32 %v2002, %v748
      %v2004 = vmax.f32 %v2003, %v752
      %v2005 = vmax.f32 %v2004, %v758
      %v2006 = vmax.f32 %v2005, %v762
      %v2007 = vmax.f32 %v2006, %v768
      %v2008 = vmax.f32 %v2007, %v772
      %v2009 = vmax.f32 %v2008, %v778
      %v2010 = vmax.f32 %v2009, %v782
      %v2011 = vmax.f32 %v2010, %v788
      %v2012 = vmax.f32 %v2011, %v792
      %v2013 = vmax.f32 %v2012, %v798
      %v2014 = vmax.f32 %v2013, %v802
      %v2015 = vmax.f32 %v2014, %v808
      %v2016 = vmax.f32 %v2015, %v812
      %v2017 = vmax.f32 %v2016, %v818
      %v2018 = vmax.f32 %v2017, %v822
      %v2019 = vmax.f32 %v2018, %v828
      %v2020 = vmax.f32 %v2019, %v832
      %v2021 = vmax.f32 %v2020, %v838
      %v2022 = vmax.f32 %v2021, %v842
      %v2023 = vmax.f32 %v2022, %v848
      %v2024 = vmax.f32 %v2023, %v852
      %v2025 = vmax.f32 %v2024, %v858
      %v2026 = vmax.f32 %v2025, %v862
      %v2027 = vmax.f32 %v2026, %v868
      %v2028 = vmax.f32 %v2027, %v872
      %v2029 = vmax.f32 %v2028, %v878
      %v2030 = vmax.f32 %v2029, %v882
      %v2031 = vmax.f32 %v2030, %v888
      %v2032 = vmax.f32 %v2031, %v892
      %v2033 = vmax.f32 %v2032, %v898
      %v2034 = vmax.f32 %v2033, %v902
      %v2035 = vmax.f32 %v2034, %v908
      %v2036 = vmax.f32 %v2035, %v912
      %v2037 = vmax.f32 %v2036, %v918
      %v2038 = vmax.f32 %v2037, %v922
      %v2039 = vmax.f32 %v2038, %v928
      %v2040 = vmax.f32 %v2039, %v932
      %v2041 = vmax.f32 %v2040, %v938
      %v2042 = vmax.f32 %v2041, %v942
      %v2043 = vmax.f32 %v2042, %v948
      %v2044 = vmax.f32 %v2043, %v952
      %v2045 = vmax.f32 %v2044, %v958
      %v2046 = vmax.f32 %v2045, %v962
      %v2047 = vmax.f32 %v2046, %v968
      %v2048 = vmax.f32 %v2047, %v972
      %v2049 = vmax.f32 %v2048, %v978
      %v2050 = vmax.f32 %v2049, %v982
      %v2051 = vmax.f32 %v2050, %v988
      %v2052 = vmax.f32 %v2051, %v992
      %v2053 = vmax.f32 %v2052, %v998
      %v2054 = vmax.f32 %v2053, %v1002
      %v2055 = vmax.f32 %v2054, %v1008
      %v2056 = vmax.f32 %v2055, %v1012
      %v2057 = vmax.f32 %v2056, %v1018
      %v2058 = vmax.f32 %v2057, %v1022
      %v2059 = vmax.f32 %v2058, %v1028
      %v2060 = vmax.f32 %v2059, %v1032
      %v2061 = vmax.f32 %v2060, %v1038
      %v2062 = vmax.f32 %v2061, %v1042
      %v2063 = vmax.f32 %v2062, %v1048
      %v2064 = vmax.f32 %v2063, %v1052
      %v2065 = vmax.f32 %v2064, %v1058
      %v2066 = vmax.f32 %v2065, %v1062
      %v2067 = vmax.f32 %v2066, %v1068
      %v2068 = vmax.f32 %v2067, %v1072
      %v2069 = vmax.f32 %v2068, %v1078
      %v2070 = vmax.f32 %v2069, %v1082
      %v2071 = vmax.f32 %v2070, %v1088
      %v2072 = vmax.f32 %v2071, %v1092
      %v2073 = vmax.f32 %v2072, %v1098
      %v2074 = vmax.f32 %v2073, %v1102
      %v2075 = vmax.f32 %v2074, %v1108
      %v2076 = vmax.f32 %v2075, %v1112
      %v2077 = vmax.f32 %v2076, %v1118
      %v2078 = vmax.f32 %v2077, %v1122
      %v2079 = vmax.f32 %v2078, %v1128
      %v2080 = vmax.f32 %v2079, %v1132
      %v2081 = vmax.f32 %v2080, %v1138
      %v2082 = vmax.f32 %v2081, %v1142
      %v2083 = vmax.f32 %v2082, %v1148
      %v2084 = vmax.f32 %v2083, %v1152
      %v2085 = vmax.f32 %v2084, %v1158
      %v2086 = vmax.f32 %v2085, %v1162
      %v2087 = vmax.f32 %v2086, %v1168
      %v2088 = vmax.f32 %v2087, %v1172
      %v2089 = vmax.f32 %v2088, %v1178
      %v2090 = vmax.f32 %v2089, %v1182
      %v2091 = vmax.f32 %v2090, %v1188
      %v2092 = vmax.f32 %v2091, %v1192
      %v2093 = vmax.f32 %v2092, %v1198
      %v2094 = vmax.f32 %v2093, %v1202
      %v2095 = vmax.f32 %v2094, %v1208
      %v2096 = vmax.f32 %v2095, %v1212
      %v2097 = vmax.f32 %v2096, %v1218
      %v2098 = vmax.f32 %v2097, %v1222
      %v2099 = vmax.f32 %v2098, %v1228
      %v2100 = vmax.f32 %v2099, %v1232
      %v2101 = vmax.f32 %v2100, %v1238
      %v2102 = vmax.f32 %v2101, %v1242
      %v2103 = vmax.f32 %v2102, %v1248
      %v2104 = vmax.f32 %v2103, %v1252
      %v2105 = vmax.f32 %v2104, %v1258
      %v2106 = vmax.f32 %v2105, %v1262
      %v2107 = vmax.f32 %v2106, %v1268
      %v2108 = vmax.f32 %v2107, %v1272
      %v2109 = vmax.f32 %v2108, %v1278
      %v2110 = vmax.f32 %v2109, %v1282
      %v2111 = vmax.f32 %v2110, %v1288
      %v2112 = vmax.f32 %v2111, %v1292
      %v2113 = vmax.f32 %v2112, %v1298
      %v2114 = vmax.f32 %v2113, %v1302
      %v2115 = vmax.f32 %v2114, %v1308
      %v2116 = vmax.f32 %v2115, %v1312
      %v2117 = vrot.slane %v2116, 4
      %v2118 = vmax.f32 %v2116, %v2117
      %v2119 = vrot.slane %v2118, 2
      %v2120 = vmax.f32 %v2118, %v2119
      %v2121 = vrot.slane %v2120, 1
      %v2122 = vmax.f32 %v2120, %v2121
      %v2123 = vmax.f32 %v680, %v684
      %v2124 = vmax.f32 %v2123, %v690
      %v2125 = vmax.f32 %v2124, %v694
      %v2126 = vmax.f32 %v2125, %v700
      %v2127 = vmax.f32 %v2126, %v704
      %v2128 = vmax.f32 %v2127, %v710
      %v2129 = vmax.f32 %v2128, %v714
      %v2130 = vmax.f32 %v2129, %v720
      %v2131 = vmax.f32 %v2130, %v724
      %v2132 = vmax.f32 %v2131, %v730
      %v2133 = vmax.f32 %v2132, %v734
      %v2134 = vmax.f32 %v2133, %v740
      %v2135 = vmax.f32 %v2134, %v744
      %v2136 = vmax.f32 %v2135, %v750
      %v2137 = vmax.f32 %v2136, %v754
      %v2138 = vmax.f32 %v2137, %v760
      %v2139 = vmax.f32 %v2138, %v764
      %v2140 = vmax.f32 %v2139, %v770
      %v2141 = vmax.f32 %v2140, %v774
      %v2142 = vmax.f32 %v2141, %v780
      %v2143 = vmax.f32 %v2142, %v784
      %v2144 = vmax.f32 %v2143, %v790
      %v2145 = vmax.f32 %v2144, %v794
      %v2146 = vmax.f32 %v2145, %v800
      %v2147 = vmax.f32 %v2146, %v804
      %v2148 = vmax.f32 %v2147, %v810
      %v2149 = vmax.f32 %v2148, %v814
      %v2150 = vmax.f32 %v2149, %v820
      %v2151 = vmax.f32 %v2150, %v824
      %v2152 = vmax.f32 %v2151, %v830
      %v2153 = vmax.f32 %v2152, %v834
      %v2154 = vmax.f32 %v2153, %v840
      %v2155 = vmax.f32 %v2154, %v844
      %v2156 = vmax.f32 %v2155, %v850
      %v2157 = vmax.f32 %v2156, %v854
      %v2158 = vmax.f32 %v2157, %v860
      %v2159 = vmax.f32 %v2158, %v864
      %v2160 = vmax.f32 %v2159, %v870
      %v2161 = vmax.f32 %v2160, %v874
      %v2162 = vmax.f32 %v2161, %v880
      %v2163 = vmax.f32 %v2162, %v884
      %v2164 = vmax.f32 %v2163, %v890
      %v2165 = vmax.f32 %v2164, %v894
      %v2166 = vmax.f32 %v2165, %v900
      %v2167 = vmax.f32 %v2166, %v904
      %v2168 = vmax.f32 %v2167, %v910
      %v2169 = vmax.f32 %v2168, %v914
      %v2170 = vmax.f32 %v2169, %v920
      %v2171 = vmax.f32 %v2170, %v924
      %v2172 = vmax.f32 %v2171, %v930
      %v2173 = vmax.f32 %v2172, %v934
      %v2174 = vmax.f32 %v2173, %v940
      %v2175 = vmax.f32 %v2174, %v944
      %v2176 = vmax.f32 %v2175, %v950
      %v2177 = vmax.f32 %v2176, %v954
      %v2178 = vmax.f32 %v2177, %v960
      %v2179 = vmax.f32 %v2178, %v964
      %v2180 = vmax.f32 %v2179, %v970
      %v2181 = vmax.f32 %v2180, %v974
      %v2182 = vmax.f32 %v2181, %v980
      %v2183 = vmax.f32 %v2182, %v984
      %v2184 = vmax.f32 %v2183, %v990
      %v2185 = vmax.f32 %v2184, %v994
      %v2186 = vmax.f32 %v2185, %v1000
      %v2187 = vmax.f32 %v2186, %v1004
      %v2188 = vmax.f32 %v2187, %v1010
      %v2189 = vmax.f32 %v2188, %v1014
      %v2190 = vmax.f32 %v2189, %v1020
      %v2191 = vmax.f32 %v2190, %v1024
      %v2192 = vmax.f32 %v2191, %v1030
      %v2193 = vmax.f32 %v2192, %v1034
      %v2194 = vmax.f32 %v2193, %v1040
      %v2195 = vmax.f32 %v2194, %v1044
      %v2196 = vmax.f32 %v2195, %v1050
      %v2197 = vmax.f32 %v2196, %v1054
      %v2198 = vmax.f32 %v2197, %v1060
      %v2199 = vmax.f32 %v2198, %v1064
      %v2200 = vmax.f32 %v2199, %v1070
      %v2201 = vmax.f32 %v2200, %v1074
      %v2202 = vmax.f32 %v2201, %v1080
      %v2203 = vmax.f32 %v2202, %v1084
      %v2204 = vmax.f32 %v2203, %v1090
      %v2205 = vmax.f32 %v2204, %v1094
      %v2206 = vmax.f32 %v2205, %v1100
      %v2207 = vmax.f32 %v2206, %v1104
      %v2208 = vmax.f32 %v2207, %v1110
      %v2209 = vmax.f32 %v2208, %v1114
      %v2210 = vmax.f32 %v2209, %v1120
      %v2211 = vmax.f32 %v2210, %v1124
      %v2212 = vmax.f32 %v2211, %v1130
      %v2213 = vmax.f32 %v2212, %v1134
      %v2214 = vmax.f32 %v2213, %v1140
      %v2215 = vmax.f32 %v2214, %v1144
      %v2216 = vmax.f32 %v2215, %v1150
      %v2217 = vmax.f32 %v2216, %v1154
      %v2218 = vmax.f32 %v2217, %v1160
      %v2219 = vmax.f32 %v2218, %v1164
      %v2220 = vmax.f32 %v2219, %v1170
      %v2221 = vmax.f32 %v2220, %v1174
      %v2222 = vmax.f32 %v2221, %v1180
      %v2223 = vmax.f32 %v2222, %v1184
      %v2224 = vmax.f32 %v2223, %v1190
      %v2225 = vmax.f32 %v2224, %v1194
      %v2226 = vmax.f32 %v2225, %v1200
      %v2227 = vmax.f32 %v2226, %v1204
      %v2228 = vmax.f32 %v2227, %v1210
      %v2229 = vmax.f32 %v2228, %v1214
      %v2230 = vmax.f32 %v2229, %v1220
      %v2231 = vmax.f32 %v2230, %v1224
      %v2232 = vmax.f32 %v2231, %v1230
      %v2233 = vmax.f32 %v2232, %v1234
      %v2234 = vmax.f32 %v2233, %v1240
      %v2235 = vmax.f32 %v2234, %v1244
      %v2236 = vmax.f32 %v2235, %v1250
      %v2237 = vmax.f32 %v2236, %v1254
      %v2238 = vmax.f32 %v2237, %v1260
      %v2239 = vmax.f32 %v2238, %v1264
      %v2240 = vmax.f32 %v2239, %v1270
      %v2241 = vmax.f32 %v2240, %v1274
      %v2242 = vmax.f32 %v2241, %v1280
      %v2243 = vmax.f32 %v2242, %v1284
      %v2244 = vmax.f32 %v2243, %v1290
      %v2245 = vmax.f32 %v2244, %v1294
      %v2246 = vmax.f32 %v2245, %v1300
      %v2247 = vmax.f32 %v2246, %v1304
      %v2248 = vmax.f32 %v2247, %v1310
      %v2249 = vmax.f32 %v2248, %v1314
      %v2250 = vrot.slane %v2249, 4
      %v2251 = vmax.f32 %v2249, %v2250
      %v2252 = vrot.slane %v2251, 2
      %v2253 = vmax.f32 %v2251, %v2252
      %v2254 = vrot.slane %v2253, 1
      %v2255 = vmax.f32 %v2253, %v2254
      %v2256 = vmax.f32 %v1351, %v1355
      %v2257 = vmax.f32 %v2256, %v1361
      %v2258 = vmax.f32 %v2257, %v1365
      %v2259 = vmax.f32 %v2258, %v1371
      %v2260 = vmax.f32 %v2259, %v1375
      %v2261 = vmax.f32 %v2260, %v1381
      %v2262 = vmax.f32 %v2261, %v1385
      %v2263 = vmax.f32 %v2262, %v1391
      %v2264 = vmax.f32 %v2263, %v1395
      %v2265 = vmax.f32 %v2264, %v1401
      %v2266 = vmax.f32 %v2265, %v1405
      %v2267 = vmax.f32 %v2266, %v1411
      %v2268 = vmax.f32 %v2267, %v1415
      %v2269 = vmax.f32 %v2268, %v1421
      %v2270 = vmax.f32 %v2269, %v1425
      %v2271 = vmax.f32 %v2270, %v1431
      %v2272 = vmax.f32 %v2271, %v1435
      %v2273 = vmax.f32 %v2272, %v1441
      %v2274 = vmax.f32 %v2273, %v1445
      %v2275 = vmax.f32 %v2274, %v1451
      %v2276 = vmax.f32 %v2275, %v1455
      %v2277 = vmax.f32 %v2276, %v1461
      %v2278 = vmax.f32 %v2277, %v1465
      %v2279 = vmax.f32 %v2278, %v1471
      %v2280 = vmax.f32 %v2279, %v1475
      %v2281 = vmax.f32 %v2280, %v1481
      %v2282 = vmax.f32 %v2281, %v1485
      %v2283 = vmax.f32 %v2282, %v1491
      %v2284 = vmax.f32 %v2283, %v1495
      %v2285 = vmax.f32 %v2284, %v1501
      %v2286 = vmax.f32 %v2285, %v1505
      %v2287 = vmax.f32 %v2286, %v1511
      %v2288 = vmax.f32 %v2287, %v1515
      %v2289 = vmax.f32 %v2288, %v1521
      %v2290 = vmax.f32 %v2289, %v1525
      %v2291 = vmax.f32 %v2290, %v1531
      %v2292 = vmax.f32 %v2291, %v1535
      %v2293 = vmax.f32 %v2292, %v1541
      %v2294 = vmax.f32 %v2293, %v1545
      %v2295 = vmax.f32 %v2294, %v1551
      %v2296 = vmax.f32 %v2295, %v1555
      %v2297 = vmax.f32 %v2296, %v1561
      %v2298 = vmax.f32 %v2297, %v1565
      %v2299 = vmax.f32 %v2298, %v1571
      %v2300 = vmax.f32 %v2299, %v1575
      %v2301 = vmax.f32 %v2300, %v1581
      %v2302 = vmax.f32 %v2301, %v1585
      %v2303 = vmax.f32 %v2302, %v1591
      %v2304 = vmax.f32 %v2303, %v1595
      %v2305 = vmax.f32 %v2304, %v1601
      %v2306 = vmax.f32 %v2305, %v1605
      %v2307 = vmax.f32 %v2306, %v1611
      %v2308 = vmax.f32 %v2307, %v1615
      %v2309 = vmax.f32 %v2308, %v1621
      %v2310 = vmax.f32 %v2309, %v1625
      %v2311 = vmax.f32 %v2310, %v1631
      %v2312 = vmax.f32 %v2311, %v1635
      %v2313 = vmax.f32 %v2312, %v1641
      %v2314 = vmax.f32 %v2313, %v1645
      %v2315 = vmax.f32 %v2314, %v1651
      %v2316 = vmax.f32 %v2315, %v1655
      %v2317 = vmax.f32 %v2316, %v1661
      %v2318 = vmax.f32 %v2317, %v1665
      %v2319 = vmax.f32 %v2318, %v1671
      %v2320 = vmax.f32 %v2319, %v1675
      %v2321 = vmax.f32 %v2320, %v1681
      %v2322 = vmax.f32 %v2321, %v1685
      %v2323 = vmax.f32 %v2322, %v1691
      %v2324 = vmax.f32 %v2323, %v1695
      %v2325 = vmax.f32 %v2324, %v1701
      %v2326 = vmax.f32 %v2325, %v1705
      %v2327 = vmax.f32 %v2326, %v1711
      %v2328 = vmax.f32 %v2327, %v1715
      %v2329 = vmax.f32 %v2328, %v1721
      %v2330 = vmax.f32 %v2329, %v1725
      %v2331 = vmax.f32 %v2330, %v1731
      %v2332 = vmax.f32 %v2331, %v1735
      %v2333 = vmax.f32 %v2332, %v1741
      %v2334 = vmax.f32 %v2333, %v1745
      %v2335 = vmax.f32 %v2334, %v1751
      %v2336 = vmax.f32 %v2335, %v1755
      %v2337 = vmax.f32 %v2336, %v1761
      %v2338 = vmax.f32 %v2337, %v1765
      %v2339 = vmax.f32 %v2338, %v1771
      %v2340 = vmax.f32 %v2339, %v1775
      %v2341 = vmax.f32 %v2340, %v1781
      %v2342 = vmax.f32 %v2341, %v1785
      %v2343 = vmax.f32 %v2342, %v1791
      %v2344 = vmax.f32 %v2343, %v1795
      %v2345 = vmax.f32 %v2344, %v1801
      %v2346 = vmax.f32 %v2345, %v1805
      %v2347 = vmax.f32 %v2346, %v1811
      %v2348 = vmax.f32 %v2347, %v1815
      %v2349 = vmax.f32 %v2348, %v1821
      %v2350 = vmax.f32 %v2349, %v1825
      %v2351 = vmax.f32 %v2350, %v1831
      %v2352 = vmax.f32 %v2351, %v1835
      %v2353 = vmax.f32 %v2352, %v1841
      %v2354 = vmax.f32 %v2353, %v1845
      %v2355 = vmax.f32 %v2354, %v1851
      %v2356 = vmax.f32 %v2355, %v1855
      %v2357 = vmax.f32 %v2356, %v1861
      %v2358 = vmax.f32 %v2357, %v1865
      %v2359 = vmax.f32 %v2358, %v1871
      %v2360 = vmax.f32 %v2359, %v1875
      %v2361 = vmax.f32 %v2360, %v1881
      %v2362 = vmax.f32 %v2361, %v1885
      %v2363 = vmax.f32 %v2362, %v1891
      %v2364 = vmax.f32 %v2363, %v1895
      %v2365 = vmax.f32 %v2364, %v1901
      %v2366 = vmax.f32 %v2365, %v1905
      %v2367 = vmax.f32 %v2366, %v1911
      %v2368 = vmax.f32 %v2367, %v1915
      %v2369 = vmax.f32 %v2368, %v1921
      %v2370 = vmax.f32 %v2369, %v1925
      %v2371 = vmax.f32 %v2370, %v1931
      %v2372 = vmax.f32 %v2371, %v1935
      %v2373 = vmax.f32 %v2372, %v1941
      %v2374 = vmax.f32 %v2373, %v1945
      %v2375 = vmax.f32 %v2374, %v1951
      %v2376 = vmax.f32 %v2375, %v1955
      %v2377 = vmax.f32 %v2376, %v1961
      %v2378 = vmax.f32 %v2377, %v1965
      %v2379 = vmax.f32 %v2378, %v1971
      %v2380 = vmax.f32 %v2379, %v1975
      %v2381 = vmax.f32 %v2380, %v1981
      %v2382 = vmax.f32 %v2381, %v1985
      %v2383 = vrot.slane %v2382, 4
      %v2384 = vmax.f32 %v2382, %v2383
      %v2385 = vrot.slane %v2384, 2
      %v2386 = vmax.f32 %v2384, %v2385
      %v2387 = vrot.slane %v2386, 1
      %v2388 = vmax.f32 %v2386, %v2387
      %v2389 = vmax.f32 %v1353, %v1357
      %v2390 = vmax.f32 %v2389, %v1363
      %v2391 = vmax.f32 %v2390, %v1367
      %v2392 = vmax.f32 %v2391, %v1373
      %v2393 = vmax.f32 %v2392, %v1377
      %v2394 = vmax.f32 %v2393, %v1383
      %v2395 = vmax.f32 %v2394, %v1387
      %v2396 = vmax.f32 %v2395, %v1393
      %v2397 = vmax.f32 %v2396, %v1397
      %v2398 = vmax.f32 %v2397, %v1403
      %v2399 = vmax.f32 %v2398, %v1407
      %v2400 = vmax.f32 %v2399, %v1413
      %v2401 = vmax.f32 %v2400, %v1417
      %v2402 = vmax.f32 %v2401, %v1423
      %v2403 = vmax.f32 %v2402, %v1427
      %v2404 = vmax.f32 %v2403, %v1433
      %v2405 = vmax.f32 %v2404, %v1437
      %v2406 = vmax.f32 %v2405, %v1443
      %v2407 = vmax.f32 %v2406, %v1447
      %v2408 = vmax.f32 %v2407, %v1453
      %v2409 = vmax.f32 %v2408, %v1457
      %v2410 = vmax.f32 %v2409, %v1463
      %v2411 = vmax.f32 %v2410, %v1467
      %v2412 = vmax.f32 %v2411, %v1473
      %v2413 = vmax.f32 %v2412, %v1477
      %v2414 = vmax.f32 %v2413, %v1483
      %v2415 = vmax.f32 %v2414, %v1487
      %v2416 = vmax.f32 %v2415, %v1493
      %v2417 = vmax.f32 %v2416, %v1497
      %v2418 = vmax.f32 %v2417, %v1503
      %v2419 = vmax.f32 %v2418, %v1507
      %v2420 = vmax.f32 %v2419, %v1513
      %v2421 = vmax.f32 %v2420, %v1517
      %v2422 = vmax.f32 %v2421, %v1523
      %v2423 = vmax.f32 %v2422, %v1527
      %v2424 = vmax.f32 %v2423, %v1533
      %v2425 = vmax.f32 %v2424, %v1537
      %v2426 = vmax.f32 %v2425, %v1543
      %v2427 = vmax.f32 %v2426, %v1547
      %v2428 = vmax.f32 %v2427, %v1553
      %v2429 = vmax.f32 %v2428, %v1557
      %v2430 = vmax.f32 %v2429, %v1563
      %v2431 = vmax.f32 %v2430, %v1567
      %v2432 = vmax.f32 %v2431, %v1573
      %v2433 = vmax.f32 %v2432, %v1577
      %v2434 = vmax.f32 %v2433, %v1583
      %v2435 = vmax.f32 %v2434, %v1587
      %v2436 = vmax.f32 %v2435, %v1593
      %v2437 = vmax.f32 %v2436, %v1597
      %v2438 = vmax.f32 %v2437, %v1603
      %v2439 = vmax.f32 %v2438, %v1607
      %v2440 = vmax.f32 %v2439, %v1613
      %v2441 = vmax.f32 %v2440, %v1617
      %v2442 = vmax.f32 %v2441, %v1623
      %v2443 = vmax.f32 %v2442, %v1627
      %v2444 = vmax.f32 %v2443, %v1633
      %v2445 = vmax.f32 %v2444, %v1637
      %v2446 = vmax.f32 %v2445, %v1643
      %v2447 = vmax.f32 %v2446, %v1647
      %v2448 = vmax.f32 %v2447, %v1653
      %v2449 = vmax.f32 %v2448, %v1657
      %v2450 = vmax.f32 %v2449, %v1663
      %v2451 = vmax.f32 %v2450, %v1667
      %v2452 = vmax.f32 %v2451, %v1673
      %v2453 = vmax.f32 %v2452, %v1677
      %v2454 = vmax.f32 %v2453, %v1683
      %v2455 = vmax.f32 %v2454, %v1687
      %v2456 = vmax.f32 %v2455, %v1693
      %v2457 = vmax.f32 %v2456, %v1697
      %v2458 = vmax.f32 %v2457, %v1703
      %v2459 = vmax.f32 %v2458, %v1707
      %v2460 = vmax.f32 %v2459, %v1713
      %v2461 = vmax.f32 %v2460, %v1717
      %v2462 = vmax.f32 %v2461, %v1723
      %v2463 = vmax.f32 %v2462, %v1727
      %v2464 = vmax.f32 %v2463, %v1733
      %v2465 = vmax.f32 %v2464, %v1737
      %v2466 = vmax.f32 %v2465, %v1743
      %v2467 = vmax.f32 %v2466, %v1747
      %v2468 = vmax.f32 %v2467, %v1753
      %v2469 = vmax.f32 %v2468, %v1757
      %v2470 = vmax.f32 %v2469, %v1763
      %v2471 = vmax.f32 %v2470, %v1767
      %v2472 = vmax.f32 %v2471, %v1773
      %v2473 = vmax.f32 %v2472, %v1777
      %v2474 = vmax.f32 %v2473, %v1783
      %v2475 = vmax.f32 %v2474, %v1787
      %v2476 = vmax.f32 %v2475, %v1793
      %v2477 = vmax.f32 %v2476, %v1797
      %v2478 = vmax.f32 %v2477, %v1803
      %v2479 = vmax.f32 %v2478, %v1807
      %v2480 = vmax.f32 %v2479, %v1813
      %v2481 = vmax.f32 %v2480, %v1817
      %v2482 = vmax.f32 %v2481, %v1823
      %v2483 = vmax.f32 %v2482, %v1827
      %v2484 = vmax.f32 %v2483, %v1833
      %v2485 = vmax.f32 %v2484, %v1837
      %v2486 = vmax.f32 %v2485, %v1843
      %v2487 = vmax.f32 %v2486, %v1847
      %v2488 = vmax.f32 %v2487, %v1853
      %v2489 = vmax.f32 %v2488, %v1857
      %v2490 = vmax.f32 %v2489, %v1863
      %v2491 = vmax.f32 %v2490, %v1867
      %v2492 = vmax.f32 %v2491, %v1873
      %v2493 = vmax.f32 %v2492, %v1877
      %v2494 = vmax.f32 %v2493, %v1883
      %v2495 = vmax.f32 %v2494, %v1887
      %v2496 = vmax.f32 %v2495, %v1893
      %v2497 = vmax.f32 %v2496, %v1897
      %v2498 = vmax.f32 %v2497, %v1903
      %v2499 = vmax.f32 %v2498, %v1907
      %v2500 = vmax.f32 %v2499, %v1913
      %v2501 = vmax.f32 %v2500, %v1917
      %v2502 = vmax.f32 %v2501, %v1923
      %v2503 = vmax.f32 %v2502, %v1927
      %v2504 = vmax.f32 %v2503, %v1933
      %v2505 = vmax.f32 %v2504, %v1937
      %v2506 = vmax.f32 %v2505, %v1943
      %v2507 = vmax.f32 %v2506, %v1947
      %v2508 = vmax.f32 %v2507, %v1953
      %v2509 = vmax.f32 %v2508, %v1957
      %v2510 = vmax.f32 %v2509, %v1963
      %v2511 = vmax.f32 %v2510, %v1967
      %v2512 = vmax.f32 %v2511, %v1973
      %v2513 = vmax.f32 %v2512, %v1977
      %v2514 = vmax.f32 %v2513, %v1983
      %v2515 = vmax.f32 %v2514, %v1987
      %v2516 = vrot.slane %v2515, 4
      %v2517 = vmax.f32 %v2515, %v2516
      %v2518 = vrot.slane %v2517, 2
      %v2519 = vmax.f32 %v2517, %v2518
      %v2520 = vrot.slane %v2519, 1
      %v2521 = vmax.f32 %v2519, %v2520
      %v2526 = vcombine.low %v2122, %v2255
      %v2527 = vcombine.low %v2388, %v2521
      %v2529 = vunpack.c.l.s4 1966171168
      %v2530 = vunpack.c.0.s8 %v2529
      %v2531 = vlaneseq
      %v2532 = vshrl.u32 %v2531, 7
      %v2533 = vsub.s32 %v2530, %v2532
      %v2534 = vrot.slane %v2526, %v2533
      %v2536 = vunpack.c.l.s4 1966171168
      %v2537 = vunpack.c.0.s8 %v2536
      %v2538 = vlaneseq
      %v2539 = vshrl.u32 %v2538, 7
      %v2540 = vsub.s32 %v2537, %v2539
      %v2541 = vrot.slane %v2527, %v2540
      %v2542 = vcombine.low %v2534, %v2541
      %v2544 = vunpack.c.l.s4 1966171168
      %v2545 = vunpack.c.0.s8 %v2544
      %v2546 = vlaneseq
      %v2547 = vshrl.u32 %v2546, 7
      %v2548 = vsub.s32 %v2545, %v2547
      %v2549 = vrot.slane %v2542, %v2548
      %v2551 = vmax.f32 %v1989, %v2549
      %v2552 = vsub.f32 %v1989, %v2551
      %v2553 = vmul.f32 %v2552, 1.442695
      %v2554 = vpow.pop %v2553
      %v2556 = vlaneseq
      %v2557 = vshrl.u32 %v2556, 7
      %v2558 = vsub.s32 0, %v2557
      %v2559 = vrot.slane %v2551, %v2558
      %v2560 = vlaneseq
      %v2561 = vshrl.u32 %v2560, 7
      %v2562 = vsub.s32 1, %v2561
      %v2563 = vrot.slane %v2551, %v2562
      %v2564 = vlaneseq
      %v2565 = vshrl.u32 %v2564, 7
      %v2566 = vsub.s32 2, %v2565
      %v2567 = vrot.slane %v2551, %v2566
      %v2568 = vlaneseq
      %v2569 = vshrl.u32 %v2568, 7
      %v2570 = vsub.s32 3, %v2569
      %v2571 = vrot.slane %v2551, %v2570
      %v2576 = vsub.f32 %v678, %v2559
      %v2577 = vsub.f32 %v680, %v2563
      %v2578 = vsub.f32 %v1351, %v2567
      %v2579 = vsub.f32 %v1353, %v2571
      %v2580 = vsub.f32 %v682, %v2559
      %v2581 = vsub.f32 %v684, %v2563
      %v2582 = vsub.f32 %v1355, %v2567
      %v2583 = vsub.f32 %v1357, %v2571
      %v2584 = vsub.f32 %v688, %v2559
      %v2585 = vsub.f32 %v690, %v2563
      %v2586 = vsub.f32 %v1361, %v2567
      %v2587 = vsub.f32 %v1363, %v2571
      %v2588 = vsub.f32 %v692, %v2559
      %v2589 = vsub.f32 %v694, %v2563
      %v2590 = vsub.f32 %v1365, %v2567
      %v2591 = vsub.f32 %v1367, %v2571
      %v2592 = vsub.f32 %v698, %v2559
      %v2593 = vsub.f32 %v700, %v2563
      %v2594 = vsub.f32 %v1371, %v2567
      %v2595 = vsub.f32 %v1373, %v2571
      %v2596 = vsub.f32 %v702, %v2559
      %v2597 = vsub.f32 %v704, %v2563
      %v2598 = vsub.f32 %v1375, %v2567
      %v2599 = vsub.f32 %v1377, %v2571
      %v2600 = vsub.f32 %v708, %v2559
      %v2601 = vsub.f32 %v710, %v2563
      %v2602 = vsub.f32 %v1381, %v2567
      %v2603 = vsub.f32 %v1383, %v2571
      %v2604 = vsub.f32 %v712, %v2559
      %v2605 = vsub.f32 %v714, %v2563
      %v2606 = vsub.f32 %v1385, %v2567
      %v2607 = vsub.f32 %v1387, %v2571
      %v2608 = vsub.f32 %v718, %v2559
      %v2609 = vsub.f32 %v720, %v2563
      %v2610 = vsub.f32 %v1391, %v2567
      %v2611 = vsub.f32 %v1393, %v2571
      %v2612 = vsub.f32 %v722, %v2559
      %v2613 = vsub.f32 %v724, %v2563
      %v2614 = vsub.f32 %v1395, %v2567
      %v2615 = vsub.f32 %v1397, %v2571
      %v2616 = vsub.f32 %v728, %v2559
      %v2617 = vsub.f32 %v730, %v2563
      %v2618 = vsub.f32 %v1401, %v2567
      %v2619 = vsub.f32 %v1403, %v2571
      %v2620 = vsub.f32 %v732, %v2559
      %v2621 = vsub.f32 %v734, %v2563
      %v2622 = vsub.f32 %v1405, %v2567
      %v2623 = vsub.f32 %v1407, %v2571
      %v2624 = vsub.f32 %v738, %v2559
      %v2625 = vsub.f32 %v740, %v2563
      %v2626 = vsub.f32 %v1411, %v2567
      %v2627 = vsub.f32 %v1413, %v2571
      %v2628 = vsub.f32 %v742, %v2559
      %v2629 = vsub.f32 %v744, %v2563
      %v2630 = vsub.f32 %v1415, %v2567
      %v2631 = vsub.f32 %v1417, %v2571
      %v2632 = vsub.f32 %v748, %v2559
      %v2633 = vsub.f32 %v750, %v2563
      %v2634 = vsub.f32 %v1421, %v2567
      %v2635 = vsub.f32 %v1423, %v2571
      %v2636 = vsub.f32 %v752, %v2559
      %v2637 = vsub.f32 %v754, %v2563
      %v2638 = vsub.f32 %v1425, %v2567
      %v2639 = vsub.f32 %v1427, %v2571
      %v2640 = vsub.f32 %v758, %v2559
      %v2641 = vsub.f32 %v760, %v2563
      %v2642 = vsub.f32 %v1431, %v2567
      %v2643 = vsub.f32 %v1433, %v2571
      %v2644 = vsub.f32 %v762, %v2559
      %v2645 = vsub.f32 %v764, %v2563
      %v2646 = vsub.f32 %v1435, %v2567
      %v2647 = vsub.f32 %v1437, %v2571
      %v2648 = vsub.f32 %v768, %v2559
      %v2649 = vsub.f32 %v770, %v2563
      %v2650 = vsub.f32 %v1441, %v2567
      %v2651 = vsub.f32 %v1443, %v2571
      %v2652 = vsub.f32 %v772, %v2559
      %v2653 = vsub.f32 %v774, %v2563
      %v2654 = vsub.f32 %v1445, %v2567
      %v2655 = vsub.f32 %v1447, %v2571
      %v2656 = vsub.f32 %v778, %v2559
      %v2657 = vsub.f32 %v780, %v2563
      %v2658 = vsub.f32 %v1451, %v2567
      %v2659 = vsub.f32 %v1453, %v2571
      %v2660 = vsub.f32 %v782, %v2559
      %v2661 = vsub.f32 %v784, %v2563
      %v2662 = vsub.f32 %v1455, %v2567
      %v2663 = vsub.f32 %v1457, %v2571
      %v2664 = vsub.f32 %v788, %v2559
      %v2665 = vsub.f32 %v790, %v2563
      %v2666 = vsub.f32 %v1461, %v2567
      %v2667 = vsub.f32 %v1463, %v2571
      %v2668 = vsub.f32 %v792, %v2559
      %v2669 = vsub.f32 %v794, %v2563
      %v2670 = vsub.f32 %v1465, %v2567
      %v2671 = vsub.f32 %v1467, %v2571
      %v2672 = vsub.f32 %v798, %v2559
      %v2673 = vsub.f32 %v800, %v2563
      %v2674 = vsub.f32 %v1471, %v2567
      %v2675 = vsub.f32 %v1473, %v2571
      %v2676 = vsub.f32 %v802, %v2559
      %v2677 = vsub.f32 %v804, %v2563
      %v2678 = vsub.f32 %v1475, %v2567
      %v2679 = vsub.f32 %v1477, %v2571
      %v2680 = vsub.f32 %v808, %v2559
      %v2681 = vsub.f32 %v810, %v2563
      %v2682 = vsub.f32 %v1481, %v2567
      %v2683 = vsub.f32 %v1483, %v2571
      %v2684 = vsub.f32 %v812, %v2559
      %v2685 = vsub.f32 %v814, %v2563
      %v2686 = vsub.f32 %v1485, %v2567
      %v2687 = vsub.f32 %v1487, %v2571
      %v2688 = vsub.f32 %v818, %v2559
      %v2689 = vsub.f32 %v820, %v2563
      %v2690 = vsub.f32 %v1491, %v2567
      %v2691 = vsub.f32 %v1493, %v2571
      %v2692 = vsub.f32 %v822, %v2559
      %v2693 = vsub.f32 %v824, %v2563
      %v2694 = vsub.f32 %v1495, %v2567
      %v2695 = vsub.f32 %v1497, %v2571
      %v2696 = vsub.f32 %v828, %v2559
      %v2697 = vsub.f32 %v830, %v2563
      %v2698 = vsub.f32 %v1501, %v2567
      %v2699 = vsub.f32 %v1503, %v2571
      %v2700 = vsub.f32 %v832, %v2559
      %v2701 = vsub.f32 %v834, %v2563
      %v2702 = vsub.f32 %v1505, %v2567
      %v2703 = vsub.f32 %v1507, %v2571
      %v2704 = vsub.f32 %v838, %v2559
      %v2705 = vsub.f32 %v840, %v2563
      %v2706 = vsub.f32 %v1511, %v2567
      %v2707 = vsub.f32 %v1513, %v2571
      %v2708 = vsub.f32 %v842, %v2559
      %v2709 = vsub.f32 %v844, %v2563
      %v2710 = vsub.f32 %v1515, %v2567
      %v2711 = vsub.f32 %v1517, %v2571
      %v2712 = vsub.f32 %v848, %v2559
      %v2713 = vsub.f32 %v850, %v2563
      %v2714 = vsub.f32 %v1521, %v2567
      %v2715 = vsub.f32 %v1523, %v2571
      %v2716 = vsub.f32 %v852, %v2559
      %v2717 = vsub.f32 %v854, %v2563
      %v2718 = vsub.f32 %v1525, %v2567
      %v2719 = vsub.f32 %v1527, %v2571
      %v2720 = vsub.f32 %v858, %v2559
      %v2721 = vsub.f32 %v860, %v2563
      %v2722 = vsub.f32 %v1531, %v2567
      %v2723 = vsub.f32 %v1533, %v2571
      %v2724 = vsub.f32 %v862, %v2559
      %v2725 = vsub.f32 %v864, %v2563
      %v2726 = vsub.f32 %v1535, %v2567
      %v2727 = vsub.f32 %v1537, %v2571
      %v2728 = vsub.f32 %v868, %v2559
      %v2729 = vsub.f32 %v870, %v2563
      %v2730 = vsub.f32 %v1541, %v2567
      %v2731 = vsub.f32 %v1543, %v2571
      %v2732 = vsub.f32 %v872, %v2559
      %v2733 = vsub.f32 %v874, %v2563
      %v2734 = vsub.f32 %v1545, %v2567
      %v2735 = vsub.f32 %v1547, %v2571
      %v2736 = vsub.f32 %v878, %v2559
      %v2737 = vsub.f32 %v880, %v2563
      %v2738 = vsub.f32 %v1551, %v2567
      %v2739 = vsub.f32 %v1553, %v2571
      %v2740 = vsub.f32 %v882, %v2559
      %v2741 = vsub.f32 %v884, %v2563
      %v2742 = vsub.f32 %v1555, %v2567
      %v2743 = vsub.f32 %v1557, %v2571
      %v2744 = vsub.f32 %v888, %v2559
      %v2745 = vsub.f32 %v890, %v2563
      %v2746 = vsub.f32 %v1561, %v2567
      %v2747 = vsub.f32 %v1563, %v2571
      %v2748 = vsub.f32 %v892, %v2559
      %v2749 = vsub.f32 %v894, %v2563
      %v2750 = vsub.f32 %v1565, %v2567
      %v2751 = vsub.f32 %v1567, %v2571
      %v2752 = vsub.f32 %v898, %v2559
      %v2753 = vsub.f32 %v900, %v2563
      %v2754 = vsub.f32 %v1571, %v2567
      %v2755 = vsub.f32 %v1573, %v2571
      %v2756 = vsub.f32 %v902, %v2559
      %v2757 = vsub.f32 %v904, %v2563
      %v2758 = vsub.f32 %v1575, %v2567
      %v2759 = vsub.f32 %v1577, %v2571
      %v2760 = vsub.f32 %v908, %v2559
      %v2761 = vsub.f32 %v910, %v2563
      %v2762 = vsub.f32 %v1581, %v2567
      %v2763 = vsub.f32 %v1583, %v2571
      %v2764 = vsub.f32 %v912, %v2559
      %v2765 = vsub.f32 %v914, %v2563
      %v2766 = vsub.f32 %v1585, %v2567
      %v2767 = vsub.f32 %v1587, %v2571
      %v2768 = vsub.f32 %v918, %v2559
      %v2769 = vsub.f32 %v920, %v2563
      %v2770 = vsub.f32 %v1591, %v2567
      %v2771 = vsub.f32 %v1593, %v2571
      %v2772 = vsub.f32 %v922, %v2559
      %v2773 = vsub.f32 %v924, %v2563
      %v2774 = vsub.f32 %v1595, %v2567
      %v2775 = vsub.f32 %v1597, %v2571
      %v2776 = vsub.f32 %v928, %v2559
      %v2777 = vsub.f32 %v930, %v2563
      %v2778 = vsub.f32 %v1601, %v2567
      %v2779 = vsub.f32 %v1603, %v2571
      %v2780 = vsub.f32 %v932, %v2559
      %v2781 = vsub.f32 %v934, %v2563
      %v2782 = vsub.f32 %v1605, %v2567
      %v2783 = vsub.f32 %v1607, %v2571
      %v2784 = vsub.f32 %v938, %v2559
      %v2785 = vsub.f32 %v940, %v2563
      %v2786 = vsub.f32 %v1611, %v2567
      %v2787 = vsub.f32 %v1613, %v2571
      %v2788 = vsub.f32 %v942, %v2559
      %v2789 = vsub.f32 %v944, %v2563
      %v2790 = vsub.f32 %v1615, %v2567
      %v2791 = vsub.f32 %v1617, %v2571
      %v2792 = vsub.f32 %v948, %v2559
      %v2793 = vsub.f32 %v950, %v2563
      %v2794 = vsub.f32 %v1621, %v2567
      %v2795 = vsub.f32 %v1623, %v2571
      %v2796 = vsub.f32 %v952, %v2559
      %v2797 = vsub.f32 %v954, %v2563
      %v2798 = vsub.f32 %v1625, %v2567
      %v2799 = vsub.f32 %v1627, %v2571
      %v2800 = vsub.f32 %v958, %v2559
      %v2801 = vsub.f32 %v960, %v2563
      %v2802 = vsub.f32 %v1631, %v2567
      %v2803 = vsub.f32 %v1633, %v2571
      %v2804 = vsub.f32 %v962, %v2559
      %v2805 = vsub.f32 %v964, %v2563
      %v2806 = vsub.f32 %v1635, %v2567
      %v2807 = vsub.f32 %v1637, %v2571
      %v2808 = vsub.f32 %v968, %v2559
      %v2809 = vsub.f32 %v970, %v2563
      %v2810 = vsub.f32 %v1641, %v2567
      %v2811 = vsub.f32 %v1643, %v2571
      %v2812 = vsub.f32 %v972, %v2559
      %v2813 = vsub.f32 %v974, %v2563
      %v2814 = vsub.f32 %v1645, %v2567
      %v2815 = vsub.f32 %v1647, %v2571
      %v2816 = vsub.f32 %v978, %v2559
      %v2817 = vsub.f32 %v980, %v2563
      %v2818 = vsub.f32 %v1651, %v2567
      %v2819 = vsub.f32 %v1653, %v2571
      %v2820 = vsub.f32 %v982, %v2559
      %v2821 = vsub.f32 %v984, %v2563
      %v2822 = vsub.f32 %v1655, %v2567
      %v2823 = vsub.f32 %v1657, %v2571
      %v2824 = vsub.f32 %v988, %v2559
      %v2825 = vsub.f32 %v990, %v2563
      %v2826 = vsub.f32 %v1661, %v2567
      %v2827 = vsub.f32 %v1663, %v2571
      %v2828 = vsub.f32 %v992, %v2559
      %v2829 = vsub.f32 %v994, %v2563
      %v2830 = vsub.f32 %v1665, %v2567
      %v2831 = vsub.f32 %v1667, %v2571
      %v2832 = vsub.f32 %v998, %v2559
      %v2833 = vsub.f32 %v1000, %v2563
      %v2834 = vsub.f32 %v1671, %v2567
      %v2835 = vsub.f32 %v1673, %v2571
      %v2836 = vsub.f32 %v1002, %v2559
      %v2837 = vsub.f32 %v1004, %v2563
      %v2838 = vsub.f32 %v1675, %v2567
      %v2839 = vsub.f32 %v1677, %v2571
      %v2840 = vsub.f32 %v1008, %v2559
      %v2841 = vsub.f32 %v1010, %v2563
      %v2842 = vsub.f32 %v1681, %v2567
      %v2843 = vsub.f32 %v1683, %v2571
      %v2844 = vsub.f32 %v1012, %v2559
      %v2845 = vsub.f32 %v1014, %v2563
      %v2846 = vsub.f32 %v1685, %v2567
      %v2847 = vsub.f32 %v1687, %v2571
      %v2848 = vsub.f32 %v1018, %v2559
      %v2849 = vsub.f32 %v1020, %v2563
      %v2850 = vsub.f32 %v1691, %v2567
      %v2851 = vsub.f32 %v1693, %v2571
      %v2852 = vsub.f32 %v1022, %v2559
      %v2853 = vsub.f32 %v1024, %v2563
      %v2854 = vsub.f32 %v1695, %v2567
      %v2855 = vsub.f32 %v1697, %v2571
      %v2856 = vsub.f32 %v1028, %v2559
      %v2857 = vsub.f32 %v1030, %v2563
      %v2858 = vsub.f32 %v1701, %v2567
      %v2859 = vsub.f32 %v1703, %v2571
      %v2860 = vsub.f32 %v1032, %v2559
      %v2861 = vsub.f32 %v1034, %v2563
      %v2862 = vsub.f32 %v1705, %v2567
      %v2863 = vsub.f32 %v1707, %v2571
      %v2864 = vsub.f32 %v1038, %v2559
      %v2865 = vsub.f32 %v1040, %v2563
      %v2866 = vsub.f32 %v1711, %v2567
      %v2867 = vsub.f32 %v1713, %v2571
      %v2868 = vsub.f32 %v1042, %v2559
      %v2869 = vsub.f32 %v1044, %v2563
      %v2870 = vsub.f32 %v1715, %v2567
      %v2871 = vsub.f32 %v1717, %v2571
      %v2872 = vsub.f32 %v1048, %v2559
      %v2873 = vsub.f32 %v1050, %v2563
      %v2874 = vsub.f32 %v1721, %v2567
      %v2875 = vsub.f32 %v1723, %v2571
      %v2876 = vsub.f32 %v1052, %v2559
      %v2877 = vsub.f32 %v1054, %v2563
      %v2878 = vsub.f32 %v1725, %v2567
      %v2879 = vsub.f32 %v1727, %v2571
      %v2880 = vsub.f32 %v1058, %v2559
      %v2881 = vsub.f32 %v1060, %v2563
      %v2882 = vsub.f32 %v1731, %v2567
      %v2883 = vsub.f32 %v1733, %v2571
      %v2884 = vsub.f32 %v1062, %v2559
      %v2885 = vsub.f32 %v1064, %v2563
      %v2886 = vsub.f32 %v1735, %v2567
      %v2887 = vsub.f32 %v1737, %v2571
      %v2888 = vsub.f32 %v1068, %v2559
      %v2889 = vsub.f32 %v1070, %v2563
      %v2890 = vsub.f32 %v1741, %v2567
      %v2891 = vsub.f32 %v1743, %v2571
      %v2892 = vsub.f32 %v1072, %v2559
      %v2893 = vsub.f32 %v1074, %v2563
      %v2894 = vsub.f32 %v1745, %v2567
      %v2895 = vsub.f32 %v1747, %v2571
      %v2896 = vsub.f32 %v1078, %v2559
      %v2897 = vsub.f32 %v1080, %v2563
      %v2898 = vsub.f32 %v1751, %v2567
      %v2899 = vsub.f32 %v1753, %v2571
      %v2900 = vsub.f32 %v1082, %v2559
      %v2901 = vsub.f32 %v1084, %v2563
      %v2902 = vsub.f32 %v1755, %v2567
      %v2903 = vsub.f32 %v1757, %v2571
      %v2904 = vsub.f32 %v1088, %v2559
      %v2905 = vsub.f32 %v1090, %v2563
      %v2906 = vsub.f32 %v1761, %v2567
      %v2907 = vsub.f32 %v1763, %v2571
      %v2908 = vsub.f32 %v1092, %v2559
      %v2909 = vsub.f32 %v1094, %v2563
      %v2910 = vsub.f32 %v1765, %v2567
      %v2911 = vsub.f32 %v1767, %v2571
      %v2912 = vsub.f32 %v1098, %v2559
      %v2913 = vsub.f32 %v1100, %v2563
      %v2914 = vsub.f32 %v1771, %v2567
      %v2915 = vsub.f32 %v1773, %v2571
      %v2916 = vsub.f32 %v1102, %v2559
      %v2917 = vsub.f32 %v1104, %v2563
      %v2918 = vsub.f32 %v1775, %v2567
      %v2919 = vsub.f32 %v1777, %v2571
      %v2920 = vsub.f32 %v1108, %v2559
      %v2921 = vsub.f32 %v1110, %v2563
      %v2922 = vsub.f32 %v1781, %v2567
      %v2923 = vsub.f32 %v1783, %v2571
      %v2924 = vsub.f32 %v1112, %v2559
      %v2925 = vsub.f32 %v1114, %v2563
      %v2926 = vsub.f32 %v1785, %v2567
      %v2927 = vsub.f32 %v1787, %v2571
      %v2928 = vsub.f32 %v1118, %v2559
      %v2929 = vsub.f32 %v1120, %v2563
      %v2930 = vsub.f32 %v1791, %v2567
      %v2931 = vsub.f32 %v1793, %v2571
      %v2932 = vsub.f32 %v1122, %v2559
      %v2933 = vsub.f32 %v1124, %v2563
      %v2934 = vsub.f32 %v1795, %v2567
      %v2935 = vsub.f32 %v1797, %v2571
      %v2936 = vsub.f32 %v1128, %v2559
      %v2937 = vsub.f32 %v1130, %v2563
      %v2938 = vsub.f32 %v1801, %v2567
      %v2939 = vsub.f32 %v1803, %v2571
      %v2940 = vsub.f32 %v1132, %v2559
      %v2941 = vsub.f32 %v1134, %v2563
      %v2942 = vsub.f32 %v1805, %v2567
      %v2943 = vsub.f32 %v1807, %v2571
      %v2944 = vsub.f32 %v1138, %v2559
      %v2945 = vsub.f32 %v1140, %v2563
      %v2946 = vsub.f32 %v1811, %v2567
      %v2947 = vsub.f32 %v1813, %v2571
      %v2948 = vsub.f32 %v1142, %v2559
      %v2949 = vsub.f32 %v1144, %v2563
      %v2950 = vsub.f32 %v1815, %v2567
      %v2951 = vsub.f32 %v1817, %v2571
      %v2952 = vsub.f32 %v1148, %v2559
      %v2953 = vsub.f32 %v1150, %v2563
      %v2954 = vsub.f32 %v1821, %v2567
      %v2955 = vsub.f32 %v1823, %v2571
      %v2956 = vsub.f32 %v1152, %v2559
      %v2957 = vsub.f32 %v1154, %v2563
      %v2958 = vsub.f32 %v1825, %v2567
      %v2959 = vsub.f32 %v1827, %v2571
      %v2960 = vsub.f32 %v1158, %v2559
      %v2961 = vsub.f32 %v1160, %v2563
      %v2962 = vsub.f32 %v1831, %v2567
      %v2963 = vsub.f32 %v1833, %v2571
      %v2964 = vsub.f32 %v1162, %v2559
      %v2965 = vsub.f32 %v1164, %v2563
      %v2966 = vsub.f32 %v1835, %v2567
      %v2967 = vsub.f32 %v1837, %v2571
      %v2968 = vsub.f32 %v1168, %v2559
      %v2969 = vsub.f32 %v1170, %v2563
      %v2970 = vsub.f32 %v1841, %v2567
      %v2971 = vsub.f32 %v1843, %v2571
      %v2972 = vsub.f32 %v1172, %v2559
      %v2973 = vsub.f32 %v1174, %v2563
      %v2974 = vsub.f32 %v1845, %v2567
      %v2975 = vsub.f32 %v1847, %v2571
      %v2976 = vsub.f32 %v1178, %v2559
      %v2977 = vsub.f32 %v1180, %v2563
      %v2978 = vsub.f32 %v1851, %v2567
      %v2979 = vsub.f32 %v1853, %v2571
      %v2980 = vsub.f32 %v1182, %v2559
      %v2981 = vsub.f32 %v1184, %v2563
      %v2982 = vsub.f32 %v1855, %v2567
      %v2983 = vsub.f32 %v1857, %v2571
      %v2984 = vsub.f32 %v1188, %v2559
      %v2985 = vsub.f32 %v1190, %v2563
      %v2986 = vsub.f32 %v1861, %v2567
      %v2987 = vsub.f32 %v1863, %v2571
      %v2988 = vsub.f32 %v1192, %v2559
      %v2989 = vsub.f32 %v1194, %v2563
      %v2990 = vsub.f32 %v1865, %v2567
      %v2991 = vsub.f32 %v1867, %v2571
      %v2992 = vsub.f32 %v1198, %v2559
      %v2993 = vsub.f32 %v1200, %v2563
      %v2994 = vsub.f32 %v1871, %v2567
      %v2995 = vsub.f32 %v1873, %v2571
      %v2996 = vsub.f32 %v1202, %v2559
      %v2997 = vsub.f32 %v1204, %v2563
      %v2998 = vsub.f32 %v1875, %v2567
      %v2999 = vsub.f32 %v1877, %v2571
      %v3000 = vsub.f32 %v1208, %v2559
      %v3001 = vsub.f32 %v1210, %v2563
      %v3002 = vsub.f32 %v1881, %v2567
      %v3003 = vsub.f32 %v1883, %v2571
      %v3004 = vsub.f32 %v1212, %v2559
      %v3005 = vsub.f32 %v1214, %v2563
      %v3006 = vsub.f32 %v1885, %v2567
      %v3007 = vsub.f32 %v1887, %v2571
      %v3008 = vsub.f32 %v1218, %v2559
      %v3009 = vsub.f32 %v1220, %v2563
      %v3010 = vsub.f32 %v1891, %v2567
      %v3011 = vsub.f32 %v1893, %v2571
      %v3012 = vsub.f32 %v1222, %v2559
      %v3013 = vsub.f32 %v1224, %v2563
      %v3014 = vsub.f32 %v1895, %v2567
      %v3015 = vsub.f32 %v1897, %v2571
      %v3016 = vsub.f32 %v1228, %v2559
      %v3017 = vsub.f32 %v1230, %v2563
      %v3018 = vsub.f32 %v1901, %v2567
      %v3019 = vsub.f32 %v1903, %v2571
      %v3020 = vsub.f32 %v1232, %v2559
      %v3021 = vsub.f32 %v1234, %v2563
      %v3022 = vsub.f32 %v1905, %v2567
      %v3023 = vsub.f32 %v1907, %v2571
      %v3024 = vsub.f32 %v1238, %v2559
      %v3025 = vsub.f32 %v1240, %v2563
      %v3026 = vsub.f32 %v1911, %v2567
      %v3027 = vsub.f32 %v1913, %v2571
      %v3028 = vsub.f32 %v1242, %v2559
      %v3029 = vsub.f32 %v1244, %v2563
      %v3030 = vsub.f32 %v1915, %v2567
      %v3031 = vsub.f32 %v1917, %v2571
      %v3032 = vsub.f32 %v1248, %v2559
      %v3033 = vsub.f32 %v1250, %v2563
      %v3034 = vsub.f32 %v1921, %v2567
      %v3035 = vsub.f32 %v1923, %v2571
      %v3036 = vsub.f32 %v1252, %v2559
      %v3037 = vsub.f32 %v1254, %v2563
      %v3038 = vsub.f32 %v1925, %v2567
      %v3039 = vsub.f32 %v1927, %v2571
      %v3040 = vsub.f32 %v1258, %v2559
      %v3041 = vsub.f32 %v1260, %v2563
      %v3042 = vsub.f32 %v1931, %v2567
      %v3043 = vsub.f32 %v1933, %v2571
      %v3044 = vsub.f32 %v1262, %v2559
      %v3045 = vsub.f32 %v1264, %v2563
      %v3046 = vsub.f32 %v1935, %v2567
      %v3047 = vsub.f32 %v1937, %v2571
      %v3048 = vsub.f32 %v1268, %v2559
      %v3049 = vsub.f32 %v1270, %v2563
      %v3050 = vsub.f32 %v1941, %v2567
      %v3051 = vsub.f32 %v1943, %v2571
      %v3052 = vsub.f32 %v1272, %v2559
      %v3053 = vsub.f32 %v1274, %v2563
      %v3054 = vsub.f32 %v1945, %v2567
      %v3055 = vsub.f32 %v1947, %v2571
      %v3056 = vsub.f32 %v1278, %v2559
      %v3057 = vsub.f32 %v1280, %v2563
      %v3058 = vsub.f32 %v1951, %v2567
      %v3059 = vsub.f32 %v1953, %v2571
      %v3060 = vsub.f32 %v1282, %v2559
      %v3061 = vsub.f32 %v1284, %v2563
      %v3062 = vsub.f32 %v1955, %v2567
      %v3063 = vsub.f32 %v1957, %v2571
      %v3064 = vsub.f32 %v1288, %v2559
      %v3065 = vsub.f32 %v1290, %v2563
      %v3066 = vsub.f32 %v1961, %v2567
      %v3067 = vsub.f32 %v1963, %v2571
      %v3068 = vsub.f32 %v1292, %v2559
      %v3069 = vsub.f32 %v1294, %v2563
      %v3070 = vsub.f32 %v1965, %v2567
      %v3071 = vsub.f32 %v1967, %v2571
      %v3072 = vsub.f32 %v1298, %v2559
      %v3073 = vsub.f32 %v1300, %v2563
      %v3074 = vsub.f32 %v1971, %v2567
      %v3075 = vsub.f32 %v1973, %v2571
      %v3076 = vsub.f32 %v1302, %v2559
      %v3077 = vsub.f32 %v1304, %v2563
      %v3078 = vsub.f32 %v1975, %v2567
      %v3079 = vsub.f32 %v1977, %v2571
      %v3080 = vsub.f32 %v1308, %v2559
      %v3081 = vsub.f32 %v1310, %v2563
      %v3082 = vsub.f32 %v1981, %v2567
      %v3083 = vsub.f32 %v1983, %v2571
      %v3084 = vsub.f32 %v1312, %v2559
      %v3085 = vsub.f32 %v1314, %v2563
      %v3086 = vsub.f32 %v1985, %v2567
      %v3087 = vsub.f32 %v1987, %v2571
      %v3088 = vmul.f32 %v2576, 1.442695
      %v3089 = vpow.pop %v3088
      %v3090 = vmul.f32 %v2577, 1.442695
      %v3091 = vpow.pop %v3090
      %v3092 = vmul.f32 %v2578, 1.442695
      %v3093 = vpow.pop %v3092
      %v3094 = vmul.f32 %v2579, 1.442695
      %v3095 = vpow.pop %v3094
      %v3096 = vmul.f32 %v2580, 1.442695
      %v3097 = vpow.pop %v3096
      %v3098 = vmul.f32 %v2581, 1.442695
      %v3099 = vpow.pop %v3098
      %v3100 = vmul.f32 %v2582, 1.442695
      %v3101 = vpow.pop %v3100
      %v3102 = vmul.f32 %v2583, 1.442695
      %v3103 = vpow.pop %v3102
      %v3104 = vmul.f32 %v2584, 1.442695
      %v3105 = vpow.pop %v3104
      %v3106 = vmul.f32 %v2585, 1.442695
      %v3107 = vpow.pop %v3106
      %v3108 = vmul.f32 %v2586, 1.442695
      %v3109 = vpow.pop %v3108
      %v3110 = vmul.f32 %v2587, 1.442695
      %v3111 = vpow.pop %v3110
      %v3112 = vmul.f32 %v2588, 1.442695
      %v3113 = vpow.pop %v3112
      %v3114 = vmul.f32 %v2589, 1.442695
      %v3115 = vpow.pop %v3114
      %v3116 = vmul.f32 %v2590, 1.442695
      %v3117 = vpow.pop %v3116
      %v3118 = vmul.f32 %v2591, 1.442695
      %v3119 = vpow.pop %v3118
      %v3120 = vmul.f32 %v2592, 1.442695
      %v3121 = vpow.pop %v3120
      %v3122 = vmul.f32 %v2593, 1.442695
      %v3123 = vpow.pop %v3122
      %v3124 = vmul.f32 %v2594, 1.442695
      %v3125 = vpow.pop %v3124
      %v3126 = vmul.f32 %v2595, 1.442695
      %v3127 = vpow.pop %v3126
      %v3128 = vmul.f32 %v2596, 1.442695
      %v3129 = vpow.pop %v3128
      %v3130 = vmul.f32 %v2597, 1.442695
      %v3131 = vpow.pop %v3130
      %v3132 = vmul.f32 %v2598, 1.442695
      %v3133 = vpow.pop %v3132
      %v3134 = vmul.f32 %v2599, 1.442695
      %v3135 = vpow.pop %v3134
      %v3136 = vmul.f32 %v2600, 1.442695
      %v3137 = vpow.pop %v3136
      %v3138 = vmul.f32 %v2601, 1.442695
      %v3139 = vpow.pop %v3138
      %v3140 = vmul.f32 %v2602, 1.442695
      %v3141 = vpow.pop %v3140
      %v3142 = vmul.f32 %v2603, 1.442695
      %v3143 = vpow.pop %v3142
      %v3144 = vmul.f32 %v2604, 1.442695
      %v3145 = vpow.pop %v3144
      %v3146 = vmul.f32 %v2605, 1.442695
      %v3147 = vpow.pop %v3146
      %v3148 = vmul.f32 %v2606, 1.442695
      %v3149 = vpow.pop %v3148
      %v3150 = vmul.f32 %v2607, 1.442695
      %v3151 = vpow.pop %v3150
      %v3152 = vmul.f32 %v2608, 1.442695
      %v3153 = vpow.pop %v3152
      %v3154 = vmul.f32 %v2609, 1.442695
      %v3155 = vpow.pop %v3154
      %v3156 = vmul.f32 %v2610, 1.442695
      %v3157 = vpow.pop %v3156
      %v3158 = vmul.f32 %v2611, 1.442695
      %v3159 = vpow.pop %v3158
      %v3160 = vmul.f32 %v2612, 1.442695
      %v3161 = vpow.pop %v3160
      %v3162 = vmul.f32 %v2613, 1.442695
      %v3163 = vpow.pop %v3162
      %v3164 = vmul.f32 %v2614, 1.442695
      %v3165 = vpow.pop %v3164
      %v3166 = vmul.f32 %v2615, 1.442695
      %v3167 = vpow.pop %v3166
      %v3168 = vmul.f32 %v2616, 1.442695
      %v3169 = vpow.pop %v3168
      %v3170 = vmul.f32 %v2617, 1.442695
      %v3171 = vpow.pop %v3170
      %v3172 = vmul.f32 %v2618, 1.442695
      %v3173 = vpow.pop %v3172
      %v3174 = vmul.f32 %v2619, 1.442695
      %v3175 = vpow.pop %v3174
      %v3176 = vmul.f32 %v2620, 1.442695
      %v3177 = vpow.pop %v3176
      %v3178 = vmul.f32 %v2621, 1.442695
      %v3179 = vpow.pop %v3178
      %v3180 = vmul.f32 %v2622, 1.442695
      %v3181 = vpow.pop %v3180
      %v3182 = vmul.f32 %v2623, 1.442695
      %v3183 = vpow.pop %v3182
      %v3184 = vmul.f32 %v2624, 1.442695
      %v3185 = vpow.pop %v3184
      %v3186 = vmul.f32 %v2625, 1.442695
      %v3187 = vpow.pop %v3186
      %v3188 = vmul.f32 %v2626, 1.442695
      %v3189 = vpow.pop %v3188
      %v3190 = vmul.f32 %v2627, 1.442695
      %v3191 = vpow.pop %v3190
      %v3192 = vmul.f32 %v2628, 1.442695
      %v3193 = vpow.pop %v3192
      %v3194 = vmul.f32 %v2629, 1.442695
      %v3195 = vpow.pop %v3194
      %v3196 = vmul.f32 %v2630, 1.442695
      %v3197 = vpow.pop %v3196
      %v3198 = vmul.f32 %v2631, 1.442695
      %v3199 = vpow.pop %v3198
      %v3200 = vmul.f32 %v2632, 1.442695
      %v3201 = vpow.pop %v3200
      %v3202 = vmul.f32 %v2633, 1.442695
      %v3203 = vpow.pop %v3202
      %v3204 = vmul.f32 %v2634, 1.442695
      %v3205 = vpow.pop %v3204
      %v3206 = vmul.f32 %v2635, 1.442695
      %v3207 = vpow.pop %v3206
      %v3208 = vmul.f32 %v2636, 1.442695
      %v3209 = vpow.pop %v3208
      %v3210 = vmul.f32 %v2637, 1.442695
      %v3211 = vpow.pop %v3210
      %v3212 = vmul.f32 %v2638, 1.442695
      %v3213 = vpow.pop %v3212
      %v3214 = vmul.f32 %v2639, 1.442695
      %v3215 = vpow.pop %v3214
      %v3216 = vmul.f32 %v2640, 1.442695
      %v3217 = vpow.pop %v3216
      %v3218 = vmul.f32 %v2641, 1.442695
      %v3219 = vpow.pop %v3218
      %v3220 = vmul.f32 %v2642, 1.442695
      %v3221 = vpow.pop %v3220
      %v3222 = vmul.f32 %v2643, 1.442695
      %v3223 = vpow.pop %v3222
      %v3224 = vmul.f32 %v2644, 1.442695
      %v3225 = vpow.pop %v3224
      %v3226 = vmul.f32 %v2645, 1.442695
      %v3227 = vpow.pop %v3226
      %v3228 = vmul.f32 %v2646, 1.442695
      %v3229 = vpow.pop %v3228
      %v3230 = vmul.f32 %v2647, 1.442695
      %v3231 = vpow.pop %v3230
      %v3232 = vmul.f32 %v2648, 1.442695
      %v3233 = vpow.pop %v3232
      %v3234 = vmul.f32 %v2649, 1.442695
      %v3235 = vpow.pop %v3234
      %v3236 = vmul.f32 %v2650, 1.442695
      %v3237 = vpow.pop %v3236
      %v3238 = vmul.f32 %v2651, 1.442695
      %v3239 = vpow.pop %v3238
      %v3240 = vmul.f32 %v2652, 1.442695
      %v3241 = vpow.pop %v3240
      %v3242 = vmul.f32 %v2653, 1.442695
      %v3243 = vpow.pop %v3242
      %v3244 = vmul.f32 %v2654, 1.442695
      %v3245 = vpow.pop %v3244
      %v3246 = vmul.f32 %v2655, 1.442695
      %v3247 = vpow.pop %v3246
      %v3248 = vmul.f32 %v2656, 1.442695
      %v3249 = vpow.pop %v3248
      %v3250 = vmul.f32 %v2657, 1.442695
      %v3251 = vpow.pop %v3250
      %v3252 = vmul.f32 %v2658, 1.442695
      %v3253 = vpow.pop %v3252
      %v3254 = vmul.f32 %v2659, 1.442695
      %v3255 = vpow.pop %v3254
      %v3256 = vmul.f32 %v2660, 1.442695
      %v3257 = vpow.pop %v3256
      %v3258 = vmul.f32 %v2661, 1.442695
      %v3259 = vpow.pop %v3258
      %v3260 = vmul.f32 %v2662, 1.442695
      %v3261 = vpow.pop %v3260
      %v3262 = vmul.f32 %v2663, 1.442695
      %v3263 = vpow.pop %v3262
      %v3264 = vmul.f32 %v2664, 1.442695
      %v3265 = vpow.pop %v3264
      %v3266 = vmul.f32 %v2665, 1.442695
      %v3267 = vpow.pop %v3266
      %v3268 = vmul.f32 %v2666, 1.442695
      %v3269 = vpow.pop %v3268
      %v3270 = vmul.f32 %v2667, 1.442695
      %v3271 = vpow.pop %v3270
      %v3272 = vmul.f32 %v2668, 1.442695
      %v3273 = vpow.pop %v3272
      %v3274 = vmul.f32 %v2669, 1.442695
      %v3275 = vpow.pop %v3274
      %v3276 = vmul.f32 %v2670, 1.442695
      %v3277 = vpow.pop %v3276
      %v3278 = vmul.f32 %v2671, 1.442695
      %v3279 = vpow.pop %v3278
      %v3280 = vmul.f32 %v2672, 1.442695
      %v3281 = vpow.pop %v3280
      %v3282 = vmul.f32 %v2673, 1.442695
      %v3283 = vpow.pop %v3282
      %v3284 = vmul.f32 %v2674, 1.442695
      %v3285 = vpow.pop %v3284
      %v3286 = vmul.f32 %v2675, 1.442695
      %v3287 = vpow.pop %v3286
      %v3288 = vmul.f32 %v2676, 1.442695
      %v3289 = vpow.pop %v3288
      %v3290 = vmul.f32 %v2677, 1.442695
      %v3291 = vpow.pop %v3290
      %v3292 = vmul.f32 %v2678, 1.442695
      %v3293 = vpow.pop %v3292
      %v3294 = vmul.f32 %v2679, 1.442695
      %v3295 = vpow.pop %v3294
      %v3296 = vmul.f32 %v2680, 1.442695
      %v3297 = vpow.pop %v3296
      %v3298 = vmul.f32 %v2681, 1.442695
      %v3299 = vpow.pop %v3298
      %v3300 = vmul.f32 %v2682, 1.442695
      %v3301 = vpow.pop %v3300
      %v3302 = vmul.f32 %v2683, 1.442695
      %v3303 = vpow.pop %v3302
      %v3304 = vmul.f32 %v2684, 1.442695
      %v3305 = vpow.pop %v3304
      %v3306 = vmul.f32 %v2685, 1.442695
      %v3307 = vpow.pop %v3306
      %v3308 = vmul.f32 %v2686, 1.442695
      %v3309 = vpow.pop %v3308
      %v3310 = vmul.f32 %v2687, 1.442695
      %v3311 = vpow.pop %v3310
      %v3312 = vmul.f32 %v2688, 1.442695
      %v3313 = vpow.pop %v3312
      %v3314 = vmul.f32 %v2689, 1.442695
      %v3315 = vpow.pop %v3314
      %v3316 = vmul.f32 %v2690, 1.442695
      %v3317 = vpow.pop %v3316
      %v3318 = vmul.f32 %v2691, 1.442695
      %v3319 = vpow.pop %v3318
      %v3320 = vmul.f32 %v2692, 1.442695
      %v3321 = vpow.pop %v3320
      %v3322 = vmul.f32 %v2693, 1.442695
      %v3323 = vpow.pop %v3322
      %v3324 = vmul.f32 %v2694, 1.442695
      %v3325 = vpow.pop %v3324
      %v3326 = vmul.f32 %v2695, 1.442695
      %v3327 = vpow.pop %v3326
      %v3328 = vmul.f32 %v2696, 1.442695
      %v3329 = vpow.pop %v3328
      %v3330 = vmul.f32 %v2697, 1.442695
      %v3331 = vpow.pop %v3330
      %v3332 = vmul.f32 %v2698, 1.442695
      %v3333 = vpow.pop %v3332
      %v3334 = vmul.f32 %v2699, 1.442695
      %v3335 = vpow.pop %v3334
      %v3336 = vmul.f32 %v2700, 1.442695
      %v3337 = vpow.pop %v3336
      %v3338 = vmul.f32 %v2701, 1.442695
      %v3339 = vpow.pop %v3338
      %v3340 = vmul.f32 %v2702, 1.442695
      %v3341 = vpow.pop %v3340
      %v3342 = vmul.f32 %v2703, 1.442695
      %v3343 = vpow.pop %v3342
      %v3344 = vmul.f32 %v2704, 1.442695
      %v3345 = vpow.pop %v3344
      %v3346 = vmul.f32 %v2705, 1.442695
      %v3347 = vpow.pop %v3346
      %v3348 = vmul.f32 %v2706, 1.442695
      %v3349 = vpow.pop %v3348
      %v3350 = vmul.f32 %v2707, 1.442695
      %v3351 = vpow.pop %v3350
      %v3352 = vmul.f32 %v2708, 1.442695
      %v3353 = vpow.pop %v3352
      %v3354 = vmul.f32 %v2709, 1.442695
      %v3355 = vpow.pop %v3354
      %v3356 = vmul.f32 %v2710, 1.442695
      %v3357 = vpow.pop %v3356
      %v3358 = vmul.f32 %v2711, 1.442695
      %v3359 = vpow.pop %v3358
      %v3360 = vmul.f32 %v2712, 1.442695
      %v3361 = vpow.pop %v3360
      %v3362 = vmul.f32 %v2713, 1.442695
      %v3363 = vpow.pop %v3362
      %v3364 = vmul.f32 %v2714, 1.442695
      %v3365 = vpow.pop %v3364
      %v3366 = vmul.f32 %v2715, 1.442695
      %v3367 = vpow.pop %v3366
      %v3368 = vmul.f32 %v2716, 1.442695
      %v3369 = vpow.pop %v3368
      %v3370 = vmul.f32 %v2717, 1.442695
      %v3371 = vpow.pop %v3370
      %v3372 = vmul.f32 %v2718, 1.442695
      %v3373 = vpow.pop %v3372
      %v3374 = vmul.f32 %v2719, 1.442695
      %v3375 = vpow.pop %v3374
      %v3376 = vmul.f32 %v2720, 1.442695
      %v3377 = vpow.pop %v3376
      %v3378 = vmul.f32 %v2721, 1.442695
      %v3379 = vpow.pop %v3378
      %v3380 = vmul.f32 %v2722, 1.442695
      %v3381 = vpow.pop %v3380
      %v3382 = vmul.f32 %v2723, 1.442695
      %v3383 = vpow.pop %v3382
      %v3384 = vmul.f32 %v2724, 1.442695
      %v3385 = vpow.pop %v3384
      %v3386 = vmul.f32 %v2725, 1.442695
      %v3387 = vpow.pop %v3386
      %v3388 = vmul.f32 %v2726, 1.442695
      %v3389 = vpow.pop %v3388
      %v3390 = vmul.f32 %v2727, 1.442695
      %v3391 = vpow.pop %v3390
      %v3392 = vmul.f32 %v2728, 1.442695
      %v3393 = vpow.pop %v3392
      %v3394 = vmul.f32 %v2729, 1.442695
      %v3395 = vpow.pop %v3394
      %v3396 = vmul.f32 %v2730, 1.442695
      %v3397 = vpow.pop %v3396
      %v3398 = vmul.f32 %v2731, 1.442695
      %v3399 = vpow.pop %v3398
      %v3400 = vmul.f32 %v2732, 1.442695
      %v3401 = vpow.pop %v3400
      %v3402 = vmul.f32 %v2733, 1.442695
      %v3403 = vpow.pop %v3402
      %v3404 = vmul.f32 %v2734, 1.442695
      %v3405 = vpow.pop %v3404
      %v3406 = vmul.f32 %v2735, 1.442695
      %v3407 = vpow.pop %v3406
      %v3408 = vmul.f32 %v2736, 1.442695
      %v3409 = vpow.pop %v3408
      %v3410 = vmul.f32 %v2737, 1.442695
      %v3411 = vpow.pop %v3410
      %v3412 = vmul.f32 %v2738, 1.442695
      %v3413 = vpow.pop %v3412
      %v3414 = vmul.f32 %v2739, 1.442695
      %v3415 = vpow.pop %v3414
      %v3416 = vmul.f32 %v2740, 1.442695
      %v3417 = vpow.pop %v3416
      %v3418 = vmul.f32 %v2741, 1.442695
      %v3419 = vpow.pop %v3418
      %v3420 = vmul.f32 %v2742, 1.442695
      %v3421 = vpow.pop %v3420
      %v3422 = vmul.f32 %v2743, 1.442695
      %v3423 = vpow.pop %v3422
      %v3424 = vmul.f32 %v2744, 1.442695
      %v3425 = vpow.pop %v3424
      %v3426 = vmul.f32 %v2745, 1.442695
      %v3427 = vpow.pop %v3426
      %v3428 = vmul.f32 %v2746, 1.442695
      %v3429 = vpow.pop %v3428
      %v3430 = vmul.f32 %v2747, 1.442695
      %v3431 = vpow.pop %v3430
      %v3432 = vmul.f32 %v2748, 1.442695
      %v3433 = vpow.pop %v3432
      %v3434 = vmul.f32 %v2749, 1.442695
      %v3435 = vpow.pop %v3434
      %v3436 = vmul.f32 %v2750, 1.442695
      %v3437 = vpow.pop %v3436
      %v3438 = vmul.f32 %v2751, 1.442695
      %v3439 = vpow.pop %v3438
      %v3440 = vmul.f32 %v2752, 1.442695
      %v3441 = vpow.pop %v3440
      %v3442 = vmul.f32 %v2753, 1.442695
      %v3443 = vpow.pop %v3442
      %v3444 = vmul.f32 %v2754, 1.442695
      %v3445 = vpow.pop %v3444
      %v3446 = vmul.f32 %v2755, 1.442695
      %v3447 = vpow.pop %v3446
      %v3448 = vmul.f32 %v2756, 1.442695
      %v3449 = vpow.pop %v3448
      %v3450 = vmul.f32 %v2757, 1.442695
      %v3451 = vpow.pop %v3450
      %v3452 = vmul.f32 %v2758, 1.442695
      %v3453 = vpow.pop %v3452
      %v3454 = vmul.f32 %v2759, 1.442695
      %v3455 = vpow.pop %v3454
      %v3456 = vmul.f32 %v2760, 1.442695
      %v3457 = vpow.pop %v3456
      %v3458 = vmul.f32 %v2761, 1.442695
      %v3459 = vpow.pop %v3458
      %v3460 = vmul.f32 %v2762, 1.442695
      %v3461 = vpow.pop %v3460
      %v3462 = vmul.f32 %v2763, 1.442695
      %v3463 = vpow.pop %v3462
      %v3464 = vmul.f32 %v2764, 1.442695
      %v3465 = vpow.pop %v3464
      %v3466 = vmul.f32 %v2765, 1.442695
      %v3467 = vpow.pop %v3466
      %v3468 = vmul.f32 %v2766, 1.442695
      %v3469 = vpow.pop %v3468
      %v3470 = vmul.f32 %v2767, 1.442695
      %v3471 = vpow.pop %v3470
      %v3472 = vmul.f32 %v2768, 1.442695
      %v3473 = vpow.pop %v3472
      %v3474 = vmul.f32 %v2769, 1.442695
      %v3475 = vpow.pop %v3474
      %v3476 = vmul.f32 %v2770, 1.442695
      %v3477 = vpow.pop %v3476
      %v3478 = vmul.f32 %v2771, 1.442695
      %v3479 = vpow.pop %v3478
      %v3480 = vmul.f32 %v2772, 1.442695
      %v3481 = vpow.pop %v3480
      %v3482 = vmul.f32 %v2773, 1.442695
      %v3483 = vpow.pop %v3482
      %v3484 = vmul.f32 %v2774, 1.442695
      %v3485 = vpow.pop %v3484
      %v3486 = vmul.f32 %v2775, 1.442695
      %v3487 = vpow.pop %v3486
      %v3488 = vmul.f32 %v2776, 1.442695
      %v3489 = vpow.pop %v3488
      %v3490 = vmul.f32 %v2777, 1.442695
      %v3491 = vpow.pop %v3490
      %v3492 = vmul.f32 %v2778, 1.442695
      %v3493 = vpow.pop %v3492
      %v3494 = vmul.f32 %v2779, 1.442695
      %v3495 = vpow.pop %v3494
      %v3496 = vmul.f32 %v2780, 1.442695
      %v3497 = vpow.pop %v3496
      %v3498 = vmul.f32 %v2781, 1.442695
      %v3499 = vpow.pop %v3498
      %v3500 = vmul.f32 %v2782, 1.442695
      %v3501 = vpow.pop %v3500
      %v3502 = vmul.f32 %v2783, 1.442695
      %v3503 = vpow.pop %v3502
      %v3504 = vmul.f32 %v2784, 1.442695
      %v3505 = vpow.pop %v3504
      %v3506 = vmul.f32 %v2785, 1.442695
      %v3507 = vpow.pop %v3506
      %v3508 = vmul.f32 %v2786, 1.442695
      %v3509 = vpow.pop %v3508
      %v3510 = vmul.f32 %v2787, 1.442695
      %v3511 = vpow.pop %v3510
      %v3512 = vmul.f32 %v2788, 1.442695
      %v3513 = vpow.pop %v3512
      %v3514 = vmul.f32 %v2789, 1.442695
      %v3515 = vpow.pop %v3514
      %v3516 = vmul.f32 %v2790, 1.442695
      %v3517 = vpow.pop %v3516
      %v3518 = vmul.f32 %v2791, 1.442695
      %v3519 = vpow.pop %v3518
      %v3520 = vmul.f32 %v2792, 1.442695
      %v3521 = vpow.pop %v3520
      %v3522 = vmul.f32 %v2793, 1.442695
      %v3523 = vpow.pop %v3522
      %v3524 = vmul.f32 %v2794, 1.442695
      %v3525 = vpow.pop %v3524
      %v3526 = vmul.f32 %v2795, 1.442695
      %v3527 = vpow.pop %v3526
      %v3528 = vmul.f32 %v2796, 1.442695
      %v3529 = vpow.pop %v3528
      %v3530 = vmul.f32 %v2797, 1.442695
      %v3531 = vpow.pop %v3530
      %v3532 = vmul.f32 %v2798, 1.442695
      %v3533 = vpow.pop %v3532
      %v3534 = vmul.f32 %v2799, 1.442695
      %v3535 = vpow.pop %v3534
      %v3536 = vmul.f32 %v2800, 1.442695
      %v3537 = vpow.pop %v3536
      %v3538 = vmul.f32 %v2801, 1.442695
      %v3539 = vpow.pop %v3538
      %v3540 = vmul.f32 %v2802, 1.442695
      %v3541 = vpow.pop %v3540
      %v3542 = vmul.f32 %v2803, 1.442695
      %v3543 = vpow.pop %v3542
      %v3544 = vmul.f32 %v2804, 1.442695
      %v3545 = vpow.pop %v3544
      %v3546 = vmul.f32 %v2805, 1.442695
      %v3547 = vpow.pop %v3546
      %v3548 = vmul.f32 %v2806, 1.442695
      %v3549 = vpow.pop %v3548
      %v3550 = vmul.f32 %v2807, 1.442695
      %v3551 = vpow.pop %v3550
      %v3552 = vmul.f32 %v2808, 1.442695
      %v3553 = vpow.pop %v3552
      %v3554 = vmul.f32 %v2809, 1.442695
      %v3555 = vpow.pop %v3554
      %v3556 = vmul.f32 %v2810, 1.442695
      %v3557 = vpow.pop %v3556
      %v3558 = vmul.f32 %v2811, 1.442695
      %v3559 = vpow.pop %v3558
      %v3560 = vmul.f32 %v2812, 1.442695
      %v3561 = vpow.pop %v3560
      %v3562 = vmul.f32 %v2813, 1.442695
      %v3563 = vpow.pop %v3562
      %v3564 = vmul.f32 %v2814, 1.442695
      %v3565 = vpow.pop %v3564
      %v3566 = vmul.f32 %v2815, 1.442695
      %v3567 = vpow.pop %v3566
      %v3568 = vmul.f32 %v2816, 1.442695
      %v3569 = vpow.pop %v3568
      %v3570 = vmul.f32 %v2817, 1.442695
      %v3571 = vpow.pop %v3570
      %v3572 = vmul.f32 %v2818, 1.442695
      %v3573 = vpow.pop %v3572
      %v3574 = vmul.f32 %v2819, 1.442695
      %v3575 = vpow.pop %v3574
      %v3576 = vmul.f32 %v2820, 1.442695
      %v3577 = vpow.pop %v3576
      %v3578 = vmul.f32 %v2821, 1.442695
      %v3579 = vpow.pop %v3578
      %v3580 = vmul.f32 %v2822, 1.442695
      %v3581 = vpow.pop %v3580
      %v3582 = vmul.f32 %v2823, 1.442695
      %v3583 = vpow.pop %v3582
      %v3584 = vmul.f32 %v2824, 1.442695
      %v3585 = vpow.pop %v3584
      %v3586 = vmul.f32 %v2825, 1.442695
      %v3587 = vpow.pop %v3586
      %v3588 = vmul.f32 %v2826, 1.442695
      %v3589 = vpow.pop %v3588
      %v3590 = vmul.f32 %v2827, 1.442695
      %v3591 = vpow.pop %v3590
      %v3592 = vmul.f32 %v2828, 1.442695
      %v3593 = vpow.pop %v3592
      %v3594 = vmul.f32 %v2829, 1.442695
      %v3595 = vpow.pop %v3594
      %v3596 = vmul.f32 %v2830, 1.442695
      %v3597 = vpow.pop %v3596
      %v3598 = vmul.f32 %v2831, 1.442695
      %v3599 = vpow.pop %v3598
      %v3600 = vmul.f32 %v2832, 1.442695
      %v3601 = vpow.pop %v3600
      %v3602 = vmul.f32 %v2833, 1.442695
      %v3603 = vpow.pop %v3602
      %v3604 = vmul.f32 %v2834, 1.442695
      %v3605 = vpow.pop %v3604
      %v3606 = vmul.f32 %v2835, 1.442695
      %v3607 = vpow.pop %v3606
      %v3608 = vmul.f32 %v2836, 1.442695
      %v3609 = vpow.pop %v3608
      %v3610 = vmul.f32 %v2837, 1.442695
      %v3611 = vpow.pop %v3610
      %v3612 = vmul.f32 %v2838, 1.442695
      %v3613 = vpow.pop %v3612
      %v3614 = vmul.f32 %v2839, 1.442695
      %v3615 = vpow.pop %v3614
      %v3616 = vmul.f32 %v2840, 1.442695
      %v3617 = vpow.pop %v3616
      %v3618 = vmul.f32 %v2841, 1.442695
      %v3619 = vpow.pop %v3618
      %v3620 = vmul.f32 %v2842, 1.442695
      %v3621 = vpow.pop %v3620
      %v3622 = vmul.f32 %v2843, 1.442695
      %v3623 = vpow.pop %v3622
      %v3624 = vmul.f32 %v2844, 1.442695
      %v3625 = vpow.pop %v3624
      %v3626 = vmul.f32 %v2845, 1.442695
      %v3627 = vpow.pop %v3626
      %v3628 = vmul.f32 %v2846, 1.442695
      %v3629 = vpow.pop %v3628
      %v3630 = vmul.f32 %v2847, 1.442695
      %v3631 = vpow.pop %v3630
      %v3632 = vmul.f32 %v2848, 1.442695
      %v3633 = vpow.pop %v3632
      %v3634 = vmul.f32 %v2849, 1.442695
      %v3635 = vpow.pop %v3634
      %v3636 = vmul.f32 %v2850, 1.442695
      %v3637 = vpow.pop %v3636
      %v3638 = vmul.f32 %v2851, 1.442695
      %v3639 = vpow.pop %v3638
      %v3640 = vmul.f32 %v2852, 1.442695
      %v3641 = vpow.pop %v3640
      %v3642 = vmul.f32 %v2853, 1.442695
      %v3643 = vpow.pop %v3642
      %v3644 = vmul.f32 %v2854, 1.442695
      %v3645 = vpow.pop %v3644
      %v3646 = vmul.f32 %v2855, 1.442695
      %v3647 = vpow.pop %v3646
      %v3648 = vmul.f32 %v2856, 1.442695
      %v3649 = vpow.pop %v3648
      %v3650 = vmul.f32 %v2857, 1.442695
      %v3651 = vpow.pop %v3650
      %v3652 = vmul.f32 %v2858, 1.442695
      %v3653 = vpow.pop %v3652
      %v3654 = vmul.f32 %v2859, 1.442695
      %v3655 = vpow.pop %v3654
      %v3656 = vmul.f32 %v2860, 1.442695
      %v3657 = vpow.pop %v3656
      %v3658 = vmul.f32 %v2861, 1.442695
      %v3659 = vpow.pop %v3658
      %v3660 = vmul.f32 %v2862, 1.442695
      %v3661 = vpow.pop %v3660
      %v3662 = vmul.f32 %v2863, 1.442695
      %v3663 = vpow.pop %v3662
      %v3664 = vmul.f32 %v2864, 1.442695
      %v3665 = vpow.pop %v3664
      %v3666 = vmul.f32 %v2865, 1.442695
      %v3667 = vpow.pop %v3666
      %v3668 = vmul.f32 %v2866, 1.442695
      %v3669 = vpow.pop %v3668
      %v3670 = vmul.f32 %v2867, 1.442695
      %v3671 = vpow.pop %v3670
      %v3672 = vmul.f32 %v2868, 1.442695
      %v3673 = vpow.pop %v3672
      %v3674 = vmul.f32 %v2869, 1.442695
      %v3675 = vpow.pop %v3674
      %v3676 = vmul.f32 %v2870, 1.442695
      %v3677 = vpow.pop %v3676
      %v3678 = vmul.f32 %v2871, 1.442695
      %v3679 = vpow.pop %v3678
      %v3680 = vmul.f32 %v2872, 1.442695
      %v3681 = vpow.pop %v3680
      %v3682 = vmul.f32 %v2873, 1.442695
      %v3683 = vpow.pop %v3682
      %v3684 = vmul.f32 %v2874, 1.442695
      %v3685 = vpow.pop %v3684
      %v3686 = vmul.f32 %v2875, 1.442695
      %v3687 = vpow.pop %v3686
      %v3688 = vmul.f32 %v2876, 1.442695
      %v3689 = vpow.pop %v3688
      %v3690 = vmul.f32 %v2877, 1.442695
      %v3691 = vpow.pop %v3690
      %v3692 = vmul.f32 %v2878, 1.442695
      %v3693 = vpow.pop %v3692
      %v3694 = vmul.f32 %v2879, 1.442695
      %v3695 = vpow.pop %v3694
      %v3696 = vmul.f32 %v2880, 1.442695
      %v3697 = vpow.pop %v3696
      %v3698 = vmul.f32 %v2881, 1.442695
      %v3699 = vpow.pop %v3698
      %v3700 = vmul.f32 %v2882, 1.442695
      %v3701 = vpow.pop %v3700
      %v3702 = vmul.f32 %v2883, 1.442695
      %v3703 = vpow.pop %v3702
      %v3704 = vmul.f32 %v2884, 1.442695
      %v3705 = vpow.pop %v3704
      %v3706 = vmul.f32 %v2885, 1.442695
      %v3707 = vpow.pop %v3706
      %v3708 = vmul.f32 %v2886, 1.442695
      %v3709 = vpow.pop %v3708
      %v3710 = vmul.f32 %v2887, 1.442695
      %v3711 = vpow.pop %v3710
      %v3712 = vmul.f32 %v2888, 1.442695
      %v3713 = vpow.pop %v3712
      %v3714 = vmul.f32 %v2889, 1.442695
      %v3715 = vpow.pop %v3714
      %v3716 = vmul.f32 %v2890, 1.442695
      %v3717 = vpow.pop %v3716
      %v3718 = vmul.f32 %v2891, 1.442695
      %v3719 = vpow.pop %v3718
      %v3720 = vmul.f32 %v2892, 1.442695
      %v3721 = vpow.pop %v3720
      %v3722 = vmul.f32 %v2893, 1.442695
      %v3723 = vpow.pop %v3722
      %v3724 = vmul.f32 %v2894, 1.442695
      %v3725 = vpow.pop %v3724
      %v3726 = vmul.f32 %v2895, 1.442695
      %v3727 = vpow.pop %v3726
      %v3728 = vmul.f32 %v2896, 1.442695
      %v3729 = vpow.pop %v3728
      %v3730 = vmul.f32 %v2897, 1.442695
      %v3731 = vpow.pop %v3730
      %v3732 = vmul.f32 %v2898, 1.442695
      %v3733 = vpow.pop %v3732
      %v3734 = vmul.f32 %v2899, 1.442695
      %v3735 = vpow.pop %v3734
      %v3736 = vmul.f32 %v2900, 1.442695
      %v3737 = vpow.pop %v3736
      %v3738 = vmul.f32 %v2901, 1.442695
      %v3739 = vpow.pop %v3738
      %v3740 = vmul.f32 %v2902, 1.442695
      %v3741 = vpow.pop %v3740
      %v3742 = vmul.f32 %v2903, 1.442695
      %v3743 = vpow.pop %v3742
      %v3744 = vmul.f32 %v2904, 1.442695
      %v3745 = vpow.pop %v3744
      %v3746 = vmul.f32 %v2905, 1.442695
      %v3747 = vpow.pop %v3746
      %v3748 = vmul.f32 %v2906, 1.442695
      %v3749 = vpow.pop %v3748
      %v3750 = vmul.f32 %v2907, 1.442695
      %v3751 = vpow.pop %v3750
      %v3752 = vmul.f32 %v2908, 1.442695
      %v3753 = vpow.pop %v3752
      %v3754 = vmul.f32 %v2909, 1.442695
      %v3755 = vpow.pop %v3754
      %v3756 = vmul.f32 %v2910, 1.442695
      %v3757 = vpow.pop %v3756
      %v3758 = vmul.f32 %v2911, 1.442695
      %v3759 = vpow.pop %v3758
      %v3760 = vmul.f32 %v2912, 1.442695
      %v3761 = vpow.pop %v3760
      %v3762 = vmul.f32 %v2913, 1.442695
      %v3763 = vpow.pop %v3762
      %v3764 = vmul.f32 %v2914, 1.442695
      %v3765 = vpow.pop %v3764
      %v3766 = vmul.f32 %v2915, 1.442695
      %v3767 = vpow.pop %v3766
      %v3768 = vmul.f32 %v2916, 1.442695
      %v3769 = vpow.pop %v3768
      %v3770 = vmul.f32 %v2917, 1.442695
      %v3771 = vpow.pop %v3770
      %v3772 = vmul.f32 %v2918, 1.442695
      %v3773 = vpow.pop %v3772
      %v3774 = vmul.f32 %v2919, 1.442695
      %v3775 = vpow.pop %v3774
      %v3776 = vmul.f32 %v2920, 1.442695
      %v3777 = vpow.pop %v3776
      %v3778 = vmul.f32 %v2921, 1.442695
      %v3779 = vpow.pop %v3778
      %v3780 = vmul.f32 %v2922, 1.442695
      %v3781 = vpow.pop %v3780
      %v3782 = vmul.f32 %v2923, 1.442695
      %v3783 = vpow.pop %v3782
      %v3784 = vmul.f32 %v2924, 1.442695
      %v3785 = vpow.pop %v3784
      %v3786 = vmul.f32 %v2925, 1.442695
      %v3787 = vpow.pop %v3786
      %v3788 = vmul.f32 %v2926, 1.442695
      %v3789 = vpow.pop %v3788
      %v3790 = vmul.f32 %v2927, 1.442695
      %v3791 = vpow.pop %v3790
      %v3792 = vmul.f32 %v2928, 1.442695
      %v3793 = vpow.pop %v3792
      %v3794 = vmul.f32 %v2929, 1.442695
      %v3795 = vpow.pop %v3794
      %v3796 = vmul.f32 %v2930, 1.442695
      %v3797 = vpow.pop %v3796
      %v3798 = vmul.f32 %v2931, 1.442695
      %v3799 = vpow.pop %v3798
      %v3800 = vmul.f32 %v2932, 1.442695
      %v3801 = vpow.pop %v3800
      %v3802 = vmul.f32 %v2933, 1.442695
      %v3803 = vpow.pop %v3802
      %v3804 = vmul.f32 %v2934, 1.442695
      %v3805 = vpow.pop %v3804
      %v3806 = vmul.f32 %v2935, 1.442695
      %v3807 = vpow.pop %v3806
      %v3808 = vmul.f32 %v2936, 1.442695
      %v3809 = vpow.pop %v3808
      %v3810 = vmul.f32 %v2937, 1.442695
      %v3811 = vpow.pop %v3810
      %v3812 = vmul.f32 %v2938, 1.442695
      %v3813 = vpow.pop %v3812
      %v3814 = vmul.f32 %v2939, 1.442695
      %v3815 = vpow.pop %v3814
      %v3816 = vmul.f32 %v2940, 1.442695
      %v3817 = vpow.pop %v3816
      %v3818 = vmul.f32 %v2941, 1.442695
      %v3819 = vpow.pop %v3818
      %v3820 = vmul.f32 %v2942, 1.442695
      %v3821 = vpow.pop %v3820
      %v3822 = vmul.f32 %v2943, 1.442695
      %v3823 = vpow.pop %v3822
      %v3824 = vmul.f32 %v2944, 1.442695
      %v3825 = vpow.pop %v3824
      %v3826 = vmul.f32 %v2945, 1.442695
      %v3827 = vpow.pop %v3826
      %v3828 = vmul.f32 %v2946, 1.442695
      %v3829 = vpow.pop %v3828
      %v3830 = vmul.f32 %v2947, 1.442695
      %v3831 = vpow.pop %v3830
      %v3832 = vmul.f32 %v2948, 1.442695
      %v3833 = vpow.pop %v3832
      %v3834 = vmul.f32 %v2949, 1.442695
      %v3835 = vpow.pop %v3834
      %v3836 = vmul.f32 %v2950, 1.442695
      %v3837 = vpow.pop %v3836
      %v3838 = vmul.f32 %v2951, 1.442695
      %v3839 = vpow.pop %v3838
      %v3840 = vmul.f32 %v2952, 1.442695
      %v3841 = vpow.pop %v3840
      %v3842 = vmul.f32 %v2953, 1.442695
      %v3843 = vpow.pop %v3842
      %v3844 = vmul.f32 %v2954, 1.442695
      %v3845 = vpow.pop %v3844
      %v3846 = vmul.f32 %v2955, 1.442695
      %v3847 = vpow.pop %v3846
      %v3848 = vmul.f32 %v2956, 1.442695
      %v3849 = vpow.pop %v3848
      %v3850 = vmul.f32 %v2957, 1.442695
      %v3851 = vpow.pop %v3850
      %v3852 = vmul.f32 %v2958, 1.442695
      %v3853 = vpow.pop %v3852
      %v3854 = vmul.f32 %v2959, 1.442695
      %v3855 = vpow.pop %v3854
      %v3856 = vmul.f32 %v2960, 1.442695
      %v3857 = vpow.pop %v3856
      %v3858 = vmul.f32 %v2961, 1.442695
      %v3859 = vpow.pop %v3858
      %v3860 = vmul.f32 %v2962, 1.442695
      %v3861 = vpow.pop %v3860
      %v3862 = vmul.f32 %v2963, 1.442695
      %v3863 = vpow.pop %v3862
      %v3864 = vmul.f32 %v2964, 1.442695
      %v3865 = vpow.pop %v3864
      %v3866 = vmul.f32 %v2965, 1.442695
      %v3867 = vpow.pop %v3866
      %v3868 = vmul.f32 %v2966, 1.442695
      %v3869 = vpow.pop %v3868
      %v3870 = vmul.f32 %v2967, 1.442695
      %v3871 = vpow.pop %v3870
      %v3872 = vmul.f32 %v2968, 1.442695
      %v3873 = vpow.pop %v3872
      %v3874 = vmul.f32 %v2969, 1.442695
      %v3875 = vpow.pop %v3874
      %v3876 = vmul.f32 %v2970, 1.442695
      %v3877 = vpow.pop %v3876
      %v3878 = vmul.f32 %v2971, 1.442695
      %v3879 = vpow.pop %v3878
      %v3880 = vmul.f32 %v2972, 1.442695
      %v3881 = vpow.pop %v3880
      %v3882 = vmul.f32 %v2973, 1.442695
      %v3883 = vpow.pop %v3882
      %v3884 = vmul.f32 %v2974, 1.442695
      %v3885 = vpow.pop %v3884
      %v3886 = vmul.f32 %v2975, 1.442695
      %v3887 = vpow.pop %v3886
      %v3888 = vmul.f32 %v2976, 1.442695
      %v3889 = vpow.pop %v3888
      %v3890 = vmul.f32 %v2977, 1.442695
      %v3891 = vpow.pop %v3890
      %v3892 = vmul.f32 %v2978, 1.442695
      %v3893 = vpow.pop %v3892
      %v3894 = vmul.f32 %v2979, 1.442695
      %v3895 = vpow.pop %v3894
      %v3896 = vmul.f32 %v2980, 1.442695
      %v3897 = vpow.pop %v3896
      %v3898 = vmul.f32 %v2981, 1.442695
      %v3899 = vpow.pop %v3898
      %v3900 = vmul.f32 %v2982, 1.442695
      %v3901 = vpow.pop %v3900
      %v3902 = vmul.f32 %v2983, 1.442695
      %v3903 = vpow.pop %v3902
      %v3904 = vmul.f32 %v2984, 1.442695
      %v3905 = vpow.pop %v3904
      %v3906 = vmul.f32 %v2985, 1.442695
      %v3907 = vpow.pop %v3906
      %v3908 = vmul.f32 %v2986, 1.442695
      %v3909 = vpow.pop %v3908
      %v3910 = vmul.f32 %v2987, 1.442695
      %v3911 = vpow.pop %v3910
      %v3912 = vmul.f32 %v2988, 1.442695
      %v3913 = vpow.pop %v3912
      %v3914 = vmul.f32 %v2989, 1.442695
      %v3915 = vpow.pop %v3914
      %v3916 = vmul.f32 %v2990, 1.442695
      %v3917 = vpow.pop %v3916
      %v3918 = vmul.f32 %v2991, 1.442695
      %v3919 = vpow.pop %v3918
      %v3920 = vmul.f32 %v2992, 1.442695
      %v3921 = vpow.pop %v3920
      %v3922 = vmul.f32 %v2993, 1.442695
      %v3923 = vpow.pop %v3922
      %v3924 = vmul.f32 %v2994, 1.442695
      %v3925 = vpow.pop %v3924
      %v3926 = vmul.f32 %v2995, 1.442695
      %v3927 = vpow.pop %v3926
      %v3928 = vmul.f32 %v2996, 1.442695
      %v3929 = vpow.pop %v3928
      %v3930 = vmul.f32 %v2997, 1.442695
      %v3931 = vpow.pop %v3930
      %v3932 = vmul.f32 %v2998, 1.442695
      %v3933 = vpow.pop %v3932
      %v3934 = vmul.f32 %v2999, 1.442695
      %v3935 = vpow.pop %v3934
      %v3936 = vmul.f32 %v3000, 1.442695
      %v3937 = vpow.pop %v3936
      %v3938 = vmul.f32 %v3001, 1.442695
      %v3939 = vpow.pop %v3938
      %v3940 = vmul.f32 %v3002, 1.442695
      %v3941 = vpow.pop %v3940
      %v3942 = vmul.f32 %v3003, 1.442695
      %v3943 = vpow.pop %v3942
      %v3944 = vmul.f32 %v3004, 1.442695
      %v3945 = vpow.pop %v3944
      %v3946 = vmul.f32 %v3005, 1.442695
      %v3947 = vpow.pop %v3946
      %v3948 = vmul.f32 %v3006, 1.442695
      %v3949 = vpow.pop %v3948
      %v3950 = vmul.f32 %v3007, 1.442695
      %v3951 = vpow.pop %v3950
      %v3952 = vmul.f32 %v3008, 1.442695
      %v3953 = vpow.pop %v3952
      %v3954 = vmul.f32 %v3009, 1.442695
      %v3955 = vpow.pop %v3954
      %v3956 = vmul.f32 %v3010, 1.442695
      %v3957 = vpow.pop %v3956
      %v3958 = vmul.f32 %v3011, 1.442695
      %v3959 = vpow.pop %v3958
      %v3960 = vmul.f32 %v3012, 1.442695
      %v3961 = vpow.pop %v3960
      %v3962 = vmul.f32 %v3013, 1.442695
      %v3963 = vpow.pop %v3962
      %v3964 = vmul.f32 %v3014, 1.442695
      %v3965 = vpow.pop %v3964
      %v3966 = vmul.f32 %v3015, 1.442695
      %v3967 = vpow.pop %v3966
      %v3968 = vmul.f32 %v3016, 1.442695
      %v3969 = vpow.pop %v3968
      %v3970 = vmul.f32 %v3017, 1.442695
      %v3971 = vpow.pop %v3970
      %v3972 = vmul.f32 %v3018, 1.442695
      %v3973 = vpow.pop %v3972
      %v3974 = vmul.f32 %v3019, 1.442695
      %v3975 = vpow.pop %v3974
      %v3976 = vmul.f32 %v3020, 1.442695
      %v3977 = vpow.pop %v3976
      %v3978 = vmul.f32 %v3021, 1.442695
      %v3979 = vpow.pop %v3978
      %v3980 = vmul.f32 %v3022, 1.442695
      %v3981 = vpow.pop %v3980
      %v3982 = vmul.f32 %v3023, 1.442695
      %v3983 = vpow.pop %v3982
      %v3984 = vmul.f32 %v3024, 1.442695
      %v3985 = vpow.pop %v3984
      %v3986 = vmul.f32 %v3025, 1.442695
      %v3987 = vpow.pop %v3986
      %v3988 = vmul.f32 %v3026, 1.442695
      %v3989 = vpow.pop %v3988
      %v3990 = vmul.f32 %v3027, 1.442695
      %v3991 = vpow.pop %v3990
      %v3992 = vmul.f32 %v3028, 1.442695
      %v3993 = vpow.pop %v3992
      %v3994 = vmul.f32 %v3029, 1.442695
      %v3995 = vpow.pop %v3994
      %v3996 = vmul.f32 %v3030, 1.442695
      %v3997 = vpow.pop %v3996
      %v3998 = vmul.f32 %v3031, 1.442695
      %v3999 = vpow.pop %v3998
      %v4000 = vmul.f32 %v3032, 1.442695
      %v4001 = vpow.pop %v4000
      %v4002 = vmul.f32 %v3033, 1.442695
      %v4003 = vpow.pop %v4002
      %v4004 = vmul.f32 %v3034, 1.442695
      %v4005 = vpow.pop %v4004
      %v4006 = vmul.f32 %v3035, 1.442695
      %v4007 = vpow.pop %v4006
      %v4008 = vmul.f32 %v3036, 1.442695
      %v4009 = vpow.pop %v4008
      %v4010 = vmul.f32 %v3037, 1.442695
      %v4011 = vpow.pop %v4010
      %v4012 = vmul.f32 %v3038, 1.442695
      %v4013 = vpow.pop %v4012
      %v4014 = vmul.f32 %v3039, 1.442695
      %v4015 = vpow.pop %v4014
      %v4016 = vmul.f32 %v3040, 1.442695
      %v4017 = vpow.pop %v4016
      %v4018 = vmul.f32 %v3041, 1.442695
      %v4019 = vpow.pop %v4018
      %v4020 = vmul.f32 %v3042, 1.442695
      %v4021 = vpow.pop %v4020
      %v4022 = vmul.f32 %v3043, 1.442695
      %v4023 = vpow.pop %v4022
      %v4024 = vmul.f32 %v3044, 1.442695
      %v4025 = vpow.pop %v4024
      %v4026 = vmul.f32 %v3045, 1.442695
      %v4027 = vpow.pop %v4026
      %v4028 = vmul.f32 %v3046, 1.442695
      %v4029 = vpow.pop %v4028
      %v4030 = vmul.f32 %v3047, 1.442695
      %v4031 = vpow.pop %v4030
      %v4032 = vmul.f32 %v3048, 1.442695
      %v4033 = vpow.pop %v4032
      %v4034 = vmul.f32 %v3049, 1.442695
      %v4035 = vpow.pop %v4034
      %v4036 = vmul.f32 %v3050, 1.442695
      %v4037 = vpow.pop %v4036
      %v4038 = vmul.f32 %v3051, 1.442695
      %v4039 = vpow.pop %v4038
      %v4040 = vmul.f32 %v3052, 1.442695
      %v4041 = vpow.pop %v4040
      %v4042 = vmul.f32 %v3053, 1.442695
      %v4043 = vpow.pop %v4042
      %v4044 = vmul.f32 %v3054, 1.442695
      %v4045 = vpow.pop %v4044
      %v4046 = vmul.f32 %v3055, 1.442695
      %v4047 = vpow.pop %v4046
      %v4048 = vmul.f32 %v3056, 1.442695
      %v4049 = vpow.pop %v4048
      %v4050 = vmul.f32 %v3057, 1.442695
      %v4051 = vpow.pop %v4050
      %v4052 = vmul.f32 %v3058, 1.442695
      %v4053 = vpow.pop %v4052
      %v4054 = vmul.f32 %v3059, 1.442695
      %v4055 = vpow.pop %v4054
      %v4056 = vmul.f32 %v3060, 1.442695
      %v4057 = vpow.pop %v4056
      %v4058 = vmul.f32 %v3061, 1.442695
      %v4059 = vpow.pop %v4058
      %v4060 = vmul.f32 %v3062, 1.442695
      %v4061 = vpow.pop %v4060
      %v4062 = vmul.f32 %v3063, 1.442695
      %v4063 = vpow.pop %v4062
      %v4064 = vmul.f32 %v3064, 1.442695
      %v4065 = vpow.pop %v4064
      %v4066 = vmul.f32 %v3065, 1.442695
      %v4067 = vpow.pop %v4066
      %v4068 = vmul.f32 %v3066, 1.442695
      %v4069 = vpow.pop %v4068
      %v4070 = vmul.f32 %v3067, 1.442695
      %v4071 = vpow.pop %v4070
      %v4072 = vmul.f32 %v3068, 1.442695
      %v4073 = vpow.pop %v4072
      %v4074 = vmul.f32 %v3069, 1.442695
      %v4075 = vpow.pop %v4074
      %v4076 = vmul.f32 %v3070, 1.442695
      %v4077 = vpow.pop %v4076
      %v4078 = vmul.f32 %v3071, 1.442695
      %v4079 = vpow.pop %v4078
      %v4080 = vmul.f32 %v3072, 1.442695
      %v4081 = vpow.pop %v4080
      %v4082 = vmul.f32 %v3073, 1.442695
      %v4083 = vpow.pop %v4082
      %v4084 = vmul.f32 %v3074, 1.442695
      %v4085 = vpow.pop %v4084
      %v4086 = vmul.f32 %v3075, 1.442695
      %v4087 = vpow.pop %v4086
      %v4088 = vmul.f32 %v3076, 1.442695
      %v4089 = vpow.pop %v4088
      %v4090 = vmul.f32 %v3077, 1.442695
      %v4091 = vpow.pop %v4090
      %v4092 = vmul.f32 %v3078, 1.442695
      %v4093 = vpow.pop %v4092
      %v4094 = vmul.f32 %v3079, 1.442695
      %v4095 = vpow.pop %v4094
      %v4096 = vmul.f32 %v3080, 1.442695
      %v4097 = vpow.pop %v4096
      %v4098 = vmul.f32 %v3081, 1.442695
      %v4099 = vpow.pop %v4098
      %v4100 = vmul.f32 %v3082, 1.442695
      %v4101 = vpow.pop %v4100
      %v4102 = vmul.f32 %v3083, 1.442695
      %v4103 = vpow.pop %v4102
      %v4104 = vmul.f32 %v3084, 1.442695
      %v4105 = vpow.pop %v4104
      %v4106 = vmul.f32 %v3085, 1.442695
      %v4107 = vpow.pop %v4106
      %v4108 = vmul.f32 %v3086, 1.442695
      %v4109 = vpow.pop %v4108
      %v4110 = vmul.f32 %v3087, 1.442695
      %v4111 = vpow.pop %v4110
      %v4112 = vpack.c.bf16 %v3097, %v3089
      %v4113 = vpack.c.bf16 %v3099, %v3091
      %v4114 = vpack.c.bf16 %v3101, %v3093
      %v4115 = vpack.c.bf16 %v3103, %v3095
      %v4116 = vpack.c.bf16 %v3113, %v3105
      %v4117 = vpack.c.bf16 %v3115, %v3107
      %v4118 = vpack.c.bf16 %v3117, %v3109
      %v4119 = vpack.c.bf16 %v3119, %v3111
      %v4120 = vpack.c.bf16 %v3129, %v3121
      %v4121 = vpack.c.bf16 %v3131, %v3123
      %v4122 = vpack.c.bf16 %v3133, %v3125
      %v4123 = vpack.c.bf16 %v3135, %v3127
      %v4124 = vpack.c.bf16 %v3145, %v3137
      %v4125 = vpack.c.bf16 %v3147, %v3139
      %v4126 = vpack.c.bf16 %v3149, %v3141
      %v4127 = vpack.c.bf16 %v3151, %v3143
      %v4128 = vpack.c.bf16 %v3161, %v3153
      %v4129 = vpack.c.bf16 %v3163, %v3155
      %v4130 = vpack.c.bf16 %v3165, %v3157
      %v4131 = vpack.c.bf16 %v3167, %v3159
      %v4132 = vpack.c.bf16 %v3177, %v3169
      %v4133 = vpack.c.bf16 %v3179, %v3171
      %v4134 = vpack.c.bf16 %v3181, %v3173
      %v4135 = vpack.c.bf16 %v3183, %v3175
      %v4136 = vpack.c.bf16 %v3193, %v3185
      %v4137 = vpack.c.bf16 %v3195, %v3187
      %v4138 = vpack.c.bf16 %v3197, %v3189
      %v4139 = vpack.c.bf16 %v3199, %v3191
      %v4140 = vpack.c.bf16 %v3209, %v3201
      %v4141 = vpack.c.bf16 %v3211, %v3203
      %v4142 = vpack.c.bf16 %v3213, %v3205
      %v4143 = vpack.c.bf16 %v3215, %v3207
      %v4144 = vpack.c.bf16 %v3225, %v3217
      %v4145 = vpack.c.bf16 %v3227, %v3219
      %v4146 = vpack.c.bf16 %v3229, %v3221
      %v4147 = vpack.c.bf16 %v3231, %v3223
      %v4148 = vpack.c.bf16 %v3241, %v3233
      %v4149 = vpack.c.bf16 %v3243, %v3235
      %v4150 = vpack.c.bf16 %v3245, %v3237
      %v4151 = vpack.c.bf16 %v3247, %v3239
      %v4152 = vpack.c.bf16 %v3257, %v3249
      %v4153 = vpack.c.bf16 %v3259, %v3251
      %v4154 = vpack.c.bf16 %v3261, %v3253
      %v4155 = vpack.c.bf16 %v3263, %v3255
      %v4156 = vpack.c.bf16 %v3273, %v3265
      %v4157 = vpack.c.bf16 %v3275, %v3267
      %v4158 = vpack.c.bf16 %v3277, %v3269
      %v4159 = vpack.c.bf16 %v3279, %v3271
      %v4160 = vpack.c.bf16 %v3289, %v3281
      %v4161 = vpack.c.bf16 %v3291, %v3283
      %v4162 = vpack.c.bf16 %v3293, %v3285
      %v4163 = vpack.c.bf16 %v3295, %v3287
      %v4164 = vpack.c.bf16 %v3305, %v3297
      %v4165 = vpack.c.bf16 %v3307, %v3299
      %v4166 = vpack.c.bf16 %v3309, %v3301
      %v4167 = vpack.c.bf16 %v3311, %v3303
      %v4168 = vpack.c.bf16 %v3321, %v3313
      %v4169 = vpack.c.bf16 %v3323, %v3315
      %v4170 = vpack.c.bf16 %v3325, %v3317
      %v4171 = vpack.c.bf16 %v3327, %v3319
      %v4172 = vpack.c.bf16 %v3337, %v3329
      %v4173 = vpack.c.bf16 %v3339, %v3331
      %v4174 = vpack.c.bf16 %v3341, %v3333
      %v4175 = vpack.c.bf16 %v3343, %v3335
      %v4176 = vpack.c.bf16 %v3353, %v3345
      %v4177 = vpack.c.bf16 %v3355, %v3347
      %v4178 = vpack.c.bf16 %v3357, %v3349
      %v4179 = vpack.c.bf16 %v3359, %v3351
      %v4180 = vpack.c.bf16 %v3369, %v3361
      %v4181 = vpack.c.bf16 %v3371, %v3363
      %v4182 = vpack.c.bf16 %v3373, %v3365
      %v4183 = vpack.c.bf16 %v3375, %v3367
      %v4184 = vpack.c.bf16 %v3385, %v3377
      %v4185 = vpack.c.bf16 %v3387, %v3379
      %v4186 = vpack.c.bf16 %v3389, %v3381
      %v4187 = vpack.c.bf16 %v3391, %v3383
      %v4188 = vpack.c.bf16 %v3401, %v3393
      %v4189 = vpack.c.bf16 %v3403, %v3395
      %v4190 = vpack.c.bf16 %v3405, %v3397
      %v4191 = vpack.c.bf16 %v3407, %v3399
      %v4192 = vpack.c.bf16 %v3417, %v3409
      %v4193 = vpack.c.bf16 %v3419, %v3411
      %v4194 = vpack.c.bf16 %v3421, %v3413
      %v4195 = vpack.c.bf16 %v3423, %v3415
      %v4196 = vpack.c.bf16 %v3433, %v3425
      %v4197 = vpack.c.bf16 %v3435, %v3427
      %v4198 = vpack.c.bf16 %v3437, %v3429
      %v4199 = vpack.c.bf16 %v3439, %v3431
      %v4200 = vpack.c.bf16 %v3449, %v3441
      %v4201 = vpack.c.bf16 %v3451, %v3443
      %v4202 = vpack.c.bf16 %v3453, %v3445
      %v4203 = vpack.c.bf16 %v3455, %v3447
      %v4204 = vpack.c.bf16 %v3465, %v3457
      %v4205 = vpack.c.bf16 %v3467, %v3459
      %v4206 = vpack.c.bf16 %v3469, %v3461
      %v4207 = vpack.c.bf16 %v3471, %v3463
      %v4208 = vpack.c.bf16 %v3481, %v3473
      %v4209 = vpack.c.bf16 %v3483, %v3475
      %v4210 = vpack.c.bf16 %v3485, %v3477
      %v4211 = vpack.c.bf16 %v3487, %v3479
      %v4212 = vpack.c.bf16 %v3497, %v3489
      %v4213 = vpack.c.bf16 %v3499, %v3491
      %v4214 = vpack.c.bf16 %v3501, %v3493
      %v4215 = vpack.c.bf16 %v3503, %v3495
      %v4216 = vpack.c.bf16 %v3513, %v3505
      %v4217 = vpack.c.bf16 %v3515, %v3507
      %v4218 = vpack.c.bf16 %v3517, %v3509
      %v4219 = vpack.c.bf16 %v3519, %v3511
      %v4220 = vpack.c.bf16 %v3529, %v3521
      %v4221 = vpack.c.bf16 %v3531, %v3523
      %v4222 = vpack.c.bf16 %v3533, %v3525
      %v4223 = vpack.c.bf16 %v3535, %v3527
      %v4224 = vpack.c.bf16 %v3545, %v3537
      %v4225 = vpack.c.bf16 %v3547, %v3539
      %v4226 = vpack.c.bf16 %v3549, %v3541
      %v4227 = vpack.c.bf16 %v3551, %v3543
      %v4228 = vpack.c.bf16 %v3561, %v3553
      %v4229 = vpack.c.bf16 %v3563, %v3555
      %v4230 = vpack.c.bf16 %v3565, %v3557
      %v4231 = vpack.c.bf16 %v3567, %v3559
      %v4232 = vpack.c.bf16 %v3577, %v3569
      %v4233 = vpack.c.bf16 %v3579, %v3571
      %v4234 = vpack.c.bf16 %v3581, %v3573
      %v4235 = vpack.c.bf16 %v3583, %v3575
      %v4236 = vpack.c.bf16 %v3593, %v3585
      %v4237 = vpack.c.bf16 %v3595, %v3587
      %v4238 = vpack.c.bf16 %v3597, %v3589
      %v4239 = vpack.c.bf16 %v3599, %v3591
      %v4240 = vpack.c.bf16 %v3609, %v3601
      %v4241 = vpack.c.bf16 %v3611, %v3603
      %v4242 = vpack.c.bf16 %v3613, %v3605
      %v4243 = vpack.c.bf16 %v3615, %v3607
      %v4244 = vpack.c.bf16 %v3625, %v3617
      %v4245 = vpack.c.bf16 %v3627, %v3619
      %v4246 = vpack.c.bf16 %v3629, %v3621
      %v4247 = vpack.c.bf16 %v3631, %v3623
      %v4248 = vpack.c.bf16 %v3641, %v3633
      %v4249 = vpack.c.bf16 %v3643, %v3635
      %v4250 = vpack.c.bf16 %v3645, %v3637
      %v4251 = vpack.c.bf16 %v3647, %v3639
      %v4252 = vpack.c.bf16 %v3657, %v3649
      %v4253 = vpack.c.bf16 %v3659, %v3651
      %v4254 = vpack.c.bf16 %v3661, %v3653
      %v4255 = vpack.c.bf16 %v3663, %v3655
      %v4256 = vpack.c.bf16 %v3673, %v3665
      %v4257 = vpack.c.bf16 %v3675, %v3667
      %v4258 = vpack.c.bf16 %v3677, %v3669
      %v4259 = vpack.c.bf16 %v3679, %v3671
      %v4260 = vpack.c.bf16 %v3689, %v3681
      %v4261 = vpack.c.bf16 %v3691, %v3683
      %v4262 = vpack.c.bf16 %v3693, %v3685
      %v4263 = vpack.c.bf16 %v3695, %v3687
      %v4264 = vpack.c.bf16 %v3705, %v3697
      %v4265 = vpack.c.bf16 %v3707, %v3699
      %v4266 = vpack.c.bf16 %v3709, %v3701
      %v4267 = vpack.c.bf16 %v3711, %v3703
      %v4268 = vpack.c.bf16 %v3721, %v3713
      %v4269 = vpack.c.bf16 %v3723, %v3715
      %v4270 = vpack.c.bf16 %v3725, %v3717
      %v4271 = vpack.c.bf16 %v3727, %v3719
      %v4272 = vpack.c.bf16 %v3737, %v3729
      %v4273 = vpack.c.bf16 %v3739, %v3731
      %v4274 = vpack.c.bf16 %v3741, %v3733
      %v4275 = vpack.c.bf16 %v3743, %v3735
      %v4276 = vpack.c.bf16 %v3753, %v3745
      %v4277 = vpack.c.bf16 %v3755, %v3747
      %v4278 = vpack.c.bf16 %v3757, %v3749
      %v4279 = vpack.c.bf16 %v3759, %v3751
      %v4280 = vpack.c.bf16 %v3769, %v3761
      %v4281 = vpack.c.bf16 %v3771, %v3763
      %v4282 = vpack.c.bf16 %v3773, %v3765
      %v4283 = vpack.c.bf16 %v3775, %v3767
      %v4284 = vpack.c.bf16 %v3785, %v3777
      %v4285 = vpack.c.bf16 %v3787, %v3779
      %v4286 = vpack.c.bf16 %v3789, %v3781
      %v4287 = vpack.c.bf16 %v3791, %v3783
      %v4288 = vpack.c.bf16 %v3801, %v3793
      %v4289 = vpack.c.bf16 %v3803, %v3795
      %v4290 = vpack.c.bf16 %v3805, %v3797
      %v4291 = vpack.c.bf16 %v3807, %v3799
      %v4292 = vpack.c.bf16 %v3817, %v3809
      %v4293 = vpack.c.bf16 %v3819, %v3811
      %v4294 = vpack.c.bf16 %v3821, %v3813
      %v4295 = vpack.c.bf16 %v3823, %v3815
      %v4296 = vpack.c.bf16 %v3833, %v3825
      %v4297 = vpack.c.bf16 %v3835, %v3827
      %v4298 = vpack.c.bf16 %v3837, %v3829
      %v4299 = vpack.c.bf16 %v3839, %v3831
      %v4300 = vpack.c.bf16 %v3849, %v3841
      %v4301 = vpack.c.bf16 %v3851, %v3843
      %v4302 = vpack.c.bf16 %v3853, %v3845
      %v4303 = vpack.c.bf16 %v3855, %v3847
      %v4304 = vpack.c.bf16 %v3865, %v3857
      %v4305 = vpack.c.bf16 %v3867, %v3859
      %v4306 = vpack.c.bf16 %v3869, %v3861
      %v4307 = vpack.c.bf16 %v3871, %v3863
      %v4308 = vpack.c.bf16 %v3881, %v3873
      %v4309 = vpack.c.bf16 %v3883, %v3875
      %v4310 = vpack.c.bf16 %v3885, %v3877
      %v4311 = vpack.c.bf16 %v3887, %v3879
      %v4312 = vpack.c.bf16 %v3897, %v3889
      %v4313 = vpack.c.bf16 %v3899, %v3891
      %v4314 = vpack.c.bf16 %v3901, %v3893
      %v4315 = vpack.c.bf16 %v3903, %v3895
      %v4316 = vpack.c.bf16 %v3913, %v3905
      %v4317 = vpack.c.bf16 %v3915, %v3907
      %v4318 = vpack.c.bf16 %v3917, %v3909
      %v4319 = vpack.c.bf16 %v3919, %v3911
      %v4320 = vpack.c.bf16 %v3929, %v3921
      %v4321 = vpack.c.bf16 %v3931, %v3923
      %v4322 = vpack.c.bf16 %v3933, %v3925
      %v4323 = vpack.c.bf16 %v3935, %v3927
      %v4324 = vpack.c.bf16 %v3945, %v3937
      %v4325 = vpack.c.bf16 %v3947, %v3939
      %v4326 = vpack.c.bf16 %v3949, %v3941
      %v4327 = vpack.c.bf16 %v3951, %v3943
      %v4328 = vpack.c.bf16 %v3961, %v3953
      %v4329 = vpack.c.bf16 %v3963, %v3955
      %v4330 = vpack.c.bf16 %v3965, %v3957
      %v4331 = vpack.c.bf16 %v3967, %v3959
      %v4332 = vpack.c.bf16 %v3977, %v3969
      %v4333 = vpack.c.bf16 %v3979, %v3971
      %v4334 = vpack.c.bf16 %v3981, %v3973
      %v4335 = vpack.c.bf16 %v3983, %v3975
      %v4336 = vpack.c.bf16 %v3993, %v3985
      %v4337 = vpack.c.bf16 %v3995, %v3987
      %v4338 = vpack.c.bf16 %v3997, %v3989
      %v4339 = vpack.c.bf16 %v3999, %v3991
      %v4340 = vpack.c.bf16 %v4009, %v4001
      %v4341 = vpack.c.bf16 %v4011, %v4003
      %v4342 = vpack.c.bf16 %v4013, %v4005
      %v4343 = vpack.c.bf16 %v4015, %v4007
      %v4344 = vpack.c.bf16 %v4025, %v4017
      %v4345 = vpack.c.bf16 %v4027, %v4019
      %v4346 = vpack.c.bf16 %v4029, %v4021
      %v4347 = vpack.c.bf16 %v4031, %v4023
      %v4348 = vpack.c.bf16 %v4041, %v4033
      %v4349 = vpack.c.bf16 %v4043, %v4035
      %v4350 = vpack.c.bf16 %v4045, %v4037
      %v4351 = vpack.c.bf16 %v4047, %v4039
      %v4352 = vpack.c.bf16 %v4057, %v4049
      %v4353 = vpack.c.bf16 %v4059, %v4051
      %v4354 = vpack.c.bf16 %v4061, %v4053
      %v4355 = vpack.c.bf16 %v4063, %v4055
      %v4356 = vpack.c.bf16 %v4073, %v4065
      %v4357 = vpack.c.bf16 %v4075, %v4067
      %v4358 = vpack.c.bf16 %v4077, %v4069
      %v4359 = vpack.c.bf16 %v4079, %v4071
      %v4360 = vpack.c.bf16 %v4089, %v4081
      %v4361 = vpack.c.bf16 %v4091, %v4083
      %v4362 = vpack.c.bf16 %v4093, %v4085
      %v4363 = vpack.c.bf16 %v4095, %v4087
      %v4364 = vpack.c.bf16 %v4105, %v4097
      %v4365 = vpack.c.bf16 %v4107, %v4099
      %v4366 = vpack.c.bf16 %v4109, %v4101
      %v4367 = vpack.c.bf16 %v4111, %v4103
      %v4368 = vld [vmem:[#allocation3] sm:$0x1f]
      %v4369 = vld [vmem:[#allocation3 + $0x8] sm:$0x1f]
      %v4370 = vld [vmem:[#allocation3 + $0x10] sm:$0x1f]
      %v4371 = vld [vmem:[#allocation3 + $0x18] sm:$0x1f]
      %v4373 = vlaneseq
      %v4374 = vshrl.u32 %v4373, 7
      %v4375 = vsub.s32 0, %v4374
      %v4376 = vrot.slane %v2554, %v4375
      %v4377 = vlaneseq
      %v4378 = vshrl.u32 %v4377, 7
      %v4379 = vsub.s32 1, %v4378
      %v4380 = vrot.slane %v2554, %v4379
      %v4381 = vlaneseq
      %v4382 = vshrl.u32 %v4381, 7
      %v4383 = vsub.s32 2, %v4382
      %v4384 = vrot.slane %v2554, %v4383
      %v4385 = vlaneseq
      %v4386 = vshrl.u32 %v4385, 7
      %v4387 = vsub.s32 3, %v4386
      %v4388 = vrot.slane %v2554, %v4387
      %v4393 = vmul.f32 %v4376, %v4368
      %v4394 = vmul.f32 %v4380, %v4369
      %v4395 = vmul.f32 %v4384, %v4370
      %v4396 = vmul.f32 %v4388, %v4371
      %v4397 = vld [vmem:[%s222] sm:$0x77]
      %v4398 = vld [vmem:[%s222 + $0x8] sm:$0x77]
      %v4399 = vld [vmem:[%s222 + $0x10] sm:$0x77]
      %v4400 = vld [vmem:[%s222 + $0x18] sm:$0x77]
      %v4405 = vunpack.c.l.b16 %v4397
      %v4406 = vunpack.c.h.b16 %v4397
      %v4407 = vunpack.c.l.b16 %v4398
      %v4408 = vunpack.c.h.b16 %v4398
      %v4409 = vunpack.c.l.b16 %v4399
      %v4410 = vunpack.c.h.b16 %v4399
      %v4411 = vunpack.c.l.b16 %v4400
      %v4412 = vunpack.c.h.b16 %v4400
      %v4413 = vpack.c.b16 %v4405, %v4405
      %v4414 = vpack.c.b16 %v4406, %v4406
      %v4415 = vpack.c.b16 %v4407, %v4407
      %v4416 = vpack.c.b16 %v4408, %v4408
      %v4417 = vpack.c.b16 %v4409, %v4409
      %v4418 = vpack.c.b16 %v4410, %v4410
      %v4419 = vpack.c.b16 %v4411, %v4411
      %v4420 = vpack.c.b16 %v4412, %v4412
      %4429 = vmatprep.subr.bf16.mxu0 %v4113
      %4430 = vmatpush1.bf16.msra.mxu0 %v4112
      %4431 = vmatprep.subr.bf16.mxu0 %v4117
      %4432 = vmatpush1.bf16.msra.mxu0 %v4116
      %4433 = vmatprep.subr.bf16.mxu0 %v4121
      %4434 = vmatpush1.bf16.msra.mxu0 %v4120
      %4435 = vmatprep.subr.bf16.mxu0 %v4125
      %4436 = vmatpush1.bf16.msra.mxu0 %v4124
      %4437 = vmatprep.subr.bf16.mxu0 %v4129
      %4438 = vmatpush1.bf16.msra.mxu0 %v4128
      %4439 = vmatprep.subr.bf16.mxu0 %v4133
      %4440 = vmatpush1.bf16.msra.mxu0 %v4132
      %4441 = vmatprep.subr.bf16.mxu0 %v4137
      %4442 = vmatpush1.bf16.msra.mxu0 %v4136
      %4443 = vmatprep.subr.bf16.mxu0 %v4141
      %4444 = vmatpush1.bf16.msra.mxu0 %v4140
      %4445 = vmatprep.subr.bf16.mxu0 %v4145
      %4446 = vmatpush1.bf16.msra.mxu0 %v4144
      %4447 = vmatprep.subr.bf16.mxu0 %v4149
      %4448 = vmatpush1.bf16.msra.mxu0 %v4148
      %4449 = vmatprep.subr.bf16.mxu0 %v4153
      %4450 = vmatpush1.bf16.msra.mxu0 %v4152
      %4451 = vmatprep.subr.bf16.mxu0 %v4157
      %4452 = vmatpush1.bf16.msra.mxu0 %v4156
      %4453 = vmatprep.subr.bf16.mxu0 %v4161
      %4454 = vmatpush1.bf16.msra.mxu0 %v4160
      %4455 = vmatprep.subr.bf16.mxu0 %v4165
      %4456 = vmatpush1.bf16.msra.mxu0 %v4164
      %4457 = vmatprep.subr.bf16.mxu0 %v4169
      %4458 = vmatpush1.bf16.msra.mxu0 %v4168
      %4459 = vmatprep.subr.bf16.mxu0 %v4173
      %4460 = vmatpush1.bf16.msra.mxu0 %v4172
      %4461 = vmatprep.mubr.bf16.mxu0 %v4414
      %4462 = vmatmul.mubr.bf16.gmra.mrb[0].mxu0 %v4413
      %v4463 = vpop.f32.mrb[0].mxu0
      %v4464 = vadd.f32 0.0, %v4463
      %v4465 = vpop.f32.mrb[0].mxu0
      %v4466 = vadd.f32 0.0, %v4465
      %v4467 = vpop.f32.mrb[0].mxu0
      %v4468 = vpop.f32.mrb[0].mxu0
      %4469 = vdwg.mxu0
      %4470 = vmatprep.subr.bf16.mxu0 %v4177
      %4471 = vmatpush1.bf16.msra.mxu0 %v4176
      %4472 = vmatprep.subr.bf16.mxu0 %v4181
      %4473 = vmatpush1.bf16.msra.mxu0 %v4180
      %4474 = vmatprep.subr.bf16.mxu0 %v4185
      %4475 = vmatpush1.bf16.msra.mxu0 %v4184
      %4476 = vmatprep.subr.bf16.mxu0 %v4189
      %4477 = vmatpush1.bf16.msra.mxu0 %v4188
      %4478 = vmatprep.subr.bf16.mxu0 %v4193
      %4479 = vmatpush1.bf16.msra.mxu0 %v4192
      %4480 = vmatprep.subr.bf16.mxu0 %v4197
      %4481 = vmatpush1.bf16.msra.mxu0 %v4196
      %4482 = vmatprep.subr.bf16.mxu0 %v4201
      %4483 = vmatpush1.bf16.msra.mxu0 %v4200
      %4484 = vmatprep.subr.bf16.mxu0 %v4205
      %4485 = vmatpush1.bf16.msra.mxu0 %v4204
      %4486 = vmatprep.subr.bf16.mxu0 %v4209
      %4487 = vmatpush1.bf16.msra.mxu0 %v4208
      %4488 = vmatprep.subr.bf16.mxu0 %v4213
      %4489 = vmatpush1.bf16.msra.mxu0 %v4212
      %4490 = vmatprep.subr.bf16.mxu0 %v4217
      %4491 = vmatpush1.bf16.msra.mxu0 %v4216
      %4492 = vmatprep.subr.bf16.mxu0 %v4221
      %4493 = vmatpush1.bf16.msra.mxu0 %v4220
      %4494 = vmatprep.subr.bf16.mxu0 %v4225
      %4495 = vmatpush1.bf16.msra.mxu0 %v4224
      %4496 = vmatprep.subr.bf16.mxu0 %v4229
      %4497 = vmatpush1.bf16.msra.mxu0 %v4228
      %4498 = vmatprep.subr.bf16.mxu0 %v4233
      %4499 = vmatpush1.bf16.msra.mxu0 %v4232
      %4500 = vmatprep.subr.bf16.mxu0 %v4237
      %4501 = vmatpush1.bf16.msra.mxu0 %v4236
      %4502 = vmatprep.mubr.bf16.mxu0 %v4416
      %4503 = vmatmul.mubr.bf16.gmra.mrb[0].mxu0 %v4415
      %v4504 = vpop.f32.mrb[0].mxu0
      %v4505 = vadd.f32 %v4464, %v4504
      %v4506 = vpop.f32.mrb[0].mxu0
      %v4507 = vadd.f32 %v4466, %v4506
      %v4508 = vpop.f32.mrb[0].mxu0
      %v4509 = vpop.f32.mrb[0].mxu0
      %4510 = vdwg.mxu0
      %4511 = vmatprep.subr.bf16.mxu0 %v4241
      %4512 = vmatpush1.bf16.msra.mxu0 %v4240
      %4513 = vmatprep.subr.bf16.mxu0 %v4245
      %4514 = vmatpush1.bf16.msra.mxu0 %v4244
      %4515 = vmatprep.subr.bf16.mxu0 %v4249
      %4516 = vmatpush1.bf16.msra.mxu0 %v4248
      %4517 = vmatprep.subr.bf16.mxu0 %v4253
      %4518 = vmatpush1.bf16.msra.mxu0 %v4252
      %4519 = vmatprep.subr.bf16.mxu0 %v4257
      %4520 = vmatpush1.bf16.msra.mxu0 %v4256
      %4521 = vmatprep.subr.bf16.mxu0 %v4261
      %4522 = vmatpush1.bf16.msra.mxu0 %v4260
      %4523 = vmatprep.subr.bf16.mxu0 %v4265
      %4524 = vmatpush1.bf16.msra.mxu0 %v4264
      %4525 = vmatprep.subr.bf16.mxu0 %v4269
      %4526 = vmatpush1.bf16.msra.mxu0 %v4268
      %4527 = vmatprep.subr.bf16.mxu0 %v4273
      %4528 = vmatpush1.bf16.msra.mxu0 %v4272
      %4529 = vmatprep.subr.bf16.mxu0 %v4277
      %4530 = vmatpush1.bf16.msra.mxu0 %v4276
      %4531 = vmatprep.subr.bf16.mxu0 %v4281
      %4532 = vmatpush1.bf16.msra.mxu0 %v4280
      %4533 = vmatprep.subr.bf16.mxu0 %v4285
      %4534 = vmatpush1.bf16.msra.mxu0 %v4284
      %4535 = vmatprep.subr.bf16.mxu0 %v4289
      %4536 = vmatpush1.bf16.msra.mxu0 %v4288
      %4537 = vmatprep.subr.bf16.mxu0 %v4293
      %4538 = vmatpush1.bf16.msra.mxu0 %v4292
      %4539 = vmatprep.subr.bf16.mxu0 %v4297
      %4540 = vmatpush1.bf16.msra.mxu0 %v4296
      %4541 = vmatprep.subr.bf16.mxu0 %v4301
      %4542 = vmatpush1.bf16.msra.mxu0 %v4300
      %4543 = vmatprep.mubr.bf16.mxu0 %v4418
      %4544 = vmatmul.mubr.bf16.gmra.mrb[0].mxu0 %v4417
      %v4545 = vpop.f32.mrb[0].mxu0
      %v4546 = vadd.f32 %v4505, %v4545
      %v4547 = vpop.f32.mrb[0].mxu0
      %v4548 = vadd.f32 %v4507, %v4547
      %v4549 = vpop.f32.mrb[0].mxu0
      %v4550 = vpop.f32.mrb[0].mxu0
      %4551 = vdwg.mxu0
      %4552 = vmatprep.subr.bf16.mxu0 %v4305
      %4553 = vmatpush1.bf16.msra.mxu0 %v4304
      %4554 = vmatprep.subr.bf16.mxu0 %v4309
      %4555 = vmatpush1.bf16.msra.mxu0 %v4308
      %4556 = vmatprep.subr.bf16.mxu0 %v4313
      %4557 = vmatpush1.bf16.msra.mxu0 %v4312
      %4558 = vmatprep.subr.bf16.mxu0 %v4317
      %4559 = vmatpush1.bf16.msra.mxu0 %v4316
      %4560 = vmatprep.subr.bf16.mxu0 %v4321
      %4561 = vmatpush1.bf16.msra.mxu0 %v4320
      %4562 = vmatprep.subr.bf16.mxu0 %v4325
      %4563 = vmatpush1.bf16.msra.mxu0 %v4324
      %4564 = vmatprep.subr.bf16.mxu0 %v4329
      %4565 = vmatpush1.bf16.msra.mxu0 %v4328
      %4566 = vmatprep.subr.bf16.mxu0 %v4333
      %4567 = vmatpush1.bf16.msra.mxu0 %v4332
      %4568 = vmatprep.subr.bf16.mxu0 %v4337
      %4569 = vmatpush1.bf16.msra.mxu0 %v4336
      %4570 = vmatprep.subr.bf16.mxu0 %v4341
      %4571 = vmatpush1.bf16.msra.mxu0 %v4340
      %4572 = vmatprep.subr.bf16.mxu0 %v4345
      %4573 = vmatpush1.bf16.msra.mxu0 %v4344
      %4574 = vmatprep.subr.bf16.mxu0 %v4349
      %4575 = vmatpush1.bf16.msra.mxu0 %v4348
      %4576 = vmatprep.subr.bf16.mxu0 %v4353
      %4577 = vmatpush1.bf16.msra.mxu0 %v4352
      %4578 = vmatprep.subr.bf16.mxu0 %v4357
      %4579 = vmatpush1.bf16.msra.mxu0 %v4356
      %4580 = vmatprep.subr.bf16.mxu0 %v4361
      %4581 = vmatpush1.bf16.msra.mxu0 %v4360
      %4582 = vmatprep.subr.bf16.mxu0 %v4365
      %4583 = vmatpush1.bf16.msra.mxu0 %v4364
      %4584 = vmatprep.mubr.bf16.mxu0 %v4420
      %4585 = vmatmul.mubr.bf16.gmra.mrb[0].mxu0 %v4419
      %v4586 = vpop.f32.mrb[0].mxu0
      %v4587 = vadd.f32 %v4546, %v4586
      %v4588 = vpop.f32.mrb[0].mxu0
      %v4589 = vadd.f32 %v4548, %v4588
      %v4590 = vpop.f32.mrb[0].mxu0
      %v4591 = vpop.f32.mrb[0].mxu0
      %4592 = vdwg.mxu0
      %4593 = vmatprep.subr.bf16.mxu0 %v4115
      %4594 = vmatpush1.bf16.msra.mxu0 %v4114
      %4595 = vmatprep.subr.bf16.mxu0 %v4119
      %4596 = vmatpush1.bf16.msra.mxu0 %v4118
      %4597 = vmatprep.subr.bf16.mxu0 %v4123
      %4598 = vmatpush1.bf16.msra.mxu0 %v4122
      %4599 = vmatprep.subr.bf16.mxu0 %v4127
      %4600 = vmatpush1.bf16.msra.mxu0 %v4126
      %4601 = vmatprep.subr.bf16.mxu0 %v4131
      %4602 = vmatpush1.bf16.msra.mxu0 %v4130
      %4603 = vmatprep.subr.bf16.mxu0 %v4135
      %4604 = vmatpush1.bf16.msra.mxu0 %v4134
      %4605 = vmatprep.subr.bf16.mxu0 %v4139
      %4606 = vmatpush1.bf16.msra.mxu0 %v4138
      %4607 = vmatprep.subr.bf16.mxu0 %v4143
      %4608 = vmatpush1.bf16.msra.mxu0 %v4142
      %4609 = vmatprep.subr.bf16.mxu0 %v4147
      %4610 = vmatpush1.bf16.msra.mxu0 %v4146
      %4611 = vmatprep.subr.bf16.mxu0 %v4151
      %4612 = vmatpush1.bf16.msra.mxu0 %v4150
      %4613 = vmatprep.subr.bf16.mxu0 %v4155
      %4614 = vmatpush1.bf16.msra.mxu0 %v4154
      %4615 = vmatprep.subr.bf16.mxu0 %v4159
      %4616 = vmatpush1.bf16.msra.mxu0 %v4158
      %4617 = vmatprep.subr.bf16.mxu0 %v4163
      %4618 = vmatpush1.bf16.msra.mxu0 %v4162
      %4619 = vmatprep.subr.bf16.mxu0 %v4167
      %4620 = vmatpush1.bf16.msra.mxu0 %v4166
      %4621 = vmatprep.subr.bf16.mxu0 %v4171
      %4622 = vmatpush1.bf16.msra.mxu0 %v4170
      %4623 = vmatprep.subr.bf16.mxu0 %v4175
      %4624 = vmatpush1.bf16.msra.mxu0 %v4174
      %4625 = vmatprep.mubr.bf16.mxu0 %v4414
      %4626 = vmatmul.mubr.bf16.gmra.mrb[0].mxu0 %v4413
      %v4627 = vpop.f32.mrb[0].mxu0
      %v4628 = vadd.f32 0.0, %v4627
      %v4629 = vpop.f32.mrb[0].mxu0
      %v4630 = vadd.f32 0.0, %v4629
      %v4631 = vpop.f32.mrb[0].mxu0
      %v4632 = vpop.f32.mrb[0].mxu0
      %4633 = vdwg.mxu0
      %4634 = vmatprep.subr.bf16.mxu0 %v4179
      %4635 = vmatpush1.bf16.msra.mxu0 %v4178
      %4636 = vmatprep.subr.bf16.mxu0 %v4183
      %4637 = vmatpush1.bf16.msra.mxu0 %v4182
      %4638 = vmatprep.subr.bf16.mxu0 %v4187
      %4639 = vmatpush1.bf16.msra.mxu0 %v4186
      %4640 = vmatprep.subr.bf16.mxu0 %v4191
      %4641 = vmatpush1.bf16.msra.mxu0 %v4190
      %4642 = vmatprep.subr.bf16.mxu0 %v4195
      %4643 = vmatpush1.bf16.msra.mxu0 %v4194
      %4644 = vmatprep.subr.bf16.mxu0 %v4199
      %4645 = vmatpush1.bf16.msra.mxu0 %v4198
      %4646 = vmatprep.subr.bf16.mxu0 %v4203
      %4647 = vmatpush1.bf16.msra.mxu0 %v4202
      %4648 = vmatprep.subr.bf16.mxu0 %v4207
      %4649 = vmatpush1.bf16.msra.mxu0 %v4206
      %4650 = vmatprep.subr.bf16.mxu0 %v4211
      %4651 = vmatpush1.bf16.msra.mxu0 %v4210
      %4652 = vmatprep.subr.bf16.mxu0 %v4215
      %4653 = vmatpush1.bf16.msra.mxu0 %v4214
      %4654 = vmatprep.subr.bf16.mxu0 %v4219
      %4655 = vmatpush1.bf16.msra.mxu0 %v4218
      %4656 = vmatprep.subr.bf16.mxu0 %v4223
      %4657 = vmatpush1.bf16.msra.mxu0 %v4222
      %4658 = vmatprep.subr.bf16.mxu0 %v4227
      %4659 = vmatpush1.bf16.msra.mxu0 %v4226
      %4660 = vmatprep.subr.bf16.mxu0 %v4231
      %4661 = vmatpush1.bf16.msra.mxu0 %v4230
      %4662 = vmatprep.subr.bf16.mxu0 %v4235
      %4663 = vmatpush1.bf16.msra.mxu0 %v4234
      %4664 = vmatprep.subr.bf16.mxu0 %v4239
      %4665 = vmatpush1.bf16.msra.mxu0 %v4238
      %4666 = vmatprep.mubr.bf16.mxu0 %v4416
      %4667 = vmatmul.mubr.bf16.gmra.mrb[0].mxu0 %v4415
      %v4668 = vpop.f32.mrb[0].mxu0
      %v4669 = vadd.f32 %v4628, %v4668
      %v4670 = vpop.f32.mrb[0].mxu0
      %v4671 = vadd.f32 %v4630, %v4670
      %v4672 = vpop.f32.mrb[0].mxu0
      %v4673 = vpop.f32.mrb[0].mxu0
      %4674 = vdwg.mxu0
      %4675 = vmatprep.subr.bf16.mxu0 %v4243
      %4676 = vmatpush1.bf16.msra.mxu0 %v4242
      %4677 = vmatprep.subr.bf16.mxu0 %v4247
      %4678 = vmatpush1.bf16.msra.mxu0 %v4246
      %4679 = vmatprep.subr.bf16.mxu0 %v4251
      %4680 = vmatpush1.bf16.msra.mxu0 %v4250
      %4681 = vmatprep.subr.bf16.mxu0 %v4255
      %4682 = vmatpush1.bf16.msra.mxu0 %v4254
      %4683 = vmatprep.subr.bf16.mxu0 %v4259
      %4684 = vmatpush1.bf16.msra.mxu0 %v4258
      %4685 = vmatprep.subr.bf16.mxu0 %v4263
      %4686 = vmatpush1.bf16.msra.mxu0 %v4262
      %4687 = vmatprep.subr.bf16.mxu0 %v4267
      %4688 = vmatpush1.bf16.msra.mxu0 %v4266
      %4689 = vmatprep.subr.bf16.mxu0 %v4271
      %4690 = vmatpush1.bf16.msra.mxu0 %v4270
      %4691 = vmatprep.subr.bf16.mxu0 %v4275
      %4692 = vmatpush1.bf16.msra.mxu0 %v4274
      %4693 = vmatprep.subr.bf16.mxu0 %v4279
      %4694 = vmatpush1.bf16.msra.mxu0 %v4278
      %4695 = vmatprep.subr.bf16.mxu0 %v4283
      %4696 = vmatpush1.bf16.msra.mxu0 %v4282
      %4697 = vmatprep.subr.bf16.mxu0 %v4287
      %4698 = vmatpush1.bf16.msra.mxu0 %v4286
      %4699 = vmatprep.subr.bf16.mxu0 %v4291
      %4700 = vmatpush1.bf16.msra.mxu0 %v4290
      %4701 = vmatprep.subr.bf16.mxu0 %v4295
      %4702 = vmatpush1.bf16.msra.mxu0 %v4294
      %4703 = vmatprep.subr.bf16.mxu0 %v4299
      %4704 = vmatpush1.bf16.msra.mxu0 %v4298
      %4705 = vmatprep.subr.bf16.mxu0 %v4303
      %4706 = vmatpush1.bf16.msra.mxu0 %v4302
      %4707 = vmatprep.mubr.bf16.mxu0 %v4418
      %4708 = vmatmul.mubr.bf16.gmra.mrb[0].mxu0 %v4417
      %v4709 = vpop.f32.mrb[0].mxu0
      %v4710 = vadd.f32 %v4669, %v4709
      %v4711 = vpop.f32.mrb[0].mxu0
      %v4712 = vadd.f32 %v4671, %v4711
      %v4713 = vpop.f32.mrb[0].mxu0
      %v4714 = vpop.f32.mrb[0].mxu0
      %4715 = vdwg.mxu0
      %4716 = vmatprep.subr.bf16.mxu0 %v4307
      %4717 = vmatpush1.bf16.msra.mxu0 %v4306
      %4718 = vmatprep.subr.bf16.mxu0 %v4311
      %4719 = vmatpush1.bf16.msra.mxu0 %v4310
      %4720 = vmatprep.subr.bf16.mxu0 %v4315
      %4721 = vmatpush1.bf16.msra.mxu0 %v4314
      %4722 = vmatprep.subr.bf16.mxu0 %v4319
      %4723 = vmatpush1.bf16.msra.mxu0 %v4318
      %4724 = vmatprep.subr.bf16.mxu0 %v4323
      %4725 = vmatpush1.bf16.msra.mxu0 %v4322
      %4726 = vmatprep.subr.bf16.mxu0 %v4327
      %4727 = vmatpush1.bf16.msra.mxu0 %v4326
      %4728 = vmatprep.subr.bf16.mxu0 %v4331
      %4729 = vmatpush1.bf16.msra.mxu0 %v4330
      %4730 = vmatprep.subr.bf16.mxu0 %v4335
      %4731 = vmatpush1.bf16.msra.mxu0 %v4334
      %4732 = vmatprep.subr.bf16.mxu0 %v4339
      %4733 = vmatpush1.bf16.msra.mxu0 %v4338
      %4734 = vmatprep.subr.bf16.mxu0 %v4343
      %4735 = vmatpush1.bf16.msra.mxu0 %v4342
      %4736 = vmatprep.subr.bf16.mxu0 %v4347
      %4737 = vmatpush1.bf16.msra.mxu0 %v4346
      %4738 = vmatprep.subr.bf16.mxu0 %v4351
      %4739 = vmatpush1.bf16.msra.mxu0 %v4350
      %4740 = vmatprep.subr.bf16.mxu0 %v4355
      %4741 = vmatpush1.bf16.msra.mxu0 %v4354
      %4742 = vmatprep.subr.bf16.mxu0 %v4359
      %4743 = vmatpush1.bf16.msra.mxu0 %v4358
      %4744 = vmatprep.subr.bf16.mxu0 %v4363
      %4745 = vmatpush1.bf16.msra.mxu0 %v4362
      %4746 = vmatprep.subr.bf16.mxu0 %v4367
      %4747 = vmatpush1.bf16.msra.mxu0 %v4366
      %4748 = vmatprep.mubr.bf16.mxu0 %v4420
      %4749 = vmatmul.mubr.bf16.gmra.mrb[0].mxu0 %v4419
      %v4750 = vpop.f32.mrb[0].mxu0
      %v4751 = vadd.f32 %v4710, %v4750
      %v4752 = vpop.f32.mrb[0].mxu0
      %v4753 = vadd.f32 %v4712, %v4752
      %v4754 = vpop.f32.mrb[0].mxu0
      %v4755 = vpop.f32.mrb[0].mxu0
      %4756 = vdwg.mxu0
      %v4757 = vadd.f32 %v4393, %v4587
      %v4758 = vadd.f32 %v4394, %v4589
      %v4759 = vadd.f32 %v4395, %v4751
      %v4760 = vadd.f32 %v4396, %v4753
      %4761 = vst [vmem:[#allocation3] sm:$0x1f] %v4757
      %4762 = vst [vmem:[#allocation3 + $0x8] sm:$0x1f] %v4758
      %4763 = vst [vmem:[#allocation3 + $0x10] sm:$0x1f] %v4759
      %4764 = vst [vmem:[#allocation3 + $0x18] sm:$0x1f] %v4760
      %v4765 = vlaneseq
      %vm4766 = vcmp.ge.s32.totalorder %v4765, 0
      %vm4767 = vcmp.lt.s32.totalorder %v4765, 512
      %vm4768 = vmand %vm4766, %vm4767
      %4769 = vst.msk [vmem:[#allocation2] sm:$0xf] %vm4768, %v2551
      %p4770 = scmp.eq.s32.totalorder %s19, 1
      // Predicated region
      $region37: #{multi_head_attention_3d_forward.4} parent=31 // pred_check
        %p4771 = pneg %p4770
      $region38: #{multi_head_attention_3d_forward.4} parent=31 // pred_check_branch
        %4773 = sbr.rel (%p4771) target = $region40
      $region39: #{multi_head_attention_3d_forward.4} parent=31 // pred_region
        %s4774 = scalar_lea.vmem [#allocation3], 4
        %v4775 = vld [vmem:[%s4774] ss:$8 sm:$0xf]
        %v4776 = vrcp.pop %v4775
        %v4777 = vld [vmem:[#allocation3] sm:$0xf]
        %v4778 = vld [vmem:[#allocation3 + $0x8] sm:$0xf]
        %v4779 = vld [vmem:[#allocation3 + $0x10] sm:$0xf]
        %v4780 = vld [vmem:[#allocation3 + $0x18] sm:$0xf]
        %v4782 = vlaneseq
        %v4783 = vshrl.u32 %v4782, 7
        %v4784 = vsub.s32 0, %v4783
        %v4785 = vrot.slane %v4776, %v4784
        %v4786 = vlaneseq
        %v4787 = vshrl.u32 %v4786, 7
        %v4788 = vsub.s32 1, %v4787
        %v4789 = vrot.slane %v4776, %v4788
        %v4790 = vlaneseq
        %v4791 = vshrl.u32 %v4790, 7
        %v4792 = vsub.s32 2, %v4791
        %v4793 = vrot.slane %v4776, %v4792
        %v4794 = vlaneseq
        %v4795 = vshrl.u32 %v4794, 7
        %v4796 = vsub.s32 3, %v4795
        %v4797 = vrot.slane %v4776, %v4796
        %v4802 = vmul.f32 %v4777, %v4785
        %v4803 = vmul.f32 %v4778, %v4789
        %v4804 = vmul.f32 %v4779, %v4793
        %v4805 = vmul.f32 %v4780, %v4797
        %v4806 = vpack.c.bf16 %v4802, %v4802
        %v4807 = vpack.c.bf16 %v4803, %v4803
        %v4808 = vpack.c.bf16 %v4804, %v4804
        %v4809 = vpack.c.bf16 %v4805, %v4805
        %v4814 = vcombine.low %v4806, %v4807
        %v4815 = vcombine.low %v4808, %v4809
        %v4817 = vunpack.c.l.s4 1983009808
        %v4818 = vunpack.c.0.s8 %v4817
        %v4819 = vlaneseq
        %v4820 = vshrl.u32 %v4819, 7
        %v4821 = vsub.s32 %v4818, %v4820
        %v4822 = vrot.slane %v4814, %v4821
        %v4824 = vunpack.c.l.s4 1983009808
        %v4825 = vunpack.c.0.s8 %v4824
        %v4826 = vlaneseq
        %v4827 = vshrl.u32 %v4826, 7
        %v4828 = vsub.s32 %v4825, %v4827
        %v4829 = vrot.slane %v4815, %v4828
        %v4830 = vcombine.low %v4822, %v4829
        %4832 = vst [vmem:[%s228] sm:$0xff] %v4830
      $region40: #{multi_head_attention_3d_forward.4} parent=31 // pred_fallthru
        _
      %s4833 = smul.u32 4, %s18
      %p4834 = scmp.lt.s32.totalorder %s4833, 15
      %s4835 = scalar_select %p4834, %s4833, 15
      %s4836 = smul.addr %s4835, 2
      %s4837 = scalar_lea.vmem %s3, %s4836
      // Predicated region
      $region41: #{multi_head_attention_3d_forward.4} parent=31 // pred_check
        %p4838 = pneg %p122
      $region42: #{multi_head_attention_3d_forward.4} parent=31 // pred_check_branch
        %4840 = sbr.rel (%p4838) target = $region44
      $region43: #{multi_head_attention_3d_forward.4} parent=31 // pred_region
        %s4841 = smul.u32 4, %s18
      $region44: #{multi_head_attention_3d_forward.4} parent=31 // pred_fallthru
        _
    $region32: #{multi_head_attention_3d_forward.4} parent=5 // pred_fallthru
      _
    %p4842 = scmp.le.s32.totalorder 2, %s9
    // Predicated region
    $region45: #{multi_head_attention_3d_forward.4} parent=5 // pred_check
      %p4843 = pneg %p4842
    $region46: #{multi_head_attention_3d_forward.4} parent=5 // pred_check_branch
      %4845 = sbr.rel (%p4843) target = $region48
    $region47: #{multi_head_attention_3d_forward.4} parent=5 // pred_region
      %s4846 = ssub.s32 %s9, 2
      // Predicated region
      $region49: #{multi_head_attention_3d_forward.4} parent=47 // pred_check
        %p4847 = pneg %p128
      $region50: #{multi_head_attention_3d_forward.4} parent=47 // pred_check_branch
        %4849 = sbr.rel (%p4847) target = $region52
      $region51: #{multi_head_attention_3d_forward.4} parent=47 // pred_region
        %s4850 = smul.u32 4, %s20
        %p4851 = scmp.lt.s32.totalorder %s4850, 15
        %s4852 = scalar_select %p4851, %s4850, 15
        %s4853 = smul.addr %s4852, 2
        %s4854 = scalar_lea.vmem %s3, %s4853
      $region52: #{multi_head_attention_3d_forward.4} parent=47 // pred_fallthru
        _
    $region48: #{multi_head_attention_3d_forward.4} parent=5 // pred_fallthru
      _
  $region6: #{multi_head_attention_3d_forward.4} parent=0 // loop_footer
    %s13 = sadd.s32 1, %s9
  $region7: #{multi_head_attention_3d_forward.4} parent=0 // loop_footer_branch
    %8 = sbr.rel target = $region3
  $region8: #{multi_head_attention_3d_forward.4} parent=0 // loop_exit
    _

</llo_original>
